<compile_context>
chip_gen: v7x
topology: tpu7x:2x2x1
jax: 0.10.0
libtpu: 0.0.40
codegen_flags: <defaults>
</compile_context>

<pallas_src>
import math

import jax
import jax.numpy as jnp
from jax import lax
from jax.experimental import pallas as pl
from jax.experimental.pallas import tpu as pltpu


def _round_up(x, m):
    return (x + m - 1) // m * m


def _pick_tile(n_pad, cap, step=128):
    """Largest multiple-of-`step` divisor of n_pad that is <= cap (n_pad % step == 0)."""
    t = min(n_pad, cap)
    while n_pad % t:
        t -= step
    return t


def _stein_kernel_block(params_ref, xsr_ref, xsc_ref, raux_ref, caux_ref, k_ref):
    """One (tm, tn) tile of the Stein-RBF Gram matrix k_0(X, X) + beta.

    params_ref (SMEM, f32[3]): [parm1, 1/parm2, beta_cstkernel]
    xsr_ref : (2*tm, d)  [X row-tile ; score row-tile]  (stacked along sublanes)
    xsc_ref : (2*tn, d)  [X col-tile ; score col-tile]
    raux_ref: (tm, 2)    per-row  [ ||x_i||^2 , x_i.s_i ]
    caux_ref: (2, tn)    per-col  row0 = ||x_j||^2 , row1 = x_j.s_j
    k_ref   : (tm, tn)   output tile
    """
    parm1 = params_ref[0]
    inv_l = params_ref[1]
    beta = params_ref[2]

    lhs = xsr_ref[...]                       # (2*tm, d)
    rhs = xsc_ref[...]                       # (2*tn, d)
    tm = lhs.shape[0] // 2
    tn = rhs.shape[0] // 2
    d = lhs.shape[1]

    # single fused MXU push: quadrants are X.X^T, X.S^T, S.X^T, S.S^T
    big = lax.dot_general(lhs, rhs, (((1,), (1,)), ((), ())),
                          preferred_element_type=jnp.float32)   # (2tm, 2tn)
    xxT = big[:tm, :tn]
    xs_plus_sx = big[:tm, tn:] + big[tm:, :tn]    # x_i.s_j + s_i.x_j
    ssT = big[tm:, tn:]

    raux = raux_ref[...]                     # (tm, 2)
    sq_r = raux[:, 0:1]                      # ||x_i||^2
    dxs_r = raux[:, 1:2]                     # x_i.s_i
    caux = caux_ref[...]                     # (2, tn)
    sq_c = caux[0:1, :]                      # ||x_j||^2
    dxs_c = caux[1:2, :]                     # x_j.s_j

    # pairwise squared distances; clamp (f32 cancellation can make it slightly < 0)
    r2 = jnp.maximum(sq_r + sq_c - 2.0 * xxT, 0.0)
    u = r2 * inv_l                           # r^2 / l
    kb = parm1 * jnp.exp(-u)                 # RBF base kernel (EUP exp)

    # (x_i - x_j) . (s(x_i) - s(x_j))
    diff_dot = (dxs_r + dxs_c) - xs_plus_sx

    # Stein term: 2d/l - 4 r^2/l^2 + (2/l) diff_dot + s.s
    term = inv_l * (jnp.float32(2 * d) - 4.0 * u + 2.0 * diff_dot) + ssT

    k_ref[...] = kb * term + beta


def stein_kernel_matrix(X, S, parm1, inv_l, beta,
                        row_tile_cap=256, col_tile_cap=512):
    """k_0(X, X) + beta via Pallas; lane-dense output tiles (padded to 128)."""
    n, d = X.shape
    n_pad = _round_up(max(n, 1), 128)
    tm = _pick_tile(n_pad, row_tile_cap)
    tn = _pick_tile(n_pad, col_tile_cap)

    pad = n_pad - n
    Xp = jnp.pad(X.astype(jnp.float32), ((0, pad), (0, 0)))
    Sp = jnp.pad(S.astype(jnp.float32), ((0, pad), (0, 0)))

    # blocked interleave: each row/col grid tile is a contiguous [X-tile ; S-tile] slab,
    # so the kernel can do ONE fused dot per tile with no in-kernel reshape/concat.
    nb_r = n_pad // tm
    xs_rows = jnp.concatenate(
        [Xp.reshape(nb_r, tm, d), Sp.reshape(nb_r, tm, d)], axis=1
    ).reshape(2 * n_pad, d)
    nb_c = n_pad // tn
    xs_cols = jnp.concatenate(
        [Xp.reshape(nb_c, tn, d), Sp.reshape(nb_c, tn, d)], axis=1
    ).reshape(2 * n_pad, d)

    # per-row reductions precomputed once (no per-grid-step XLU reduces in the kernel)
    sq = jnp.sum(Xp * Xp, axis=1)
    dxs = jnp.sum(Xp * Sp, axis=1)
    row_aux = jnp.stack([sq, dxs], axis=1)           # (n_pad, 2)
    col_aux = jnp.stack([sq, dxs], axis=0)           # (2, n_pad)

    params = jnp.stack([jnp.asarray(parm1, jnp.float32).reshape(()),
                        jnp.asarray(inv_l, jnp.float32).reshape(()),
                        jnp.asarray(beta, jnp.float32).reshape(())])

    k_pad = pl.pallas_call(
        _stein_kernel_block,
        out_shape=jax.ShapeDtypeStruct((n_pad, n_pad), jnp.float32),
        grid=(nb_r, nb_c),
        in_specs=[
            pl.BlockSpec(memory_space=pltpu.MemorySpace.SMEM),       # params
            pl.BlockSpec((2 * tm, d), lambda i, j: (i, 0)),          # [X;S] row slab
            pl.BlockSpec((2 * tn, d), lambda i, j: (j, 0)),          # [X;S] col slab
            pl.BlockSpec((tm, 2), lambda i, j: (i, 0)),              # row aux
            pl.BlockSpec((2, tn), lambda i, j: (0, j)),              # col aux
        ],
        out_specs=pl.BlockSpec((tm, tn), lambda i, j: (i, j)),
        compiler_params=pltpu.CompilerParams(
            dimension_semantics=("parallel", "parallel")),
    )(params, xs_rows, xs_cols, row_aux, col_aux)

    return k_pad[:n, :n]


@jax.jit
def negative_log_marginal_lik_MRI_singledat_forward(
        X_whole_tr, Y_whole_tr, score_tensor_X_whole_tr,
        batch_sample_indices,
        base_kernel_parm1_raw, base_kernel_parm2_raw,
        beta_cstkernel=1.0):
    """Mirrors negative_log_marginal_lik_MRI_singledat.forward (float32), fully jitted."""
    parm1 = jnp.exp(base_kernel_parm1_raw)
    inv_l = jnp.exp(-base_kernel_parm2_raw)          # 1 / parm2

    X_batch = X_whole_tr[batch_sample_indices, :]
    Y_batch = Y_whole_tr[batch_sample_indices, :]
    score_batch = score_tensor_X_whole_tr[batch_sample_indices, :]
    n = X_batch.shape[0]

    # --- hot path: Stein-kernel Gram matrix in Pallas ---
    k_XbXb = stein_kernel_matrix(X_batch, score_batch, parm1, inv_l,
                                 jnp.float32(beta_cstkernel))

    # --- conditioning loop, device-side ---
    # k_Yb = k_XbXb + lam*I and k_XbXb is symmetric, so eig(k_Yb) = eig(k_XbXb) + lam:
    # one eigvalsh, then a scalar-only lax.while_loop tracks cond_2 exactly
    # (matches np.linalg.cond's 2-norm for symmetric matrices).
    threshold = jnp.float32(1e6)
    evals = jnp.linalg.eigvalsh(k_XbXb)

    def cond2(lam):
        w = jnp.abs(evals + lam)
        return jnp.max(w) / jnp.min(w)

    lam0 = jnp.float32(1e-6)
    bad0 = cond2(jnp.float32(0.0)) >= threshold      # reference checks cond(k_XbXb) first

    def body_fn(state):
        _, lam = state
        lam = jnp.float32(10.0) * lam
        return cond2(lam) >= threshold, lam

    _, lam = lax.while_loop(lambda s: s[0], body_fn, (bad0, lam0))
    k_Yb = k_XbXb + lam * jnp.eye(n, dtype=jnp.float32)

    if Y_batch.ndim == 1:
        Y_batch = Y_batch[:, None]

    # TODO(synk): Cholesky factorization / MultivariateNormal.log_prob solve has no
    # clean Pallas equivalent; kept in plain JAX (tiny n x n problem).
    L = jnp.linalg.cholesky(k_Yb)
    logdet = 2.0 * jnp.sum(jnp.log(jnp.diag(L)))
    log2pi = jnp.float32(math.log(2.0 * math.pi))

    log_mll = jnp.float32(0.0)
    for j in range(Y_whole_tr.shape[1]):
        y = Y_batch[:, j]
        alpha = jax.scipy.linalg.cho_solve((L, True), y)
        quad = jnp.dot(y, alpha)
        log_mll = log_mll + (-0.5 * (quad + logdet + n * log2pi))

    return -1.0 * log_mll


if __name__ == "__main__":
    key = jax.random.PRNGKey(0)
    k1, k2, k3 = jax.random.split(key, 3)

    m, d = 64, 8          # X_whole_tr: m x d, Y_whole_tr: m x 1
    batch_size = 32

    X_whole_tr = jax.random.normal(k1, (m, d), dtype=jnp.float32)
    Y_whole_tr = jax.random.normal(k2, (m, 1), dtype=jnp.float32)
    # synthetic score function (grad-log-density of a standard normal): -x
    score_tensor_X_whole_tr = -X_whole_tr

    batch_sample_indices = jax.random.permutation(k3, m)[:batch_size]

    # deterministic parameter init, matching __init__ with
    # flag_if_use_medianheuristic=False and an RBF base kernel:
    #   parm1_raw = log(1) (fixed), parm2_raw = log(10) (learnable Parameter)
    base_kernel_parm1_raw = jnp.float32(0.0)            # log(1.0)
    base_kernel_parm2_raw = jnp.log(jnp.float32(10.0))  # log(10.0)

    neg_log_mll = negative_log_marginal_lik_MRI_singledat_forward(
        X_whole_tr, Y_whole_tr, score_tensor_X_whole_tr,
        batch_sample_indices,
        base_kernel_parm1_raw, base_kernel_parm2_raw,
        beta_cstkernel=1.0)

    jax.block_until_ready(neg_log_mll)
    assert jnp.isfinite(neg_log_mll), "non-finite NLML"
    print("KERNEL_OK")
</pallas_src>

<mosaic_0001>
module attributes {stable_mosaic.version = 11 : i64} {
  func.func @_stein_kernel_block(%arg0: i32, %arg1: i32, %arg2: memref<3xf32, #tpu.memory_space<smem>>, %arg3: memref<256x8xf32, #tpu.memory_space<vmem>>, %arg4: memref<256x8xf32, #tpu.memory_space<vmem>>, %arg5: memref<128x2xf32, #tpu.memory_space<vmem>>, %arg6: memref<2x128xf32, #tpu.memory_space<vmem>>, %arg7: memref<128x128xf32, #tpu.memory_space<vmem>>) attributes {dimension_semantics = [#tpu.dimension_semantics<parallel>, #tpu.dimension_semantics<parallel>], iteration_bounds = array<i64: 1, 1>, scalar_prefetch = 0 : i64, scratch_operands = 0 : i64, tpu.core_type = #tpu.core_type<tc>, window_params = [{transform_indices = @transform_0, window_bounds = array<i64: 3>}, {transform_indices = @transform_1, window_bounds = array<i64: 256, 8>}, {transform_indices = @transform_2, window_bounds = array<i64: 256, 8>}, {transform_indices = @transform_3, window_bounds = array<i64: 128, 2>}, {transform_indices = @transform_4, window_bounds = array<i64: 2, 128>}, {transform_indices = @transform_5, window_bounds = array<i64: 128, 128>}]} {
    %c0 = arith.constant 0 : index
    %0 = memref.load %arg2[%c0] : memref<3xf32, #tpu.memory_space<smem>>
    %c1 = arith.constant 1 : index
    %1 = memref.load %arg2[%c1] : memref<3xf32, #tpu.memory_space<smem>>
    %c2 = arith.constant 2 : index
    %2 = memref.load %arg2[%c2] : memref<3xf32, #tpu.memory_space<smem>>
    %c0_0 = arith.constant 0 : index
    %c0_1 = arith.constant 0 : index
    %3 = vector.load %arg3[%c0_0, %c0_1] : memref<256x8xf32, #tpu.memory_space<vmem>>, vector<256x8xf32>
    %c0_2 = arith.constant 0 : index
    %c0_3 = arith.constant 0 : index
    %4 = vector.load %arg4[%c0_2, %c0_3] : memref<256x8xf32, #tpu.memory_space<vmem>>, vector<256x8xf32>
    %cst = arith.constant dense<0.000000e+00> : vector<256x256xf32>
    %5 = tpu.matmul %3, %4, %cst {dimension_numbers = #tpu.dot_dimension_numbers<[1], [1], [0], [0], [0, 0, 1, 0], [], []>} : vector<256x8xf32>, vector<256x8xf32>, vector<256x256xf32> -> vector<256x256xf32>
    %6 = vector.extract_strided_slice %5 {offsets = [0, 0], sizes = [128, 128], strides = [1, 1]} : vector<256x256xf32> to vector<128x128xf32>
    %7 = vector.extract_strided_slice %5 {offsets = [0, 128], sizes = [128, 128], strides = [1, 1]} : vector<256x256xf32> to vector<128x128xf32>
    %8 = vector.extract_strided_slice %5 {offsets = [128, 0], sizes = [128, 128], strides = [1, 1]} : vector<256x256xf32> to vector<128x128xf32>
    %9 = arith.addf %7, %8 : vector<128x128xf32>
    %10 = vector.extract_strided_slice %5 {offsets = [128, 128], sizes = [128, 128], strides = [1, 1]} : vector<256x256xf32> to vector<128x128xf32>
    %c0_4 = arith.constant 0 : index
    %c0_5 = arith.constant 0 : index
    %11 = vector.load %arg5[%c0_4, %c0_5] : memref<128x2xf32, #tpu.memory_space<vmem>>, vector<128x2xf32>
    %12 = vector.extract_strided_slice %11 {offsets = [0, 0], sizes = [128, 1], strides = [1, 1]} : vector<128x2xf32> to vector<128x1xf32>
    %13 = vector.extract_strided_slice %11 {offsets = [0, 1], sizes = [128, 1], strides = [1, 1]} : vector<128x2xf32> to vector<128x1xf32>
    %c0_6 = arith.constant 0 : index
    %c0_7 = arith.constant 0 : index
    %14 = vector.load %arg6[%c0_6, %c0_7] : memref<2x128xf32, #tpu.memory_space<vmem>>, vector<2x128xf32>
    %15 = vector.extract_strided_slice %14 {offsets = [0, 0], sizes = [1, 128], strides = [1, 1]} : vector<2x128xf32> to vector<1x128xf32>
    %16 = vector.extract_strided_slice %14 {offsets = [1, 0], sizes = [1, 128], strides = [1, 1]} : vector<2x128xf32> to vector<1x128xf32>
    %17 = vector.broadcast %12 : vector<128x1xf32> to vector<128x128xf32>
    %18 = vector.broadcast %15 : vector<1x128xf32> to vector<128x128xf32>
    %19 = arith.addf %17, %18 : vector<128x128xf32>
    %cst_8 = arith.constant 2.000000e+00 : f32
    %20 = vector.broadcast %cst_8 : f32 to vector<128x128xf32>
    %21 = arith.mulf %20, %6 : vector<128x128xf32>
    %22 = arith.subf %19, %21 : vector<128x128xf32>
    %cst_9 = arith.constant 0.000000e+00 : f32
    %23 = vector.broadcast %cst_9 : f32 to vector<128x128xf32>
    %24 = arith.maximumf %22, %23 : vector<128x128xf32>
    %25 = vector.broadcast %1 : f32 to vector<128x128xf32>
    %26 = arith.mulf %24, %25 : vector<128x128xf32>
    %cst_10 = arith.constant 0.000000e+00 : f32
    %27 = vector.broadcast %cst_10 : f32 to vector<128x128xf32>
    %28 = arith.subf %27, %26 : vector<128x128xf32>
    %29 = math.exp %28 : vector<128x128xf32>
    %30 = vector.broadcast %0 : f32 to vector<128x128xf32>
    %31 = arith.mulf %30, %29 : vector<128x128xf32>
    %32 = vector.broadcast %13 : vector<128x1xf32> to vector<128x128xf32>
    %33 = vector.broadcast %16 : vector<1x128xf32> to vector<128x128xf32>
    %34 = arith.addf %32, %33 : vector<128x128xf32>
    %35 = arith.subf %34, %9 : vector<128x128xf32>
    %cst_11 = arith.constant 4.000000e+00 : f32
    %36 = vector.broadcast %cst_11 : f32 to vector<128x128xf32>
    %37 = arith.mulf %36, %26 : vector<128x128xf32>
    %cst_12 = arith.constant 1.600000e+01 : f32
    %38 = vector.broadcast %cst_12 : f32 to vector<128x128xf32>
    %39 = arith.subf %38, %37 : vector<128x128xf32>
    %cst_13 = arith.constant 2.000000e+00 : f32
    %40 = vector.broadcast %cst_13 : f32 to vector<128x128xf32>
    %41 = arith.mulf %40, %35 : vector<128x128xf32>
    %42 = arith.addf %39, %41 : vector<128x128xf32>
    %43 = vector.broadcast %1 : f32 to vector<128x128xf32>
    %44 = arith.mulf %43, %42 : vector<128x128xf32>
    %45 = arith.addf %44, %10 : vector<128x128xf32>
    %46 = arith.mulf %31, %45 : vector<128x128xf32>
    %47 = vector.broadcast %2 : f32 to vector<128x128xf32>
    %48 = arith.addf %46, %47 : vector<128x128xf32>
    %c0_14 = arith.constant 0 : index
    %c0_15 = arith.constant 0 : index
    %49 = vector.load %arg7[%c0_14, %c0_15] : memref<128x128xf32, #tpu.memory_space<vmem>>, vector<128x128xf32>
    tpu.vector_store %arg7[%c0_14, %c0_15], %48 {strides = array<i32>} : memref<128x128xf32, #tpu.memory_space<vmem>>, vector<128x128xf32>,
    return
  }
  func.func @transform_0(%arg0: i32, %arg1: i32) -> i32 {
    %c0_i32 = arith.constant 0 : i32
    %c0_i32_0 = arith.constant 0 : i32
    return %c0_i32 : i32
  }
  func.func @transform_1(%arg0: i32, %arg1: i32) -> (i32, i32) {
    %c0_i32 = arith.constant 0 : i32
    %c0_i32_0 = arith.constant 0 : i32
    return %arg0, %c0_i32 : i32, i32
  }
  func.func @transform_2(%arg0: i32, %arg1: i32) -> (i32, i32) {
    %c0_i32 = arith.constant 0 : i32
    %c0_i32_0 = arith.constant 0 : i32
    return %arg1, %c0_i32 : i32, i32
  }
  func.func @transform_3(%arg0: i32, %arg1: i32) -> (i32, i32) {
    %c0_i32 = arith.constant 0 : i32
    %c0_i32_0 = arith.constant 0 : i32
    return %arg0, %c0_i32 : i32, i32
  }
  func.func @transform_4(%arg0: i32, %arg1: i32) -> (i32, i32) {
    %c0_i32 = arith.constant 0 : i32
    %c0_i32_0 = arith.constant 0 : i32
    return %c0_i32, %arg1 : i32, i32
  }
  func.func @transform_5(%arg0: i32, %arg1: i32) -> (i32, i32) {
    %c0_i32 = arith.constant 0 : i32
    return %arg0, %arg1 : i32, i32
  }
}

</mosaic_0001>

<llo_original>
// kernel: custom-call.9
$region0: #{custom-call.9}
  %s0 = inlined_call_operand.vmem [shape: f32[16,16], index: 0, kind: input, shape index: {}]
  %s1 = inlined_call_operand.vmem [shape: f32[16,16], index: 1, kind: input, shape index: {}]
  %s2 = inlined_call_operand.vmem [shape: f32[16,16], index: 2, kind: input, shape index: {}]
  %s3 = inlined_call_operand.vmem [shape: f32[16,16], index: 3, kind: input, shape index: {}]
  %s4 = inlined_call_operand.vmem [shape: f32[16], index: 4, kind: output, shape index: {0}]
  %s5 = inlined_call_operand.vmem [shape: f32[16], index: 5, kind: output, shape index: {1}]
  %s6 = inlined_call_operand.hbm [shape: f32[16,16], index: 6, kind: output, shape index: {2}]
  %s7 = inlined_call_operand.hbm [shape: f32[16,16], index: 7, kind: output, shape index: {3}]
  %s8 = inlined_call_operand.hbm [shape: f32[16,16], index: 8, kind: output, shape index: {4}]
  %s9 = inlined_call_operand.hbm [shape: f32[16,16], index: 9, kind: output, shape index: {5}]
  %10 = xla_tuple %s4, %s5, %s6, %s7, %s8, %s9
  $region1: #{custom-call.9} parent=0
    #allocation0 [shape = 'u8[8192]{0}', space=vmem, size = 0x2000, scoped, tag = 'operand span for operand 0']
    #allocation1 [shape = 'u8[8192]{0}', space=vmem, size = 0x2000, scoped, tag = 'operand span for operand 1']
    #allocation2 [shape = 'u8[8192]{0}', space=vmem, size = 0x2000, scoped, tag = 'operand span for operand 2']
    #allocation3 [shape = 'u8[8192]{0}', space=vmem, size = 0x2000, scoped, tag = 'operand span for operand 3']
    #allocation4 [shape = 'u8[4096]{0}', space=vmem, size = 0x1000, scoped, tag = 'operand span for operand 4']
    #allocation5 [shape = 'u8[512]{0}', space=vmem, size = 0x400, scoped, tag = 'packed  for operand 4']
    #allocation6 [shape = 'u8[4096]{0}', space=vmem, size = 0x1000, scoped, tag = 'operand span for operand 5']
    #allocation7 [shape = 'u8[512]{0}', space=vmem, size = 0x400, scoped, tag = 'packed  for operand 5']
    #allocation8 [shape = 'u8[8192]{0}', space=vmem, size = 0x2000, scoped, tag = 'operand span for operand 6']
    #allocation9 [shape = 's32[1]{0}', space=sflag, size = 0x4, scoped, tag = 'scoped memory for custom-call.9']
    #allocation10 [shape = 'u8[8192]{0}', space=vmem, size = 0x2000, scoped, tag = 'operand span for operand 7']
    #allocation11 [shape = 's32[1]{0}', space=sflag, size = 0x4, scoped, tag = 'scoped memory for custom-call.9']
    #allocation12 [shape = 'u8[8192]{0}', space=vmem, size = 0x2000, scoped, tag = 'operand span for operand 8']
    #allocation13 [shape = 'u8[8192]{0}', space=vmem, size = 0x2000, scoped, tag = 'operand span for operand 9']
    #allocation14 [shape = 's32[1]{0}', space=sflag, size = 0x4, scoped, tag = 'scoped memory for custom-call.9']
    #allocation15 [shape = 'f32[16,16]{1,0}', space=vmem, size = 0x2000, scoped, tag = 'a top-left matrix']
    #allocation16 [shape = 'f32[16,16]{1,0}', space=vmem, size = 0x2000, scoped, tag = 'a top-right matrix']
    #allocation17 [shape = 'f32[16,16]{1,0}', space=vmem, size = 0x2000, scoped, tag = 'a bottom-left matrix']
    #allocation18 [shape = 'f32[16,16]{1,0}', space=vmem, size = 0x2000, scoped, tag = 'a bottom-right matrix']
    %11 = vsyncpa [#allocation9], 0
    %12 = vsyncpa [#allocation11], 0
    %13 = vsyncpa [#allocation14], 0
    %p15 = scmp.gt.s32.totalorder 16, 0
    // Predicated region
    $region2: #{custom-call.9} parent=1 // pred_check
      %p16 = pneg %p15
    $region3: #{custom-call.9} parent=1 // pred_check_branch
      %18 = sbr.rel (%p16) target = $region5
    $region4: #{custom-call.9} parent=1 // pred_region
      %s19 = sshra.s32 16, 3
      %p20 = scmp.gt.s32.totalorder %s19, 0
      // Predicated region
      $region6: #{custom-call.9} parent=4 // pred_check
        %p21 = pneg %p20
      $region7: #{custom-call.9} parent=4 // pred_check_branch
        %23 = sbr.rel (%p21) target = $region9
      $region8: #{custom-call.9} parent=4 // pred_region
        %s24 = ssub.s32 %s19, 1
        %s25 = smul.u32 %s24, 128
        %s26 = sshra.s32 %s25, 4
        %s27 = scalar_lea.vmem %s0, %s26
        %v28 = vld [vmem:[%s0] sm:$0xff]
        // While loop
        $region10: #{custom-call.9} parent=8 // loop_pre_header
          _
        $region11: #{custom-call.9} parent=8 // loop_header
          %s29 = sphi %s0, %s51
          %s30 = sphi [#allocation0], %s52
          %v31 = vphi %v28, %v53
          %s32 = ssub.s32 %s27, 64
          %p33 = scmp.gt.s32.totalorder %s29, %s32
        $region12: #{custom-call.9} parent=8 // loop_header_branch
          %35 = sbr.rel (%p33) target = $region16
        $region13: #{custom-call.9} parent=8 // loop_body
          %36 = vst [vmem:[%s30] sm:$0xff] %v31
          %v37 = vld [vmem:[%s29 + $0x8] sm:$0xff]
          %38 = vst [vmem:[%s30 + $0x8] sm:$0xff] %v37
          %v39 = vld [vmem:[%s29 + $0x10] sm:$0xff]
          %40 = vst [vmem:[%s30 + $0x10] sm:$0xff] %v39
          %v41 = vld [vmem:[%s29 + $0x18] sm:$0xff]
          %42 = vst [vmem:[%s30 + $0x18] sm:$0xff] %v41
          %v43 = vld [vmem:[%s29 + $0x20] sm:$0xff]
          %44 = vst [vmem:[%s30 + $0x20] sm:$0xff] %v43
          %v45 = vld [vmem:[%s29 + $0x28] sm:$0xff]
          %46 = vst [vmem:[%s30 + $0x28] sm:$0xff] %v45
          %v47 = vld [vmem:[%s29 + $0x30] sm:$0xff]
          %48 = vst [vmem:[%s30 + $0x30] sm:$0xff] %v47
          %v49 = vld [vmem:[%s29 + $0x38] sm:$0xff]
          %50 = vst [vmem:[%s30 + $0x38] sm:$0xff] %v49
        $region14: #{custom-call.9} parent=8 // loop_footer
          %s51 = scalar_lea.vmem %s29, 64
          %s52 = scalar_lea.vmem %s30, 64
          %v53 = vld [vmem:[%s29 + $0x40] sm:$0xff]
        $region15: #{custom-call.9} parent=8 // loop_footer_branch
          %54 = sbr.rel target = $region11
        $region16: #{custom-call.9} parent=8 // loop_exit
          _
        // While loop
        $region17: #{custom-call.9} parent=8 // loop_pre_header
          _
        $region18: #{custom-call.9} parent=8 // loop_header
          %s55 = sphi %s29, %s63
          %s56 = sphi %s30, %s64
          %v57 = vphi %v31, %v57
          %p58 = scmp.gt.s32.totalorder %s55, %s27
        $region19: #{custom-call.9} parent=8 // loop_header_branch
          %60 = sbr.rel (%p58) target = $region23
        $region20: #{custom-call.9} parent=8 // loop_body
          %v61 = vld [vmem:[%s55] sm:$0xff]
          %62 = vst [vmem:[%s56] sm:$0xff] %v61
        $region21: #{custom-call.9} parent=8 // loop_footer
          %s63 = scalar_lea.vmem %s55, 8
          %s64 = scalar_lea.vmem %s56, 8
        $region22: #{custom-call.9} parent=8 // loop_footer_branch
          %65 = sbr.rel target = $region18
        $region23: #{custom-call.9} parent=8 // loop_exit
          _
      $region9: #{custom-call.9} parent=4 // pred_fallthru
        _
      %s66 = sand.u32 16, 7
      %s67 = sshllo.u32 0, %s66
      %s68 = smul.u32 %s19, 128
      %s69 = sshra.s32 %s68, 4
      %s70 = scalar_lea.vmem [#allocation0], %s69
      %s71 = smul.u32 %s19, 128
      %s72 = sshra.s32 %s71, 4
      %s73 = scalar_lea.vmem %s0, %s72
      %v74 = vld [vmem:[%s73] sm:%s67]
      %75 = vst [vmem:[%s70] sm:%s67] %v74
    $region5: #{custom-call.9} parent=1 // pred_fallthru
      _
    %p77 = scmp.gt.s32.totalorder 16, 0
    // Predicated region
    $region24: #{custom-call.9} parent=1 // pred_check
      %p78 = pneg %p77
    $region25: #{custom-call.9} parent=1 // pred_check_branch
      %80 = sbr.rel (%p78) target = $region27
    $region26: #{custom-call.9} parent=1 // pred_region
      %s81 = sshra.s32 16, 3
      %p82 = scmp.gt.s32.totalorder %s81, 0
      // Predicated region
      $region28: #{custom-call.9} parent=26 // pred_check
        %p83 = pneg %p82
      $region29: #{custom-call.9} parent=26 // pred_check_branch
        %85 = sbr.rel (%p83) target = $region31
      $region30: #{custom-call.9} parent=26 // pred_region
        %s86 = ssub.s32 %s81, 1
        %s87 = smul.u32 %s86, 128
        %s88 = sshra.s32 %s87, 4
        %s89 = scalar_lea.vmem %s1, %s88
        %v90 = vld [vmem:[%s1] sm:$0xff]
        // While loop
        $region32: #{custom-call.9} parent=30 // loop_pre_header
          _
        $region33: #{custom-call.9} parent=30 // loop_header
          %s91 = sphi %s1, %s113
          %s92 = sphi [#allocation1], %s114
          %v93 = vphi %v90, %v115
          %s94 = ssub.s32 %s89, 64
          %p95 = scmp.gt.s32.totalorder %s91, %s94
        $region34: #{custom-call.9} parent=30 // loop_header_branch
          %97 = sbr.rel (%p95) target = $region38
        $region35: #{custom-call.9} parent=30 // loop_body
          %98 = vst [vmem:[%s92] sm:$0xff] %v93
          %v99 = vld [vmem:[%s91 + $0x8] sm:$0xff]
          %100 = vst [vmem:[%s92 + $0x8] sm:$0xff] %v99
          %v101 = vld [vmem:[%s91 + $0x10] sm:$0xff]
          %102 = vst [vmem:[%s92 + $0x10] sm:$0xff] %v101
          %v103 = vld [vmem:[%s91 + $0x18] sm:$0xff]
          %104 = vst [vmem:[%s92 + $0x18] sm:$0xff] %v103
          %v105 = vld [vmem:[%s91 + $0x20] sm:$0xff]
          %106 = vst [vmem:[%s92 + $0x20] sm:$0xff] %v105
          %v107 = vld [vmem:[%s91 + $0x28] sm:$0xff]
          %108 = vst [vmem:[%s92 + $0x28] sm:$0xff] %v107
          %v109 = vld [vmem:[%s91 + $0x30] sm:$0xff]
          %110 = vst [vmem:[%s92 + $0x30] sm:$0xff] %v109
          %v111 = vld [vmem:[%s91 + $0x38] sm:$0xff]
          %112 = vst [vmem:[%s92 + $0x38] sm:$0xff] %v111
        $region36: #{custom-call.9} parent=30 // loop_footer
          %s113 = scalar_lea.vmem %s91, 64
          %s114 = scalar_lea.vmem %s92, 64
          %v115 = vld [vmem:[%s91 + $0x40] sm:$0xff]
        $region37: #{custom-call.9} parent=30 // loop_footer_branch
          %116 = sbr.rel target = $region33
        $region38: #{custom-call.9} parent=30 // loop_exit
          _
        // While loop
        $region39: #{custom-call.9} parent=30 // loop_pre_header
          _
        $region40: #{custom-call.9} parent=30 // loop_header
          %s117 = sphi %s91, %s125
          %s118 = sphi %s92, %s126
          %v119 = vphi %v93, %v119
          %p120 = scmp.gt.s32.totalorder %s117, %s89
        $region41: #{custom-call.9} parent=30 // loop_header_branch
          %122 = sbr.rel (%p120) target = $region45
        $region42: #{custom-call.9} parent=30 // loop_body
          %v123 = vld [vmem:[%s117] sm:$0xff]
          %124 = vst [vmem:[%s118] sm:$0xff] %v123
        $region43: #{custom-call.9} parent=30 // loop_footer
          %s125 = scalar_lea.vmem %s117, 8
          %s126 = scalar_lea.vmem %s118, 8
        $region44: #{custom-call.9} parent=30 // loop_footer_branch
          %127 = sbr.rel target = $region40
        $region45: #{custom-call.9} parent=30 // loop_exit
          _
      $region31: #{custom-call.9} parent=26 // pred_fallthru
        _
      %s128 = sand.u32 16, 7
      %s129 = sshllo.u32 0, %s128
      %s130 = smul.u32 %s81, 128
      %s131 = sshra.s32 %s130, 4
      %s132 = scalar_lea.vmem [#allocation1], %s131
      %s133 = smul.u32 %s81, 128
      %s134 = sshra.s32 %s133, 4
      %s135 = scalar_lea.vmem %s1, %s134
      %v136 = vld [vmem:[%s135] sm:%s129]
      %137 = vst [vmem:[%s132] sm:%s129] %v136
    $region27: #{custom-call.9} parent=1 // pred_fallthru
      _
    %p139 = scmp.gt.s32.totalorder 16, 0
    // Predicated region
    $region46: #{custom-call.9} parent=1 // pred_check
      %p140 = pneg %p139
    $region47: #{custom-call.9} parent=1 // pred_check_branch
      %142 = sbr.rel (%p140) target = $region49
    $region48: #{custom-call.9} parent=1 // pred_region
      %s143 = sshra.s32 16, 3
      %p144 = scmp.gt.s32.totalorder %s143, 0
      // Predicated region
      $region50: #{custom-call.9} parent=48 // pred_check
        %p145 = pneg %p144
      $region51: #{custom-call.9} parent=48 // pred_check_branch
        %147 = sbr.rel (%p145) target = $region53
      $region52: #{custom-call.9} parent=48 // pred_region
        %s148 = ssub.s32 %s143, 1
        %s149 = smul.u32 %s148, 128
        %s150 = sshra.s32 %s149, 4
        %s151 = scalar_lea.vmem %s2, %s150
        %v152 = vld [vmem:[%s2] sm:$0xff]
        // While loop
        $region54: #{custom-call.9} parent=52 // loop_pre_header
          _
        $region55: #{custom-call.9} parent=52 // loop_header
          %s153 = sphi %s2, %s175
          %s154 = sphi [#allocation2], %s176
          %v155 = vphi %v152, %v177
          %s156 = ssub.s32 %s151, 64
          %p157 = scmp.gt.s32.totalorder %s153, %s156
        $region56: #{custom-call.9} parent=52 // loop_header_branch
          %159 = sbr.rel (%p157) target = $region60
        $region57: #{custom-call.9} parent=52 // loop_body
          %160 = vst [vmem:[%s154] sm:$0xff] %v155
          %v161 = vld [vmem:[%s153 + $0x8] sm:$0xff]
          %162 = vst [vmem:[%s154 + $0x8] sm:$0xff] %v161
          %v163 = vld [vmem:[%s153 + $0x10] sm:$0xff]
          %164 = vst [vmem:[%s154 + $0x10] sm:$0xff] %v163
          %v165 = vld [vmem:[%s153 + $0x18] sm:$0xff]
          %166 = vst [vmem:[%s154 + $0x18] sm:$0xff] %v165
          %v167 = vld [vmem:[%s153 + $0x20] sm:$0xff]
          %168 = vst [vmem:[%s154 + $0x20] sm:$0xff] %v167
          %v169 = vld [vmem:[%s153 + $0x28] sm:$0xff]
          %170 = vst [vmem:[%s154 + $0x28] sm:$0xff] %v169
          %v171 = vld [vmem:[%s153 + $0x30] sm:$0xff]
          %172 = vst [vmem:[%s154 + $0x30] sm:$0xff] %v171
          %v173 = vld [vmem:[%s153 + $0x38] sm:$0xff]
          %174 = vst [vmem:[%s154 + $0x38] sm:$0xff] %v173
        $region58: #{custom-call.9} parent=52 // loop_footer
          %s175 = scalar_lea.vmem %s153, 64
          %s176 = scalar_lea.vmem %s154, 64
          %v177 = vld [vmem:[%s153 + $0x40] sm:$0xff]
        $region59: #{custom-call.9} parent=52 // loop_footer_branch
          %178 = sbr.rel target = $region55
        $region60: #{custom-call.9} parent=52 // loop_exit
          _
        // While loop
        $region61: #{custom-call.9} parent=52 // loop_pre_header
          _
        $region62: #{custom-call.9} parent=52 // loop_header
          %s179 = sphi %s153, %s187
          %s180 = sphi %s154, %s188
          %v181 = vphi %v155, %v181
          %p182 = scmp.gt.s32.totalorder %s179, %s151
        $region63: #{custom-call.9} parent=52 // loop_header_branch
          %184 = sbr.rel (%p182) target = $region67
        $region64: #{custom-call.9} parent=52 // loop_body
          %v185 = vld [vmem:[%s179] sm:$0xff]
          %186 = vst [vmem:[%s180] sm:$0xff] %v185
        $region65: #{custom-call.9} parent=52 // loop_footer
          %s187 = scalar_lea.vmem %s179, 8
          %s188 = scalar_lea.vmem %s180, 8
        $region66: #{custom-call.9} parent=52 // loop_footer_branch
          %189 = sbr.rel target = $region62
        $region67: #{custom-call.9} parent=52 // loop_exit
          _
      $region53: #{custom-call.9} parent=48 // pred_fallthru
        _
      %s190 = sand.u32 16, 7
      %s191 = sshllo.u32 0, %s190
      %s192 = smul.u32 %s143, 128
      %s193 = sshra.s32 %s192, 4
      %s194 = scalar_lea.vmem [#allocation2], %s193
      %s195 = smul.u32 %s143, 128
      %s196 = sshra.s32 %s195, 4
      %s197 = scalar_lea.vmem %s2, %s196
      %v198 = vld [vmem:[%s197] sm:%s191]
      %199 = vst [vmem:[%s194] sm:%s191] %v198
    $region49: #{custom-call.9} parent=1 // pred_fallthru
      _
    %p201 = scmp.gt.s32.totalorder 16, 0
    // Predicated region
    $region68: #{custom-call.9} parent=1 // pred_check
      %p202 = pneg %p201
    $region69: #{custom-call.9} parent=1 // pred_check_branch
      %204 = sbr.rel (%p202) target = $region71
    $region70: #{custom-call.9} parent=1 // pred_region
      %s205 = sshra.s32 16, 3
      %p206 = scmp.gt.s32.totalorder %s205, 0
      // Predicated region
      $region72: #{custom-call.9} parent=70 // pred_check
        %p207 = pneg %p206
      $region73: #{custom-call.9} parent=70 // pred_check_branch
        %209 = sbr.rel (%p207) target = $region75
      $region74: #{custom-call.9} parent=70 // pred_region
        %s210 = ssub.s32 %s205, 1
        %s211 = smul.u32 %s210, 128
        %s212 = sshra.s32 %s211, 4
        %s213 = scalar_lea.vmem %s3, %s212
        %v214 = vld [vmem:[%s3] sm:$0xff]
        // While loop
        $region76: #{custom-call.9} parent=74 // loop_pre_header
          _
        $region77: #{custom-call.9} parent=74 // loop_header
          %s215 = sphi %s3, %s237
          %s216 = sphi [#allocation3], %s238
          %v217 = vphi %v214, %v239
          %s218 = ssub.s32 %s213, 64
          %p219 = scmp.gt.s32.totalorder %s215, %s218
        $region78: #{custom-call.9} parent=74 // loop_header_branch
          %221 = sbr.rel (%p219) target = $region82
        $region79: #{custom-call.9} parent=74 // loop_body
          %222 = vst [vmem:[%s216] sm:$0xff] %v217
          %v223 = vld [vmem:[%s215 + $0x8] sm:$0xff]
          %224 = vst [vmem:[%s216 + $0x8] sm:$0xff] %v223
          %v225 = vld [vmem:[%s215 + $0x10] sm:$0xff]
          %226 = vst [vmem:[%s216 + $0x10] sm:$0xff] %v225
          %v227 = vld [vmem:[%s215 + $0x18] sm:$0xff]
          %228 = vst [vmem:[%s216 + $0x18] sm:$0xff] %v227
          %v229 = vld [vmem:[%s215 + $0x20] sm:$0xff]
          %230 = vst [vmem:[%s216 + $0x20] sm:$0xff] %v229
          %v231 = vld [vmem:[%s215 + $0x28] sm:$0xff]
          %232 = vst [vmem:[%s216 + $0x28] sm:$0xff] %v231
          %v233 = vld [vmem:[%s215 + $0x30] sm:$0xff]
          %234 = vst [vmem:[%s216 + $0x30] sm:$0xff] %v233
          %v235 = vld [vmem:[%s215 + $0x38] sm:$0xff]
          %236 = vst [vmem:[%s216 + $0x38] sm:$0xff] %v235
        $region80: #{custom-call.9} parent=74 // loop_footer
          %s237 = scalar_lea.vmem %s215, 64
          %s238 = scalar_lea.vmem %s216, 64
          %v239 = vld [vmem:[%s215 + $0x40] sm:$0xff]
        $region81: #{custom-call.9} parent=74 // loop_footer_branch
          %240 = sbr.rel target = $region77
        $region82: #{custom-call.9} parent=74 // loop_exit
          _
        // While loop
        $region83: #{custom-call.9} parent=74 // loop_pre_header
          _
        $region84: #{custom-call.9} parent=74 // loop_header
          %s241 = sphi %s215, %s249
          %s242 = sphi %s216, %s250
          %v243 = vphi %v217, %v243
          %p244 = scmp.gt.s32.totalorder %s241, %s213
        $region85: #{custom-call.9} parent=74 // loop_header_branch
          %246 = sbr.rel (%p244) target = $region89
        $region86: #{custom-call.9} parent=74 // loop_body
          %v247 = vld [vmem:[%s241] sm:$0xff]
          %248 = vst [vmem:[%s242] sm:$0xff] %v247
        $region87: #{custom-call.9} parent=74 // loop_footer
          %s249 = scalar_lea.vmem %s241, 8
          %s250 = scalar_lea.vmem %s242, 8
        $region88: #{custom-call.9} parent=74 // loop_footer_branch
          %251 = sbr.rel target = $region84
        $region89: #{custom-call.9} parent=74 // loop_exit
          _
      $region75: #{custom-call.9} parent=70 // pred_fallthru
        _
      %s252 = sand.u32 16, 7
      %s253 = sshllo.u32 0, %s252
      %s254 = smul.u32 %s205, 128
      %s255 = sshra.s32 %s254, 4
      %s256 = scalar_lea.vmem [#allocation3], %s255
      %s257 = smul.u32 %s205, 128
      %s258 = sshra.s32 %s257, 4
      %s259 = scalar_lea.vmem %s3, %s258
      %v260 = vld [vmem:[%s259] sm:%s253]
      %261 = vst [vmem:[%s256] sm:%s253] %v260
    $region71: #{custom-call.9} parent=1 // pred_fallthru
      _
    %s262 = smov [#allocation15]
    %v263 = vld [vmem:[#allocation0] sm:$0xff]
    %264 = vst [vmem:[%s262] sm:$0xff] %v263
    %s265 = scalar_lea.vmem %s262, 8
    %s266 = scalar_lea.vmem [#allocation0], 8
    %v267 = vld [vmem:[%s266] sm:$0xff]
    %268 = vst [vmem:[%s265] sm:$0xff] %v267
    %s269 = smov [#allocation16]
    %v270 = vld [vmem:[#allocation1] sm:$0xff]
    %271 = vst [vmem:[%s269] sm:$0xff] %v270
    %s272 = scalar_lea.vmem %s269, 8
    %s273 = scalar_lea.vmem [#allocation1], 8
    %v274 = vld [vmem:[%s273] sm:$0xff]
    %275 = vst [vmem:[%s272] sm:$0xff] %v274
    %s276 = smov [#allocation17]
    %v277 = vld [vmem:[#allocation2] sm:$0xff]
    %278 = vst [vmem:[%s276] sm:$0xff] %v277
    %s279 = scalar_lea.vmem %s276, 8
    %s280 = scalar_lea.vmem [#allocation2], 8
    %v281 = vld [vmem:[%s280] sm:$0xff]
    %282 = vst [vmem:[%s279] sm:$0xff] %v281
    %s283 = smov [#allocation18]
    %v284 = vld [vmem:[#allocation3] sm:$0xff]
    %285 = vst [vmem:[%s283] sm:$0xff] %v284
    %s286 = scalar_lea.vmem %s283, 8
    %s287 = scalar_lea.vmem [#allocation3], 8
    %v288 = vld [vmem:[%s287] sm:$0xff]
    %289 = vst [vmem:[%s286] sm:$0xff] %v288
    %290 = vst [vmem:[#allocation8] sm:$0xff] 0.0
    %s291 = scalar_lea.vmem [#allocation8], 8
    %292 = vst [vmem:[%s291] sm:$0xff] 0.0
    %293 = vst [vmem:[#allocation10] sm:$0xff] 0.0
    %s294 = scalar_lea.vmem [#allocation10], 8
    %295 = vst [vmem:[%s294] sm:$0xff] 0.0
    %296 = vst [vmem:[#allocation12] sm:$0xff] 0.0
    %s297 = scalar_lea.vmem [#allocation12], 8
    %298 = vst [vmem:[%s297] sm:$0xff] 0.0
    %299 = vst [vmem:[#allocation13] sm:$0xff] 0.0
    %s300 = scalar_lea.vmem [#allocation13], 8
    %301 = vst [vmem:[%s300] sm:$0xff] 0.0
    %s302 = smov [#allocation8]
    %v303 = vlaneseq
    %v304 = vand.u32 %v303, 127
    %v305 = vmov %v304
    %v306 = vlaneseq
    %v307 = vshrl.u32 %v306, 7
    %v308 = vmov %v307
    %v309 = vld [vmem:[%s302] sm:$0xff]
    %vm312 = vcmp.eq.s32.totalorder %v308, %v305
    %v313 = vsel %vm312, 1.0, %v309
    %314 = vst [vmem:[%s302] sm:$0xff] %v313
    %s315 = scalar_lea.vmem %s302, 8
    %v316 = vld [vmem:[%s315] sm:$0xff]
    %v318 = vadd.s32 %v308, 8
    %vm319 = vcmp.eq.s32.totalorder %v318, %v305
    %v320 = vsel %vm319, 1.0, %v316
    %321 = vst [vmem:[%s315] sm:$0xff] %v320
    %s322 = smov [#allocation13]
    %v323 = vlaneseq
    %v324 = vand.u32 %v323, 127
    %v325 = vmov %v324
    %v326 = vlaneseq
    %v327 = vshrl.u32 %v326, 7
    %v328 = vmov %v327
    %v329 = vld [vmem:[%s322] sm:$0xff]
    %vm332 = vcmp.eq.s32.totalorder %v328, %v325
    %v333 = vsel %vm332, 1.0, %v329
    %334 = vst [vmem:[%s322] sm:$0xff] %v333
    %s335 = scalar_lea.vmem %s322, 8
    %v336 = vld [vmem:[%s335] sm:$0xff]
    %v338 = vadd.s32 %v328, 8
    %vm339 = vcmp.eq.s32.totalorder %v338, %v325
    %v340 = vsel %vm339, 1.0, %v336
    %341 = vst [vmem:[%s335] sm:$0xff] %v340
    // While loop
    $region90: #{custom-call.9} parent=1 // loop_pre_header
      _
    $region91: #{custom-call.9} parent=1 // loop_header
      %s343 = sphi 0, %s1241
      %v344 = vlaneseq
      %v345 = vand.u32 %v344, 127
      %v346 = vmov %v345
      %v347 = vlaneseq
      %v348 = vshrl.u32 %v347, 7
      %v349 = vmov %v348
      %s350 = smov [#allocation15]
      %v351 = vlaneseq
      %v352 = vand.u32 %v351, 127
      %vm353 = vcmp.ge.s32.totalorder %v352, 0
      %vm354 = vcmp.lt.s32.totalorder %v352, 16
      %vm355 = vmand %vm353, %vm354
      %v356 = vld [vmem:[%s350] sm:$0xff]
      %v357 = vsel %vm355, %v356, 0.0
      %v358 = vmul.f32 %v357, %v357
      %vm361 = vcmp.eq.s32.totalorder %v349, %v346
      %v362 = vsel %vm361, 0.0, %v358
      %s363 = scalar_lea.vmem %s350, 8
      %v364 = vld [vmem:[%s363] sm:$0xff]
      %v365 = vsel %vm355, %v364, 0.0
      %v366 = vmul.f32 %v365, %v365
      %v368 = vadd.s32 %v349, 8
      %vm369 = vcmp.eq.s32.totalorder %v368, %v346
      %v370 = vsel %vm369, 0.0, %v366
      %v371 = vadd.f32 %v362, %v370
      %v372 = vadd.f32 %v358, %v366
      %v373 = vlaneseq
      %v374 = vand.u32 %v373, 127
      %v375 = vmov %v374
      %v376 = vlaneseq
      %v377 = vshrl.u32 %v376, 7
      %v378 = vmov %v377
      %s379 = smov [#allocation16]
      %v380 = vlaneseq
      %v381 = vand.u32 %v380, 127
      %vm382 = vcmp.ge.s32.totalorder %v381, 0
      %vm383 = vcmp.lt.s32.totalorder %v381, 16
      %vm384 = vmand %vm382, %vm383
      %v385 = vld [vmem:[%s379] sm:$0xff]
      %v386 = vsel %vm384, %v385, 0.0
      %v387 = vmul.f32 %v386, %v386
      %v388 = vadd.f32 %v371, %v387
      %v389 = vadd.f32 %v372, %v387
      %s390 = scalar_lea.vmem %s379, 8
      %v391 = vld [vmem:[%s390] sm:$0xff]
      %v392 = vsel %vm384, %v391, 0.0
      %v393 = vmul.f32 %v392, %v392
      %v394 = vadd.f32 %v388, %v393
      %v395 = vadd.f32 %v389, %v393
      %v396 = vlaneseq
      %v397 = vand.u32 %v396, 127
      %v398 = vmov %v397
      %v399 = vlaneseq
      %v400 = vshrl.u32 %v399, 7
      %v401 = vmov %v400
      %s402 = smov [#allocation17]
      %v403 = vlaneseq
      %v404 = vand.u32 %v403, 127
      %vm405 = vcmp.ge.s32.totalorder %v404, 0
      %vm406 = vcmp.lt.s32.totalorder %v404, 16
      %vm407 = vmand %vm405, %vm406
      %v408 = vld [vmem:[%s402] sm:$0xff]
      %v409 = vsel %vm407, %v408, 0.0
      %v410 = vmul.f32 %v409, %v409
      %v411 = vadd.f32 %v394, %v410
      %v412 = vadd.f32 %v395, %v410
      %s413 = scalar_lea.vmem %s402, 8
      %v414 = vld [vmem:[%s413] sm:$0xff]
      %v415 = vsel %vm407, %v414, 0.0
      %v416 = vmul.f32 %v415, %v415
      %v417 = vadd.f32 %v411, %v416
      %v418 = vadd.f32 %v412, %v416
      %v419 = vlaneseq
      %v420 = vand.u32 %v419, 127
      %v421 = vmov %v420
      %v422 = vlaneseq
      %v423 = vshrl.u32 %v422, 7
      %v424 = vmov %v423
      %s425 = smov [#allocation18]
      %v426 = vlaneseq
      %v427 = vand.u32 %v426, 127
      %vm428 = vcmp.ge.s32.totalorder %v427, 0
      %vm429 = vcmp.lt.s32.totalorder %v427, 16
      %vm430 = vmand %vm428, %vm429
      %v431 = vld [vmem:[%s425] sm:$0xff]
      %v432 = vsel %vm430, %v431, 0.0
      %v433 = vmul.f32 %v432, %v432
      %vm436 = vcmp.eq.s32.totalorder %v424, %v421
      %v437 = vsel %vm436, 0.0, %v433
      %v438 = vadd.f32 %v417, %v437
      %v439 = vadd.f32 %v418, %v433
      %s440 = scalar_lea.vmem %s425, 8
      %v441 = vld [vmem:[%s440] sm:$0xff]
      %v442 = vsel %vm430, %v441, 0.0
      %v443 = vmul.f32 %v442, %v442
      %v445 = vadd.s32 %v424, 8
      %vm446 = vcmp.eq.s32.totalorder %v445, %v421
      %v447 = vsel %vm446, 0.0, %v443
      %v448 = vadd.f32 %v438, %v447
      %v449 = vadd.f32 %v439, %v443
      %450 = vadd.xlane.f32.xlu0 %v449
      %v451 = vpop.xlane.xlu0 %450
      %v452 = vrot.slane %v451, 4
      %v453 = vadd.f32 %v451, %v452
      %v454 = vrot.slane %v453, 2
      %v455 = vadd.f32 %v453, %v454
      %v456 = vrot.slane %v455, 1
      %v457 = vadd.f32 %v455, %v456
      %458 = vadd.xlane.f32.xlu0 %v448
      %v459 = vpop.xlane.xlu0 %458
      %v460 = vrot.slane %v459, 4
      %v461 = vadd.f32 %v459, %v460
      %v462 = vrot.slane %v461, 2
      %v463 = vadd.f32 %v461, %v462
      %v464 = vrot.slane %v463, 1
      %v465 = vadd.f32 %v463, %v464
      %s466 = vtos %v465
      %s467 = vtos %v457
      %s468 = smul.f32 1e-10, %s467
      %p469 = scmp.le.f32.partialorder %s466, %s468
      %p470 = scmp.ge.s32.totalorder %s343, 15
      %p471 = por %p469, %p470
    $region92: #{custom-call.9} parent=1 // loop_header_branch
      %1243 = sbr.rel (%p471) target = $region96
    $region93: #{custom-call.9} parent=1 // loop_body
      loop: start=0, step=1, limit=31
      $region97: #{custom-call.9} parent=93 // loop_pre_header
        _
      $region98: #{custom-call.9} parent=93 // loop_header
        %s473 = sphi 0, %s477
        %p474 = scmp.ge.s32.totalorder %s473, 31
      $region99: #{custom-call.9} parent=93 // loop_header_branch
        %476 = sbr.rel (%p474) target = $region103
      $region100: #{custom-call.9} parent=93 // loop_body
        #allocation19 [shape = 'f32[1024]{0}', space=vmem, size = 0x1000, scoped, tag = 'a_tl_diag vmem']
        #allocation20 [shape = 'f32[1024]{0}', space=vmem, size = 0x1000, scoped, tag = 'a_tr_diag vmem']
        #allocation21 [shape = 'f32[1024]{0}', space=vmem, size = 0x1000, scoped, tag = 'a_br_diag vmem']
        #allocation22 [shape = 'f32[1024]{0}', space=vmem, size = 0x1000, scoped, tag = 'rt1 vmem']
        #allocation23 [shape = 'f32[1024]{0}', space=vmem, size = 0x1000, scoped, tag = 'rt2 vmem']
        #allocation24 [shape = 'f32[1024]{0}', space=vmem, size = 0x1000, scoped, tag = 'c vmem']
        #allocation25 [shape = 'f32[1024]{0}', space=vmem, size = 0x1000, scoped, tag = 's vmem']
        #allocation26 [shape = 'f32[8192]{0}', space=vmem, size = 0x8000, scoped, tag = 'c broadcast']
        #allocation27 [shape = 'f32[8192]{0}', space=vmem, size = 0x8000, scoped, tag = 's broadcast']
        %s478 = smov [#allocation15]
        %s479 = smov [#allocation19]
        %v480 = vlaneseq
        %v481 = vand.u32 %v480, 127
        %v482 = vmov %v481
        %v483 = vlaneseq
        %v484 = vshrl.u32 %v483, 7
        %v485 = vmov %v484
        %v486 = vld [vmem:[%s478] sm:$0xff]
        %vm489 = vcmp.eq.s32.totalorder %v485, %v482
        %v490 = vsel %vm489, %v486, 0.0
        %s491 = scalar_lea.vmem %s478, 8
        %v492 = vld [vmem:[%s491] sm:$0xff]
        %v494 = vadd.s32 %v485, 8
        %vm495 = vcmp.eq.s32.totalorder %v494, %v482
        %v496 = vsel %vm495, %v492, %v490
        %v497 = vrot.slane %v496, 4
        %v498 = vadd.f32 %v496, %v497
        %v499 = vrot.slane %v498, 2
        %v500 = vadd.f32 %v498, %v499
        %v501 = vrot.slane %v500, 1
        %v502 = vadd.f32 %v500, %v501
        %503 = vst [vmem:[%s479] sm:$0x1] %v502
        %s504 = smov [#allocation16]
        %s505 = smov [#allocation20]
        %v506 = vlaneseq
        %v507 = vand.u32 %v506, 127
        %v508 = vmov %v507
        %v509 = vlaneseq
        %v510 = vshrl.u32 %v509, 7
        %v511 = vmov %v510
        %v512 = vld [vmem:[%s504] sm:$0xff]
        %vm515 = vcmp.eq.s32.totalorder %v511, %v508
        %v516 = vsel %vm515, %v512, 0.0
        %s517 = scalar_lea.vmem %s504, 8
        %v518 = vld [vmem:[%s517] sm:$0xff]
        %v520 = vadd.s32 %v511, 8
        %vm521 = vcmp.eq.s32.totalorder %v520, %v508
        %v522 = vsel %vm521, %v518, %v516
        %v523 = vrot.slane %v522, 4
        %v524 = vadd.f32 %v522, %v523
        %v525 = vrot.slane %v524, 2
        %v526 = vadd.f32 %v524, %v525
        %v527 = vrot.slane %v526, 1
        %v528 = vadd.f32 %v526, %v527
        %529 = vst [vmem:[%s505] sm:$0x1] %v528
        %s530 = smov [#allocation18]
        %s531 = smov [#allocation21]
        %v532 = vlaneseq
        %v533 = vand.u32 %v532, 127
        %v534 = vmov %v533
        %v535 = vlaneseq
        %v536 = vshrl.u32 %v535, 7
        %v537 = vmov %v536
        %v538 = vld [vmem:[%s530] sm:$0xff]
        %vm541 = vcmp.eq.s32.totalorder %v537, %v534
        %v542 = vsel %vm541, %v538, 0.0
        %s543 = scalar_lea.vmem %s530, 8
        %v544 = vld [vmem:[%s543] sm:$0xff]
        %v546 = vadd.s32 %v537, 8
        %vm547 = vcmp.eq.s32.totalorder %v546, %v534
        %v548 = vsel %vm547, %v544, %v542
        %v549 = vrot.slane %v548, 4
        %v550 = vadd.f32 %v548, %v549
        %v551 = vrot.slane %v550, 2
        %v552 = vadd.f32 %v550, %v551
        %v553 = vrot.slane %v552, 1
        %v554 = vadd.f32 %v552, %v553
        %555 = vst [vmem:[%s531] sm:$0x1] %v554
        %s556 = smov [#allocation24]
        %s557 = smov [#allocation25]
        %s558 = smov [#allocation19]
        %v559 = vld [vmem:[%s558] sm:$0xff]
        %s560 = smov [#allocation20]
        %v561 = vld [vmem:[%s560] sm:$0xff]
        %s562 = smov [#allocation21]
        %v563 = vld [vmem:[%s562] sm:$0xff]
        %v564 = vsub.f32 %v563, %v559
        %v565 = vmul.f32 2.0, %v561
        %v566 = vrcp.pop %v565
        %v567 = vmul.f32 %v564, %v566
        %vm568 = vcmp.ge.f32.partialorder %v567, 0.0
        %v569 = vmul.f32 %v567, %v567
        %v570 = vadd.f32 1.0, %v569
        %v571 = vrsqrt.pop %v570
        %v572 = vmul.f32 %v570, %v571
        %vm573 = vcmp.eq.f32.partialorder %v570, inf
        %v574 = vsel %vm573, %v570, %v572
        %vm575 = vcmp.eq.f32.partialorder %v570, 0.0
        %v576 = vand.u32 %v570, 2147483648
        %v577 = vsel %vm575, %v576, %v574
        %v578 = vxor.u32 %v577, 2147483648
        %v579 = vsel %vm568, %v577, %v578
        %v580 = vadd.f32 %v567, %v579
        %v581 = vrcp.pop %v580
        %v582 = vand.u32 2147483647, %v559
        %v583 = vand.u32 2147483647, %v561
        %v584 = vand.u32 2147483647, %v563
        %v585 = vmin.f32 %v582, %v584
        %v586 = vmul.f32 1.1920929e-08, %v585
        %vm587 = vcmp.le.f32.partialorder %v583, %v586
        %v588 = vsel %vm587, 0.0, %v581
        %v589 = vmul.f32 %v588, %v588
        %v590 = vadd.f32 1.0, %v589
        %v591 = vrsqrt.pop %v590
        %v592 = vmul.f32 %v588, %v591
        %v593 = vmul.f32 %v588, %v561
        %v594 = vsub.f32 %v559, %v593
        %v595 = vmul.f32 %v588, %v561
        %v596 = vadd.f32 %v563, %v595
        %s597 = smov [#allocation22]
        %598 = vst [vmem:[%s597] sm:$0xff] %v594
        %s599 = smov [#allocation23]
        %600 = vst [vmem:[%s599] sm:$0xff] %v596
        %s601 = smov %s556
        %602 = vst [vmem:[%s601] sm:$0xff] %v591
        %s603 = smov %s557
        %604 = vst [vmem:[%s603] sm:$0xff] %v592
        %s605 = smov [#allocation24]
        %v606 = vld [vmem:[%s605] ss:$0 sm:$0xff]
        %v607 = vlaneseq
        %v608 = vand.u32 %v607, 127
        %v609 = vmov %v608
        %v610 = vlaneseq
        %v611 = vshrl.u32 %v610, 7
        %v612 = vmov %v611
        %vm614 = vcmp.eq.s32.totalorder %v612, %v609
        %v615 = vsel %vm614, %v606, 0.0
        %616 = vadd.xlane.f32.xlu0 %v615
        %v617 = vpop.xlane.xlu0 %616
        %s618 = smov [#allocation26]
        %619 = vst [vmem:[%s618] sm:$0xff] %v617
        %s620 = smov [#allocation24]
        %v621 = vld [vmem:[%s620] ss:$0 sm:$0xff]
        %v622 = vlaneseq
        %v623 = vand.u32 %v622, 127
        %v624 = vmov %v623
        %v625 = vlaneseq
        %v626 = vshrl.u32 %v625, 7
        %v627 = vmov %v626
        %v628 = vadd.s32 %v627, 8
        %vm629 = vcmp.eq.s32.totalorder %v628, %v624
        %v630 = vsel %vm629, %v621, 0.0
        %631 = vadd.xlane.f32.xlu0 %v630
        %v632 = vpop.xlane.xlu0 %631
        %s633 = smov [#allocation26]
        %s634 = scalar_lea.vmem %s633, 8
        %635 = vst [vmem:[%s634] sm:$0xff] %v632
        %s636 = smov [#allocation25]
        %v637 = vld [vmem:[%s636] ss:$0 sm:$0xff]
        %v638 = vlaneseq
        %v639 = vand.u32 %v638, 127
        %v640 = vmov %v639
        %v641 = vlaneseq
        %v642 = vshrl.u32 %v641, 7
        %v643 = vmov %v642
        %vm645 = vcmp.eq.s32.totalorder %v643, %v640
        %v646 = vsel %vm645, %v637, 0.0
        %647 = vadd.xlane.f32.xlu0 %v646
        %v648 = vpop.xlane.xlu0 %647
        %s649 = smov [#allocation27]
        %650 = vst [vmem:[%s649] sm:$0xff] %v648
        %s651 = smov [#allocation25]
        %v652 = vld [vmem:[%s651] ss:$0 sm:$0xff]
        %v653 = vlaneseq
        %v654 = vand.u32 %v653, 127
        %v655 = vmov %v654
        %v656 = vlaneseq
        %v657 = vshrl.u32 %v656, 7
        %v658 = vmov %v657
        %v659 = vadd.s32 %v658, 8
        %vm660 = vcmp.eq.s32.totalorder %v659, %v655
        %v661 = vsel %vm660, %v652, 0.0
        %662 = vadd.xlane.f32.xlu0 %v661
        %v663 = vpop.xlane.xlu0 %662
        %s664 = smov [#allocation27]
        %s665 = scalar_lea.vmem %s664, 8
        %666 = vst [vmem:[%s665] sm:$0xff] %v663
        %s667 = smov [#allocation26]
        %v668 = vld [vmem:[%s667] sm:$0xff]
        %s669 = smov [#allocation27]
        %v670 = vld [vmem:[%s669] sm:$0xff]
        %s671 = smov [#allocation15]
        %s672 = smov [#allocation16]
        %s673 = smov [#allocation17]
        %s674 = smov [#allocation18]
        %v675 = vld [vmem:[%s671] sm:$0xff]
        %v676 = vld [vmem:[%s672] sm:$0xff]
        %v677 = vld [vmem:[%s673] sm:$0xff]
        %v678 = vld [vmem:[%s674] sm:$0xff]
        %v679 = vmul.f32 %v668, %v675
        %v680 = vmul.f32 %v670, %v677
        %v681 = vsub.f32 %v679, %v680
        %v682 = vmul.f32 %v668, %v676
        %v683 = vmul.f32 %v670, %v678
        %v684 = vsub.f32 %v682, %v683
        %v685 = vmul.f32 %v670, %v675
        %v686 = vmul.f32 %v668, %v677
        %v687 = vadd.f32 %v685, %v686
        %v688 = vmul.f32 %v670, %v676
        %v689 = vmul.f32 %v668, %v678
        %v690 = vadd.f32 %v688, %v689
        %691 = vst [vmem:[%s671] sm:$0xff] %v681
        %692 = vst [vmem:[%s672] sm:$0xff] %v684
        %693 = vst [vmem:[%s673] sm:$0xff] %v687
        %694 = vst [vmem:[%s674] sm:$0xff] %v690
        %s695 = smov [#allocation26]
        %s696 = scalar_lea.vmem %s695, 8
        %v697 = vld [vmem:[%s696] sm:$0xff]
        %s698 = smov [#allocation27]
        %s699 = scalar_lea.vmem %s698, 8
        %v700 = vld [vmem:[%s699] sm:$0xff]
        %s701 = smov [#allocation15]
        %s702 = scalar_lea.vmem %s701, 8
        %s703 = smov [#allocation16]
        %s704 = scalar_lea.vmem %s703, 8
        %s705 = smov [#allocation17]
        %s706 = scalar_lea.vmem %s705, 8
        %s707 = smov [#allocation18]
        %s708 = scalar_lea.vmem %s707, 8
        %v709 = vld [vmem:[%s702] sm:$0xff]
        %v710 = vld [vmem:[%s704] sm:$0xff]
        %v711 = vld [vmem:[%s706] sm:$0xff]
        %v712 = vld [vmem:[%s708] sm:$0xff]
        %v713 = vmul.f32 %v697, %v709
        %v714 = vmul.f32 %v700, %v711
        %v715 = vsub.f32 %v713, %v714
        %v716 = vmul.f32 %v697, %v710
        %v717 = vmul.f32 %v700, %v712
        %v718 = vsub.f32 %v716, %v717
        %v719 = vmul.f32 %v700, %v709
        %v720 = vmul.f32 %v697, %v711
        %v721 = vadd.f32 %v719, %v720
        %v722 = vmul.f32 %v700, %v710
        %v723 = vmul.f32 %v697, %v712
        %v724 = vadd.f32 %v722, %v723
        %725 = vst [vmem:[%s702] sm:$0xff] %v715
        %726 = vst [vmem:[%s704] sm:$0xff] %v718
        %727 = vst [vmem:[%s706] sm:$0xff] %v721
        %728 = vst [vmem:[%s708] sm:$0xff] %v724
        %s729 = smov [#allocation24]
        %v730 = vld [vmem:[%s729] ss:$0 sm:$0xff]
        %s731 = smov [#allocation25]
        %v732 = vld [vmem:[%s731] ss:$0 sm:$0xff]
        %s733 = smov [#allocation15]
        %s734 = smov [#allocation16]
        %s735 = smov [#allocation17]
        %s736 = smov [#allocation18]
        %v737 = vld [vmem:[%s733] sm:$0xff]
        %v738 = vld [vmem:[%s734] sm:$0xff]
        %v739 = vld [vmem:[%s735] sm:$0xff]
        %v740 = vld [vmem:[%s736] sm:$0xff]
        %v741 = vmul.f32 %v730, %v737
        %v742 = vmul.f32 %v732, %v738
        %v743 = vsub.f32 %v741, %v742
        %v744 = vmul.f32 %v732, %v737
        %v745 = vmul.f32 %v730, %v738
        %v746 = vadd.f32 %v744, %v745
        %v747 = vmul.f32 %v730, %v739
        %v748 = vmul.f32 %v732, %v740
        %v749 = vsub.f32 %v747, %v748
        %v750 = vmul.f32 %v732, %v739
        %v751 = vmul.f32 %v730, %v740
        %v752 = vadd.f32 %v750, %v751
        %753 = vst [vmem:[%s733] sm:$0xff] %v743
        %754 = vst [vmem:[%s734] sm:$0xff] %v746
        %755 = vst [vmem:[%s735] sm:$0xff] %v749
        %756 = vst [vmem:[%s736] sm:$0xff] %v752
        %s757 = smov [#allocation15]
        %s758 = scalar_lea.vmem %s757, 8
        %s759 = smov [#allocation16]
        %s760 = scalar_lea.vmem %s759, 8
        %s761 = smov [#allocation17]
        %s762 = scalar_lea.vmem %s761, 8
        %s763 = smov [#allocation18]
        %s764 = scalar_lea.vmem %s763, 8
        %v765 = vld [vmem:[%s758] sm:$0xff]
        %v766 = vld [vmem:[%s760] sm:$0xff]
        %v767 = vld [vmem:[%s762] sm:$0xff]
        %v768 = vld [vmem:[%s764] sm:$0xff]
        %v769 = vmul.f32 %v730, %v765
        %v770 = vmul.f32 %v732, %v766
        %v771 = vsub.f32 %v769, %v770
        %v772 = vmul.f32 %v732, %v765
        %v773 = vmul.f32 %v730, %v766
        %v774 = vadd.f32 %v772, %v773
        %v775 = vmul.f32 %v730, %v767
        %v776 = vmul.f32 %v732, %v768
        %v777 = vsub.f32 %v775, %v776
        %v778 = vmul.f32 %v732, %v767
        %v779 = vmul.f32 %v730, %v768
        %v780 = vadd.f32 %v778, %v779
        %781 = vst [vmem:[%s758] sm:$0xff] %v771
        %782 = vst [vmem:[%s760] sm:$0xff] %v774
        %783 = vst [vmem:[%s762] sm:$0xff] %v777
        %784 = vst [vmem:[%s764] sm:$0xff] %v780
        %s785 = smov [#allocation15]
        %s786 = smov [#allocation22]
        %v787 = vlaneseq
        %v788 = vand.u32 %v787, 127
        %v789 = vmov %v788
        %v790 = vlaneseq
        %v791 = vshrl.u32 %v790, 7
        %v792 = vmov %v791
        %v793 = vld [vmem:[%s786] ss:$0 sm:$0xff]
        %v794 = vld [vmem:[%s785] sm:$0xff]
        %vm797 = vcmp.eq.s32.totalorder %v792, %v789
        %v798 = vsel %vm797, %v793, %v794
        %799 = vst [vmem:[%s785] sm:$0xff] %v798
        %v800 = vld [vmem:[%s786] ss:$0 sm:$0xff]
        %s801 = scalar_lea.vmem %s785, 8
        %v802 = vld [vmem:[%s801] sm:$0xff]
        %v804 = vadd.s32 %v792, 8
        %vm805 = vcmp.eq.s32.totalorder %v804, %v789
        %v806 = vsel %vm805, %v800, %v802
        %807 = vst [vmem:[%s801] sm:$0xff] %v806
        %s808 = smov [#allocation16]
        %v809 = vlaneseq
        %v810 = vand.u32 %v809, 127
        %v811 = vmov %v810
        %v812 = vlaneseq
        %v813 = vshrl.u32 %v812, 7
        %v814 = vmov %v813
        %v815 = vld [vmem:[%s808] sm:$0xff]
        %vm818 = vcmp.eq.s32.totalorder %v814, %v811
        %v819 = vsel %vm818, 0.0, %v815
        %820 = vst [vmem:[%s808] sm:$0xff] %v819
        %s821 = scalar_lea.vmem %s808, 8
        %v822 = vld [vmem:[%s821] sm:$0xff]
        %v824 = vadd.s32 %v814, 8
        %vm825 = vcmp.eq.s32.totalorder %v824, %v811
        %v826 = vsel %vm825, 0.0, %v822
        %827 = vst [vmem:[%s821] sm:$0xff] %v826
        %s828 = smov [#allocation17]
        %v829 = vlaneseq
        %v830 = vand.u32 %v829, 127
        %v831 = vmov %v830
        %v832 = vlaneseq
        %v833 = vshrl.u32 %v832, 7
        %v834 = vmov %v833
        %v835 = vld [vmem:[%s828] sm:$0xff]
        %vm838 = vcmp.eq.s32.totalorder %v834, %v831
        %v839 = vsel %vm838, 0.0, %v835
        %840 = vst [vmem:[%s828] sm:$0xff] %v839
        %s841 = scalar_lea.vmem %s828, 8
        %v842 = vld [vmem:[%s841] sm:$0xff]
        %v844 = vadd.s32 %v834, 8
        %vm845 = vcmp.eq.s32.totalorder %v844, %v831
        %v846 = vsel %vm845, 0.0, %v842
        %847 = vst [vmem:[%s841] sm:$0xff] %v846
        %s848 = smov [#allocation18]
        %s849 = smov [#allocation23]
        %v850 = vlaneseq
        %v851 = vand.u32 %v850, 127
        %v852 = vmov %v851
        %v853 = vlaneseq
        %v854 = vshrl.u32 %v853, 7
        %v855 = vmov %v854
        %v856 = vld [vmem:[%s849] ss:$0 sm:$0xff]
        %v857 = vld [vmem:[%s848] sm:$0xff]
        %vm860 = vcmp.eq.s32.totalorder %v855, %v852
        %v861 = vsel %vm860, %v856, %v857
        %862 = vst [vmem:[%s848] sm:$0xff] %v861
        %v863 = vld [vmem:[%s849] ss:$0 sm:$0xff]
        %s864 = scalar_lea.vmem %s848, 8
        %v865 = vld [vmem:[%s864] sm:$0xff]
        %v867 = vadd.s32 %v855, 8
        %vm868 = vcmp.eq.s32.totalorder %v867, %v852
        %v869 = vsel %vm868, %v863, %v865
        %870 = vst [vmem:[%s864] sm:$0xff] %v869
        %s871 = smov [#allocation15]
        %s872 = smov [#allocation16]
        %v873 = vld [vmem:[%s872] sm:$0xff]
        %874 = vrot.lane.b32.xlu0 %v873, 1
        %v875 = vpop.permute.xlu0 %874
        %v876 = vld [vmem:[%s871] sm:$0xff]
        %v877 = vld [vmem:[%s871] sm:$0xff]
        %878 = vrot.lane.b32.xlu0 %v877, 1
        %v879 = vpop.permute.xlu0 %878
        %v880 = vlaneseq
        %v881 = vand.u32 %v880, 127
        %vm882 = vcmp.eq.s32.totalorder %v881, 0
        %v883 = vsel %vm882, %v877, %v879
        %v884 = vlaneseq
        %v885 = vand.u32 %v884, 127
        %vm886 = vcmp.eq.s32.totalorder %v885, 1
        %v887 = vsel %vm886, %v875, %v883
        %v888 = vlaneseq
        %v889 = vand.u32 %v888, 127
        %vm890 = vcmp.ge.s32.totalorder %v889, 0
        %vm891 = vcmp.lt.s32.totalorder %v889, 16
        %vm892 = vmand %vm890, %vm891
        %v893 = vsel %vm892, %v887, 0.0
        %v894 = vld [vmem:[%s872] sm:$0xff]
        %895 = vrot.lane.b32.xlu0 %v894, 127
        %v896 = vpop.permute.xlu0 %895
        %v897 = vlaneseq
        %v898 = vand.u32 %v897, 127
        %vm899 = vcmp.eq.s32.totalorder %v898, 15
        %v900 = vsel %vm899, %v876, %v896
        %s901 = smov [#allocation15]
        %s902 = scalar_lea.vmem %s901, 8
        %s903 = smov [#allocation16]
        %s904 = scalar_lea.vmem %s903, 8
        %v905 = vld [vmem:[%s904] sm:$0xff]
        %906 = vrot.lane.b32.xlu0 %v905, 1
        %v907 = vpop.permute.xlu0 %906
        %v908 = vld [vmem:[%s902] sm:$0xff]
        %v909 = vld [vmem:[%s902] sm:$0xff]
        %910 = vrot.lane.b32.xlu0 %v909, 1
        %v911 = vpop.permute.xlu0 %910
        %v912 = vlaneseq
        %v913 = vand.u32 %v912, 127
        %vm914 = vcmp.eq.s32.totalorder %v913, 0
        %v915 = vsel %vm914, %v909, %v911
        %v916 = vlaneseq
        %v917 = vand.u32 %v916, 127
        %vm918 = vcmp.eq.s32.totalorder %v917, 1
        %v919 = vsel %vm918, %v907, %v915
        %v920 = vlaneseq
        %v921 = vand.u32 %v920, 127
        %vm922 = vcmp.ge.s32.totalorder %v921, 0
        %vm923 = vcmp.lt.s32.totalorder %v921, 16
        %vm924 = vmand %vm922, %vm923
        %v925 = vsel %vm924, %v919, 0.0
        %v926 = vld [vmem:[%s904] sm:$0xff]
        %927 = vrot.lane.b32.xlu0 %v926, 127
        %v928 = vpop.permute.xlu0 %927
        %v929 = vlaneseq
        %v930 = vand.u32 %v929, 127
        %vm931 = vcmp.eq.s32.totalorder %v930, 15
        %v932 = vsel %vm931, %v908, %v928
        %933 = vst [vmem:[%s871] sm:$0xff] %v893
        %934 = vst [vmem:[%s872] sm:$0xff] %v900
        %935 = vst [vmem:[%s902] sm:$0xff] %v925
        %936 = vst [vmem:[%s904] sm:$0xff] %v932
        %s937 = smov [#allocation17]
        %s938 = smov [#allocation18]
        %v939 = vld [vmem:[%s938] sm:$0xff]
        %940 = vrot.lane.b32.xlu0 %v939, 1
        %v941 = vpop.permute.xlu0 %940
        %v942 = vld [vmem:[%s937] sm:$0xff]
        %v943 = vld [vmem:[%s937] sm:$0xff]
        %944 = vrot.lane.b32.xlu0 %v943, 1
        %v945 = vpop.permute.xlu0 %944
        %v946 = vlaneseq
        %v947 = vand.u32 %v946, 127
        %vm948 = vcmp.eq.s32.totalorder %v947, 0
        %v949 = vsel %vm948, %v943, %v945
        %v950 = vlaneseq
        %v951 = vand.u32 %v950, 127
        %vm952 = vcmp.eq.s32.totalorder %v951, 1
        %v953 = vsel %vm952, %v941, %v949
        %v954 = vlaneseq
        %v955 = vand.u32 %v954, 127
        %vm956 = vcmp.ge.s32.totalorder %v955, 0
        %vm957 = vcmp.lt.s32.totalorder %v955, 16
        %vm958 = vmand %vm956, %vm957
        %v959 = vsel %vm958, %v953, 0.0
        %v960 = vld [vmem:[%s938] sm:$0xff]
        %961 = vrot.lane.b32.xlu0 %v960, 127
        %v962 = vpop.permute.xlu0 %961
        %v963 = vlaneseq
        %v964 = vand.u32 %v963, 127
        %vm965 = vcmp.eq.s32.totalorder %v964, 15
        %v966 = vsel %vm965, %v942, %v962
        %s967 = smov [#allocation17]
        %s968 = scalar_lea.vmem %s967, 8
        %s969 = smov [#allocation18]
        %s970 = scalar_lea.vmem %s969, 8
        %v971 = vld [vmem:[%s970] sm:$0xff]
        %972 = vrot.lane.b32.xlu0 %v971, 1
        %v973 = vpop.permute.xlu0 %972
        %v974 = vld [vmem:[%s968] sm:$0xff]
        %v975 = vld [vmem:[%s968] sm:$0xff]
        %976 = vrot.lane.b32.xlu0 %v975, 1
        %v977 = vpop.permute.xlu0 %976
        %v978 = vlaneseq
        %v979 = vand.u32 %v978, 127
        %vm980 = vcmp.eq.s32.totalorder %v979, 0
        %v981 = vsel %vm980, %v975, %v977
        %v982 = vlaneseq
        %v983 = vand.u32 %v982, 127
        %vm984 = vcmp.eq.s32.totalorder %v983, 1
        %v985 = vsel %vm984, %v973, %v981
        %v986 = vlaneseq
        %v987 = vand.u32 %v986, 127
        %vm988 = vcmp.ge.s32.totalorder %v987, 0
        %vm989 = vcmp.lt.s32.totalorder %v987, 16
        %vm990 = vmand %vm988, %vm989
        %v991 = vsel %vm990, %v985, 0.0
        %v992 = vld [vmem:[%s970] sm:$0xff]
        %993 = vrot.lane.b32.xlu0 %v992, 127
        %v994 = vpop.permute.xlu0 %993
        %v995 = vlaneseq
        %v996 = vand.u32 %v995, 127
        %vm997 = vcmp.eq.s32.totalorder %v996, 15
        %v998 = vsel %vm997, %v974, %v994
        %999 = vst [vmem:[%s937] sm:$0xff] %v959
        %1000 = vst [vmem:[%s938] sm:$0xff] %v966
        %1001 = vst [vmem:[%s968] sm:$0xff] %v991
        %1002 = vst [vmem:[%s970] sm:$0xff] %v998
        %s1003 = smov [#allocation15]
        %s1004 = smov [#allocation17]
        %v1005 = vld [vmem:[%s1003] ss:$0 sm:$0xff]
        %s1007 = scalar_lea.vmem %s1003, 4294967295
        %v1008 = vld [vmem:[%s1007] sm:$0xfe]
        %v1009 = vlaneseq
        %v1010 = vshrl.u32 %v1009, 7
        %vm1011 = vcmp.eq.s32.totalorder %v1010, 0
        %v1012 = vsel %vm1011, %v1005, %v1008
        %s1013 = scalar_lea.vmem %s1003, 7
        %v1014 = vld [vmem:[%s1013] ss:$0 sm:$0xff]
        %1015 = vst [vmem:[%s1003] sm:$0xff] %v1012
        %s1016 = scalar_lea.vmem %s1003, 8
        %s1018 = scalar_lea.vmem %s1016, 4294967295
        %v1019 = vld [vmem:[%s1018] sm:$0xfe]
        %v1020 = vlaneseq
        %v1021 = vshrl.u32 %v1020, 7
        %vm1022 = vcmp.eq.s32.totalorder %v1021, 0
        %v1023 = vsel %vm1022, %v1014, %v1019
        %s1024 = scalar_lea.vmem %s1016, 7
        %v1025 = vld [vmem:[%s1024] ss:$0 sm:$0xff]
        %1026 = vst [vmem:[%s1016] sm:$0xff] %v1023
        %v1027 = vld [vmem:[%s1004] ss:$0 sm:$0xff]
        %s1028 = scalar_lea.vmem %s1003, 1
        %1029 = vst [vmem:[%s1028] sm:$0x1] %v1027
        %s1030 = scalar_lea.vmem %s1004, 8
        %s1031 = scalar_lea.vmem %s1030, 1
        %v1032 = vld [vmem:[%s1031] sm:$0x7f]
        %v1033 = vlaneseq
        %v1034 = vshrl.u32 %v1033, 7
        %vm1035 = vcmp.eq.s32.totalorder %v1034, 7
        %v1036 = vsel %vm1035, %v1025, %v1032
        %v1037 = vld [vmem:[%s1030] ss:$0 sm:$0xff]
        %1038 = vst [vmem:[%s1030] sm:$0xff] %v1036
        %s1039 = scalar_lea.vmem %s1004, 1
        %v1040 = vld [vmem:[%s1039] sm:$0x7f]
        %v1041 = vlaneseq
        %v1042 = vshrl.u32 %v1041, 7
        %vm1043 = vcmp.eq.s32.totalorder %v1042, 7
        %v1044 = vsel %vm1043, %v1037, %v1040
        %v1045 = vld [vmem:[%s1004] ss:$0 sm:$0xff]
        %1046 = vst [vmem:[%s1004] sm:$0xff] %v1044
        %s1047 = smov [#allocation16]
        %s1048 = smov [#allocation18]
        %v1049 = vld [vmem:[%s1047] ss:$0 sm:$0xff]
        %s1051 = scalar_lea.vmem %s1047, 4294967295
        %v1052 = vld [vmem:[%s1051] sm:$0xfe]
        %v1053 = vlaneseq
        %v1054 = vshrl.u32 %v1053, 7
        %vm1055 = vcmp.eq.s32.totalorder %v1054, 0
        %v1056 = vsel %vm1055, %v1049, %v1052
        %s1057 = scalar_lea.vmem %s1047, 7
        %v1058 = vld [vmem:[%s1057] ss:$0 sm:$0xff]
        %1059 = vst [vmem:[%s1047] sm:$0xff] %v1056
        %s1060 = scalar_lea.vmem %s1047, 8
        %s1062 = scalar_lea.vmem %s1060, 4294967295
        %v1063 = vld [vmem:[%s1062] sm:$0xfe]
        %v1064 = vlaneseq
        %v1065 = vshrl.u32 %v1064, 7
        %vm1066 = vcmp.eq.s32.totalorder %v1065, 0
        %v1067 = vsel %vm1066, %v1058, %v1063
        %s1068 = scalar_lea.vmem %s1060, 7
        %v1069 = vld [vmem:[%s1068] ss:$0 sm:$0xff]
        %1070 = vst [vmem:[%s1060] sm:$0xff] %v1067
        %v1071 = vld [vmem:[%s1048] ss:$0 sm:$0xff]
        %s1072 = scalar_lea.vmem %s1047, 1
        %1073 = vst [vmem:[%s1072] sm:$0x1] %v1071
        %s1074 = scalar_lea.vmem %s1048, 8
        %s1075 = scalar_lea.vmem %s1074, 1
        %v1076 = vld [vmem:[%s1075] sm:$0x7f]
        %v1077 = vlaneseq
        %v1078 = vshrl.u32 %v1077, 7
        %vm1079 = vcmp.eq.s32.totalorder %v1078, 7
        %v1080 = vsel %vm1079, %v1069, %v1076
        %v1081 = vld [vmem:[%s1074] ss:$0 sm:$0xff]
        %1082 = vst [vmem:[%s1074] sm:$0xff] %v1080
        %s1083 = scalar_lea.vmem %s1048, 1
        %v1084 = vld [vmem:[%s1083] sm:$0x7f]
        %v1085 = vlaneseq
        %v1086 = vshrl.u32 %v1085, 7
        %vm1087 = vcmp.eq.s32.totalorder %v1086, 7
        %v1088 = vsel %vm1087, %v1081, %v1084
        %v1089 = vld [vmem:[%s1048] ss:$0 sm:$0xff]
        %1090 = vst [vmem:[%s1048] sm:$0xff] %v1088
        %s1091 = smov [#allocation26]
        %v1092 = vld [vmem:[%s1091] sm:$0xff]
        %s1093 = smov [#allocation27]
        %v1094 = vld [vmem:[%s1093] sm:$0xff]
        %s1095 = smov [#allocation8]
        %s1096 = smov [#allocation10]
        %s1097 = smov [#allocation12]
        %s1098 = smov [#allocation13]
        %v1099 = vld [vmem:[%s1095] sm:$0xff]
        %v1100 = vld [vmem:[%s1096] sm:$0xff]
        %v1101 = vld [vmem:[%s1097] sm:$0xff]
        %v1102 = vld [vmem:[%s1098] sm:$0xff]
        %v1103 = vmul.f32 %v1092, %v1099
        %v1104 = vmul.f32 %v1094, %v1101
        %v1105 = vsub.f32 %v1103, %v1104
        %v1106 = vmul.f32 %v1092, %v1100
        %v1107 = vmul.f32 %v1094, %v1102
        %v1108 = vsub.f32 %v1106, %v1107
        %v1109 = vmul.f32 %v1094, %v1099
        %v1110 = vmul.f32 %v1092, %v1101
        %v1111 = vadd.f32 %v1109, %v1110
        %v1112 = vmul.f32 %v1094, %v1100
        %v1113 = vmul.f32 %v1092, %v1102
        %v1114 = vadd.f32 %v1112, %v1113
        %1115 = vst [vmem:[%s1095] sm:$0xff] %v1105
        %1116 = vst [vmem:[%s1096] sm:$0xff] %v1108
        %1117 = vst [vmem:[%s1097] sm:$0xff] %v1111
        %1118 = vst [vmem:[%s1098] sm:$0xff] %v1114
        %s1119 = smov [#allocation26]
        %s1120 = scalar_lea.vmem %s1119, 8
        %v1121 = vld [vmem:[%s1120] sm:$0xff]
        %s1122 = smov [#allocation27]
        %s1123 = scalar_lea.vmem %s1122, 8
        %v1124 = vld [vmem:[%s1123] sm:$0xff]
        %s1125 = smov [#allocation8]
        %s1126 = scalar_lea.vmem %s1125, 8
        %s1127 = smov [#allocation10]
        %s1128 = scalar_lea.vmem %s1127, 8
        %s1129 = smov [#allocation12]
        %s1130 = scalar_lea.vmem %s1129, 8
        %s1131 = smov [#allocation13]
        %s1132 = scalar_lea.vmem %s1131, 8
        %v1133 = vld [vmem:[%s1126] sm:$0xff]
        %v1134 = vld [vmem:[%s1128] sm:$0xff]
        %v1135 = vld [vmem:[%s1130] sm:$0xff]
        %v1136 = vld [vmem:[%s1132] sm:$0xff]
        %v1137 = vmul.f32 %v1121, %v1133
        %v1138 = vmul.f32 %v1124, %v1135
        %v1139 = vsub.f32 %v1137, %v1138
        %v1140 = vmul.f32 %v1121, %v1134
        %v1141 = vmul.f32 %v1124, %v1136
        %v1142 = vsub.f32 %v1140, %v1141
        %v1143 = vmul.f32 %v1124, %v1133
        %v1144 = vmul.f32 %v1121, %v1135
        %v1145 = vadd.f32 %v1143, %v1144
        %v1146 = vmul.f32 %v1124, %v1134
        %v1147 = vmul.f32 %v1121, %v1136
        %v1148 = vadd.f32 %v1146, %v1147
        %1149 = vst [vmem:[%s1126] sm:$0xff] %v1139
        %1150 = vst [vmem:[%s1128] sm:$0xff] %v1142
        %1151 = vst [vmem:[%s1130] sm:$0xff] %v1145
        %1152 = vst [vmem:[%s1132] sm:$0xff] %v1148
        %s1153 = smov [#allocation8]
        %s1154 = smov [#allocation12]
        %v1155 = vld [vmem:[%s1153] ss:$0 sm:$0xff]
        %s1157 = scalar_lea.vmem %s1153, 4294967295
        %v1158 = vld [vmem:[%s1157] sm:$0xfe]
        %v1159 = vlaneseq
        %v1160 = vshrl.u32 %v1159, 7
        %vm1161 = vcmp.eq.s32.totalorder %v1160, 0
        %v1162 = vsel %vm1161, %v1155, %v1158
        %s1163 = scalar_lea.vmem %s1153, 7
        %v1164 = vld [vmem:[%s1163] ss:$0 sm:$0xff]
        %1165 = vst [vmem:[%s1153] sm:$0xff] %v1162
        %s1166 = scalar_lea.vmem %s1153, 8
        %s1168 = scalar_lea.vmem %s1166, 4294967295
        %v1169 = vld [vmem:[%s1168] sm:$0xfe]
        %v1170 = vlaneseq
        %v1171 = vshrl.u32 %v1170, 7
        %vm1172 = vcmp.eq.s32.totalorder %v1171, 0
        %v1173 = vsel %vm1172, %v1164, %v1169
        %s1174 = scalar_lea.vmem %s1166, 7
        %v1175 = vld [vmem:[%s1174] ss:$0 sm:$0xff]
        %1176 = vst [vmem:[%s1166] sm:$0xff] %v1173
        %v1177 = vld [vmem:[%s1154] ss:$0 sm:$0xff]
        %s1178 = scalar_lea.vmem %s1153, 1
        %1179 = vst [vmem:[%s1178] sm:$0x1] %v1177
        %s1180 = scalar_lea.vmem %s1154, 8
        %s1181 = scalar_lea.vmem %s1180, 1
        %v1182 = vld [vmem:[%s1181] sm:$0x7f]
        %v1183 = vlaneseq
        %v1184 = vshrl.u32 %v1183, 7
        %vm1185 = vcmp.eq.s32.totalorder %v1184, 7
        %v1186 = vsel %vm1185, %v1175, %v1182
        %v1187 = vld [vmem:[%s1180] ss:$0 sm:$0xff]
        %1188 = vst [vmem:[%s1180] sm:$0xff] %v1186
        %s1189 = scalar_lea.vmem %s1154, 1
        %v1190 = vld [vmem:[%s1189] sm:$0x7f]
        %v1191 = vlaneseq
        %v1192 = vshrl.u32 %v1191, 7
        %vm1193 = vcmp.eq.s32.totalorder %v1192, 7
        %v1194 = vsel %vm1193, %v1187, %v1190
        %v1195 = vld [vmem:[%s1154] ss:$0 sm:$0xff]
        %1196 = vst [vmem:[%s1154] sm:$0xff] %v1194
        %s1197 = smov [#allocation10]
        %s1198 = smov [#allocation13]
        %v1199 = vld [vmem:[%s1197] ss:$0 sm:$0xff]
        %s1201 = scalar_lea.vmem %s1197, 4294967295
        %v1202 = vld [vmem:[%s1201] sm:$0xfe]
        %v1203 = vlaneseq
        %v1204 = vshrl.u32 %v1203, 7
        %vm1205 = vcmp.eq.s32.totalorder %v1204, 0
        %v1206 = vsel %vm1205, %v1199, %v1202
        %s1207 = scalar_lea.vmem %s1197, 7
        %v1208 = vld [vmem:[%s1207] ss:$0 sm:$0xff]
        %1209 = vst [vmem:[%s1197] sm:$0xff] %v1206
        %s1210 = scalar_lea.vmem %s1197, 8
        %s1212 = scalar_lea.vmem %s1210, 4294967295
        %v1213 = vld [vmem:[%s1212] sm:$0xfe]
        %v1214 = vlaneseq
        %v1215 = vshrl.u32 %v1214, 7
        %vm1216 = vcmp.eq.s32.totalorder %v1215, 0
        %v1217 = vsel %vm1216, %v1208, %v1213
        %s1218 = scalar_lea.vmem %s1210, 7
        %v1219 = vld [vmem:[%s1218] ss:$0 sm:$0xff]
        %1220 = vst [vmem:[%s1210] sm:$0xff] %v1217
        %v1221 = vld [vmem:[%s1198] ss:$0 sm:$0xff]
        %s1222 = scalar_lea.vmem %s1197, 1
        %1223 = vst [vmem:[%s1222] sm:$0x1] %v1221
        %s1224 = scalar_lea.vmem %s1198, 8
        %s1225 = scalar_lea.vmem %s1224, 1
        %v1226 = vld [vmem:[%s1225] sm:$0x7f]
        %v1227 = vlaneseq
        %v1228 = vshrl.u32 %v1227, 7
        %vm1229 = vcmp.eq.s32.totalorder %v1228, 7
        %v1230 = vsel %vm1229, %v1219, %v1226
        %v1231 = vld [vmem:[%s1224] ss:$0 sm:$0xff]
        %1232 = vst [vmem:[%s1224] sm:$0xff] %v1230
        %s1233 = scalar_lea.vmem %s1198, 1
        %v1234 = vld [vmem:[%s1233] sm:$0x7f]
        %v1235 = vlaneseq
        %v1236 = vshrl.u32 %v1235, 7
        %vm1237 = vcmp.eq.s32.totalorder %v1236, 7
        %v1238 = vsel %vm1237, %v1231, %v1234
        %v1239 = vld [vmem:[%s1198] ss:$0 sm:$0xff]
        %1240 = vst [vmem:[%s1198] sm:$0xff] %v1238
      $region101: #{custom-call.9} parent=93 // loop_footer
        %s477 = sadd.s32 1, %s473
      $region102: #{custom-call.9} parent=93 // loop_footer_branch
        %472 = sbr.rel target = $region98
      $region103: #{custom-call.9} parent=93 // loop_exit
        _
      %s1241 = sadd.s32 %s343, 1
    $region94: #{custom-call.9} parent=1 // loop_footer
      _
    $region95: #{custom-call.9} parent=1 // loop_footer_branch
      %342 = sbr.rel target = $region91
    $region96: #{custom-call.9} parent=1 // loop_exit
      _
    %s1244 = smov [#allocation15]
    %s1245 = smov [#allocation4]
    %v1246 = vlaneseq
    %v1247 = vand.u32 %v1246, 127
    %v1248 = vmov %v1247
    %v1249 = vlaneseq
    %v1250 = vshrl.u32 %v1249, 7
    %v1251 = vmov %v1250
    %v1252 = vld [vmem:[%s1244] sm:$0xff]
    %vm1255 = vcmp.eq.s32.totalorder %v1251, %v1248
    %v1256 = vsel %vm1255, %v1252, 0.0
    %s1257 = scalar_lea.vmem %s1244, 8
    %v1258 = vld [vmem:[%s1257] sm:$0xff]
    %v1260 = vadd.s32 %v1251, 8
    %vm1261 = vcmp.eq.s32.totalorder %v1260, %v1248
    %v1262 = vsel %vm1261, %v1258, %v1256
    %v1263 = vrot.slane %v1262, 4
    %v1264 = vadd.f32 %v1262, %v1263
    %v1265 = vrot.slane %v1264, 2
    %v1266 = vadd.f32 %v1264, %v1265
    %v1267 = vrot.slane %v1266, 1
    %v1268 = vadd.f32 %v1266, %v1267
    %1269 = vst [vmem:[%s1245] sm:$0x1] %v1268
    %s1270 = smov [#allocation18]
    %s1271 = smov [#allocation6]
    %v1272 = vlaneseq
    %v1273 = vand.u32 %v1272, 127
    %v1274 = vmov %v1273
    %v1275 = vlaneseq
    %v1276 = vshrl.u32 %v1275, 7
    %v1277 = vmov %v1276
    %v1278 = vld [vmem:[%s1270] sm:$0xff]
    %vm1281 = vcmp.eq.s32.totalorder %v1277, %v1274
    %v1282 = vsel %vm1281, %v1278, 0.0
    %s1283 = scalar_lea.vmem %s1270, 8
    %v1284 = vld [vmem:[%s1283] sm:$0xff]
    %v1286 = vadd.s32 %v1277, 8
    %vm1287 = vcmp.eq.s32.totalorder %v1286, %v1274
    %v1288 = vsel %vm1287, %v1284, %v1282
    %v1289 = vrot.slane %v1288, 4
    %v1290 = vadd.f32 %v1288, %v1289
    %v1291 = vrot.slane %v1290, 2
    %v1292 = vadd.f32 %v1290, %v1291
    %v1293 = vrot.slane %v1292, 1
    %v1294 = vadd.f32 %v1292, %v1293
    %1295 = vst [vmem:[%s1271] sm:$0x1] %v1294
    %s1297 = sshllo.u32 0, 1
    %v1299 = vld [vmem:[#allocation4] sm:%s1297]
    %s1300 = sshllo.u32 0, 1
    %1301 = vst [vmem:[#allocation5] sm:%s1300] %v1299
    %s1303 = sshllo.u32 0, 1
    %v1305 = vld [vmem:[#allocation6] sm:%s1303]
    %s1306 = sshllo.u32 0, 1
    %1307 = vst [vmem:[#allocation7] sm:%s1306] %v1305
    // Predicated region
    $region104: #{custom-call.9} parent=1 // pred_check
      _
    $region105: #{custom-call.9} parent=1 // pred_check_branch
      %1309 = sbr.rel (0) target = $region107
    $region106: #{custom-call.9} parent=1 // pred_region
      %p1311 = scmp.gt.s32.totalorder 1, 0
      // Predicated region
      $region108: #{custom-call.9} parent=106 // pred_check
        %p1312 = pneg %p1311
      $region109: #{custom-call.9} parent=106 // pred_check_branch
        %1314 = sbr.rel (%p1312) target = $region111
      $region110: #{custom-call.9} parent=106 // pred_region
        %s1315 = sshra.s32 1, 3
        %p1316 = scmp.gt.s32.totalorder %s1315, 0
        // Predicated region
        $region112: #{custom-call.9} parent=110 // pred_check
          %p1317 = pneg %p1316
        $region113: #{custom-call.9} parent=110 // pred_check_branch
          %1319 = sbr.rel (%p1317) target = $region115
        $region114: #{custom-call.9} parent=110 // pred_region
          %s1320 = ssub.s32 %s1315, 1
          %s1321 = smul.u32 %s1320, 128
          %s1322 = sshra.s32 %s1321, 4
          %s1323 = scalar_lea.vmem [#allocation5], %s1322
          %v1324 = vld [vmem:[#allocation5] sm:$0xff]
          // While loop
          $region116: #{custom-call.9} parent=114 // loop_pre_header
            _
          $region117: #{custom-call.9} parent=114 // loop_header
            %s1325 = sphi [#allocation5], %s1347
            %s1326 = sphi %s4, %s1348
            %v1327 = vphi %v1324, %v1349
            %s1328 = ssub.s32 %s1323, 64
            %p1329 = scmp.gt.s32.totalorder %s1325, %s1328
          $region118: #{custom-call.9} parent=114 // loop_header_branch
            %1331 = sbr.rel (%p1329) target = $region122
          $region119: #{custom-call.9} parent=114 // loop_body
            %1332 = vst [vmem:[%s1326] sm:$0xff] %v1327
            %v1333 = vld [vmem:[%s1325 + $0x8] sm:$0xff]
            %1334 = vst [vmem:[%s1326 + $0x8] sm:$0xff] %v1333
            %v1335 = vld [vmem:[%s1325 + $0x10] sm:$0xff]
            %1336 = vst [vmem:[%s1326 + $0x10] sm:$0xff] %v1335
            %v1337 = vld [vmem:[%s1325 + $0x18] sm:$0xff]
            %1338 = vst [vmem:[%s1326 + $0x18] sm:$0xff] %v1337
            %v1339 = vld [vmem:[%s1325 + $0x20] sm:$0xff]
            %1340 = vst [vmem:[%s1326 + $0x20] sm:$0xff] %v1339
            %v1341 = vld [vmem:[%s1325 + $0x28] sm:$0xff]
            %1342 = vst [vmem:[%s1326 + $0x28] sm:$0xff] %v1341
            %v1343 = vld [vmem:[%s1325 + $0x30] sm:$0xff]
            %1344 = vst [vmem:[%s1326 + $0x30] sm:$0xff] %v1343
            %v1345 = vld [vmem:[%s1325 + $0x38] sm:$0xff]
            %1346 = vst [vmem:[%s1326 + $0x38] sm:$0xff] %v1345
          $region120: #{custom-call.9} parent=114 // loop_footer
            %s1347 = scalar_lea.vmem %s1325, 64
            %s1348 = scalar_lea.vmem %s1326, 64
            %v1349 = vld [vmem:[%s1325 + $0x40] sm:$0xff]
          $region121: #{custom-call.9} parent=114 // loop_footer_branch
            %1350 = sbr.rel target = $region117
          $region122: #{custom-call.9} parent=114 // loop_exit
            _
          // While loop
          $region123: #{custom-call.9} parent=114 // loop_pre_header
            _
          $region124: #{custom-call.9} parent=114 // loop_header
            %s1351 = sphi %s1325, %s1359
            %s1352 = sphi %s1326, %s1360
            %v1353 = vphi %v1327, %v1353
            %p1354 = scmp.gt.s32.totalorder %s1351, %s1323
          $region125: #{custom-call.9} parent=114 // loop_header_branch
            %1356 = sbr.rel (%p1354) target = $region129
          $region126: #{custom-call.9} parent=114 // loop_body
            %v1357 = vld [vmem:[%s1351] sm:$0xff]
            %1358 = vst [vmem:[%s1352] sm:$0xff] %v1357
          $region127: #{custom-call.9} parent=114 // loop_footer
            %s1359 = scalar_lea.vmem %s1351, 8
            %s1360 = scalar_lea.vmem %s1352, 8
          $region128: #{custom-call.9} parent=114 // loop_footer_branch
            %1361 = sbr.rel target = $region124
          $region129: #{custom-call.9} parent=114 // loop_exit
            _
        $region115: #{custom-call.9} parent=110 // pred_fallthru
          _
        %s1362 = sand.u32 1, 7
        %s1363 = sshllo.u32 0, %s1362
        %s1364 = smul.u32 %s1315, 128
        %s1365 = sshra.s32 %s1364, 4
        %s1366 = scalar_lea.vmem %s4, %s1365
        %s1367 = smul.u32 %s1315, 128
        %s1368 = sshra.s32 %s1367, 4
        %s1369 = scalar_lea.vmem [#allocation5], %s1368
        %v1370 = vld [vmem:[%s1369] sm:%s1363]
        %1371 = vst [vmem:[%s1366] sm:%s1363] %v1370
      $region111: #{custom-call.9} parent=106 // pred_fallthru
        _
    $region107: #{custom-call.9} parent=1 // pred_fallthru
      _
    // Predicated region
    $region130: #{custom-call.9} parent=1 // pred_check
      _
    $region131: #{custom-call.9} parent=1 // pred_check_branch
      %1373 = sbr.rel (0) target = $region133
    $region132: #{custom-call.9} parent=1 // pred_region
      %p1375 = scmp.gt.s32.totalorder 1, 0
      // Predicated region
      $region134: #{custom-call.9} parent=132 // pred_check
        %p1376 = pneg %p1375
      $region135: #{custom-call.9} parent=132 // pred_check_branch
        %1378 = sbr.rel (%p1376) target = $region137
      $region136: #{custom-call.9} parent=132 // pred_region
        %s1379 = sshra.s32 1, 3
        %p1380 = scmp.gt.s32.totalorder %s1379, 0
        // Predicated region
        $region138: #{custom-call.9} parent=136 // pred_check
          %p1381 = pneg %p1380
        $region139: #{custom-call.9} parent=136 // pred_check_branch
          %1383 = sbr.rel (%p1381) target = $region141
        $region140: #{custom-call.9} parent=136 // pred_region
          %s1384 = ssub.s32 %s1379, 1
          %s1385 = smul.u32 %s1384, 128
          %s1386 = sshra.s32 %s1385, 4
          %s1387 = scalar_lea.vmem [#allocation7], %s1386
          %v1388 = vld [vmem:[#allocation7] sm:$0xff]
          // While loop
          $region142: #{custom-call.9} parent=140 // loop_pre_header
            _
          $region143: #{custom-call.9} parent=140 // loop_header
            %s1389 = sphi [#allocation7], %s1411
            %s1390 = sphi %s5, %s1412
            %v1391 = vphi %v1388, %v1413
            %s1392 = ssub.s32 %s1387, 64
            %p1393 = scmp.gt.s32.totalorder %s1389, %s1392
          $region144: #{custom-call.9} parent=140 // loop_header_branch
            %1395 = sbr.rel (%p1393) target = $region148
          $region145: #{custom-call.9} parent=140 // loop_body
            %1396 = vst [vmem:[%s1390] sm:$0xff] %v1391
            %v1397 = vld [vmem:[%s1389 + $0x8] sm:$0xff]
            %1398 = vst [vmem:[%s1390 + $0x8] sm:$0xff] %v1397
            %v1399 = vld [vmem:[%s1389 + $0x10] sm:$0xff]
            %1400 = vst [vmem:[%s1390 + $0x10] sm:$0xff] %v1399
            %v1401 = vld [vmem:[%s1389 + $0x18] sm:$0xff]
            %1402 = vst [vmem:[%s1390 + $0x18] sm:$0xff] %v1401
            %v1403 = vld [vmem:[%s1389 + $0x20] sm:$0xff]
            %1404 = vst [vmem:[%s1390 + $0x20] sm:$0xff] %v1403
            %v1405 = vld [vmem:[%s1389 + $0x28] sm:$0xff]
            %1406 = vst [vmem:[%s1390 + $0x28] sm:$0xff] %v1405
            %v1407 = vld [vmem:[%s1389 + $0x30] sm:$0xff]
            %1408 = vst [vmem:[%s1390 + $0x30] sm:$0xff] %v1407
            %v1409 = vld [vmem:[%s1389 + $0x38] sm:$0xff]
            %1410 = vst [vmem:[%s1390 + $0x38] sm:$0xff] %v1409
          $region146: #{custom-call.9} parent=140 // loop_footer
            %s1411 = scalar_lea.vmem %s1389, 64
            %s1412 = scalar_lea.vmem %s1390, 64
            %v1413 = vld [vmem:[%s1389 + $0x40] sm:$0xff]
          $region147: #{custom-call.9} parent=140 // loop_footer_branch
            %1414 = sbr.rel target = $region143
          $region148: #{custom-call.9} parent=140 // loop_exit
            _
          // While loop
          $region149: #{custom-call.9} parent=140 // loop_pre_header
            _
          $region150: #{custom-call.9} parent=140 // loop_header
            %s1415 = sphi %s1389, %s1423
            %s1416 = sphi %s1390, %s1424
            %v1417 = vphi %v1391, %v1417
            %p1418 = scmp.gt.s32.totalorder %s1415, %s1387
          $region151: #{custom-call.9} parent=140 // loop_header_branch
            %1420 = sbr.rel (%p1418) target = $region155
          $region152: #{custom-call.9} parent=140 // loop_body
            %v1421 = vld [vmem:[%s1415] sm:$0xff]
            %1422 = vst [vmem:[%s1416] sm:$0xff] %v1421
          $region153: #{custom-call.9} parent=140 // loop_footer
            %s1423 = scalar_lea.vmem %s1415, 8
            %s1424 = scalar_lea.vmem %s1416, 8
          $region154: #{custom-call.9} parent=140 // loop_footer_branch
            %1425 = sbr.rel target = $region150
          $region155: #{custom-call.9} parent=140 // loop_exit
            _
        $region141: #{custom-call.9} parent=136 // pred_fallthru
          _
        %s1426 = sand.u32 1, 7
        %s1427 = sshllo.u32 0, %s1426
        %s1428 = smul.u32 %s1379, 128
        %s1429 = sshra.s32 %s1428, 4
        %s1430 = scalar_lea.vmem %s5, %s1429
        %s1431 = smul.u32 %s1379, 128
        %s1432 = sshra.s32 %s1431, 4
        %s1433 = scalar_lea.vmem [#allocation7], %s1432
        %v1434 = vld [vmem:[%s1433] sm:%s1427]
        %1435 = vst [vmem:[%s1430] sm:%s1427] %v1434
      $region137: #{custom-call.9} parent=132 // pred_fallthru
        _
    $region133: #{custom-call.9} parent=1 // pred_fallthru
      _
    %s1437 = ssub.s32 256, 256
    %1438 = vsyncadd [#allocation9], %s1437
    %s1439 = sshll.u32 [#allocation8], 4
    %s1440 = int_to_ptr.vmem [resolvable:$true] %s1439
    %1442 = dma.vmem_to_hbm [thread:$0]  %s1440, 256, %s6, [#allocation9]
    %s1444 = ssub.s32 256, 256
    %1445 = vsyncadd [#allocation11], %s1444
    %s1446 = sshll.u32 [#allocation10], 4
    %s1447 = int_to_ptr.vmem [resolvable:$true] %s1446
    %1449 = dma.vmem_to_hbm [thread:$0]  %s1447, 256, %s7, [#allocation11]
    %s1451 = ssub.s32 256, 256
    %1452 = vsyncadd [#allocation11], %s1451
    %s1453 = sshll.u32 [#allocation12], 4
    %s1454 = int_to_ptr.vmem [resolvable:$true] %s1453
    %1456 = dma.vmem_to_hbm [thread:$0]  %s1454, 256, %s8, [#allocation11]
    %s1458 = ssub.s32 256, 256
    %1459 = vsyncadd [#allocation14], %s1458
    %s1460 = sshll.u32 [#allocation13], 4
    %s1461 = int_to_ptr.vmem [resolvable:$true] %s1460
    %1463 = dma.vmem_to_hbm [thread:$0]  %s1461, 256, %s9, [#allocation14]
    // Predicated region
    $region156: #{custom-call.9} parent=1 // pred_check
      _
    $region157: #{custom-call.9} parent=1 // pred_check_branch
      %1465 = sbr.rel (0) target = $region159
    $region158: #{custom-call.9} parent=1 // pred_region
      _
    $region159: #{custom-call.9} parent=1 // pred_fallthru
      _
    // Predicated region
    $region160: #{custom-call.9} parent=1 // pred_check
      _
    $region161: #{custom-call.9} parent=1 // pred_check_branch
      %1467 = sbr.rel (0) target = $region163
    $region162: #{custom-call.9} parent=1 // pred_region
      _
    $region163: #{custom-call.9} parent=1 // pred_fallthru
      _
    %1468 = dma.done [#allocation9], 256
    %1469 = dma.done [#allocation11], 256
    %1470 = dma.done [#allocation11], 256
    %1471 = dma.done [#allocation14], 256
    %1472 = vsyncpa [#allocation9], 1
    %1473 = vsyncpa [#allocation11], 1
    %1474 = vsyncpa [#allocation14], 1

// kernel: custom-call.10
$region0: #{custom-call.10}
  %s0 = inlined_call_operand.vmem [shape: f32[32,32], index: 0, kind: input, shape index: {}]
  %s1 = inlined_call_operand.vmem [shape: f32[32,32], index: 1, kind: output, shape index: {}]
  $region1: #{custom-call.10} parent=0
    #allocation0 [shape = 'u8[16384]{0}', space=vmem, size = 0x4000, scoped, tag = 'operand span for operand 0']
    #allocation1 [shape = 'u8[16384]{0}', space=vmem, size = 0x4000, scoped, tag = 'operand span for operand 1']
    // Predicated region
    $region2: #{custom-call.10} parent=1 // pred_check
      _
    $region3: #{custom-call.10} parent=1 // pred_check_branch
      %3 = sbr.rel (0) target = $region5
    $region4: #{custom-call.10} parent=1 // pred_region
      // Predicated region
      $region6: #{custom-call.10} parent=4 // pred_check
        _
      $region7: #{custom-call.10} parent=4 // pred_check_branch
        %5 = sbr.rel (0) target = $region9
      $region8: #{custom-call.10} parent=4 // pred_region
        // Predicated region
        $region21: #{custom-call.10} parent=8 // pred_check
          _
        $region22: #{custom-call.10} parent=8 // pred_check_branch
          %26 = sbr.rel (0) target = $region24
        $region23: #{custom-call.10} parent=8 // pred_region
          loop: start=0, step=1, limit=1
          $region25: #{custom-call.10} parent=23 // loop_pre_header
            _
          $region26: #{custom-call.10} parent=23 // loop_header
            %s28 = sphi 0, %s32
            %p29 = scmp.ge.s32.totalorder %s28, 1
            %s33 = sphi %s0, %s0
            %s34 = sphi [#allocation0], [#allocation0]
          $region27: #{custom-call.10} parent=23 // loop_header_branch
            %31 = sbr.rel (%p29) target = $region31
          $region28: #{custom-call.10} parent=23 // loop_body
            %v35 = vld [vmem:[%s33] sm:$0xff]
            %36 = vst [vmem:[%s34] sm:$0xff] %v35
            %v37 = vld [vmem:[%s33 + $0x8] sm:$0xff]
            %38 = vst [vmem:[%s34 + $0x8] sm:$0xff] %v37
            %v39 = vld [vmem:[%s33 + $0x10] sm:$0xff]
            %40 = vst [vmem:[%s34 + $0x10] sm:$0xff] %v39
            %v41 = vld [vmem:[%s33 + $0x18] sm:$0xff]
            %42 = vst [vmem:[%s34 + $0x18] sm:$0xff] %v41
          $region29: #{custom-call.10} parent=23 // loop_footer
            %s32 = sadd.s32 1, %s28
          $region30: #{custom-call.10} parent=23 // loop_footer_branch
            %27 = sbr.rel target = $region26
          $region31: #{custom-call.10} parent=23 // loop_exit
            _
        $region24: #{custom-call.10} parent=8 // pred_fallthru
          _
        // Predicated region
        $region32: #{custom-call.10} parent=8 // pred_check
          _
        $region33: #{custom-call.10} parent=8 // pred_check_branch
          %44 = sbr.rel target = $region35
        $region34: #{custom-call.10} parent=8 // pred_region
          _
        $region35: #{custom-call.10} parent=8 // pred_fallthru
          _
      $region9: #{custom-call.10} parent=4 // pred_fallthru
        _
      // Predicated region
      $region10: #{custom-call.10} parent=4 // pred_check
        _
      $region11: #{custom-call.10} parent=4 // pred_check_branch
        %7 = sbr.rel target = $region13
      $region12: #{custom-call.10} parent=4 // pred_region
        loop: start=0, step=1, limit=1
        $region14: #{custom-call.10} parent=12 // loop_pre_header
          _
        $region15: #{custom-call.10} parent=12 // loop_header
          %s10 = sphi 0, %s14
          %p11 = scmp.ge.s32.totalorder %s10, 1
          %s15 = sphi %s0, %s0
          %s16 = sphi [#allocation0], [#allocation0]
        $region16: #{custom-call.10} parent=12 // loop_header_branch
          %13 = sbr.rel (%p11) target = $region20
        $region17: #{custom-call.10} parent=12 // loop_body
          %v17 = vld [vmem:[%s15] sm:$0xff]
          %18 = vst [vmem:[%s16] sm:$0xff] %v17
          %v19 = vld [vmem:[%s15 + $0x8] sm:$0xff]
          %20 = vst [vmem:[%s16 + $0x8] sm:$0xff] %v19
          %v21 = vld [vmem:[%s15 + $0x10] sm:$0xff]
          %22 = vst [vmem:[%s16 + $0x10] sm:$0xff] %v21
          %v23 = vld [vmem:[%s15 + $0x18] sm:$0xff]
          %24 = vst [vmem:[%s16 + $0x18] sm:$0xff] %v23
        $region18: #{custom-call.10} parent=12 // loop_footer
          %s14 = sadd.s32 1, %s10
        $region19: #{custom-call.10} parent=12 // loop_footer_branch
          %9 = sbr.rel target = $region15
        $region20: #{custom-call.10} parent=12 // loop_exit
          _
      $region13: #{custom-call.10} parent=4 // pred_fallthru
        _
    $region5: #{custom-call.10} parent=1 // pred_fallthru
      _
    %45 = vnop
    %46 = vst [vmem:[#allocation1] sm:$0xff] 0.0
    %s47 = scalar_lea.vmem [#allocation1], 8
    %48 = vst [vmem:[%s47] sm:$0xff] 0.0
    %s49 = scalar_lea.vmem [#allocation1], 16
    %50 = vst [vmem:[%s49] sm:$0xff] 0.0
    %s51 = scalar_lea.vmem [#allocation1], 24
    %52 = vst [vmem:[%s51] sm:$0xff] 0.0
    %vm53 = vcmask 7168
    %v54 = vld [vmem:[#allocation1] ss:$0 sm:$0xff]
    %v55 = vld [vmem:[#allocation0] ss:$0 sm:$0xff]
    %v56 = vmul.f32 %v54, %v54
    %57 = vadd.xlane.f32.xlu0 %v56
    %v58 = vpop.xlane.xlu0 %57
    %v59 = vsub.f32 %v55, %v58
    %v60 = vrsqrt.pop %v59
    %v61 = vld [vmem:[#allocation0] sm:$0xff]
    %v62 = vld [vmem:[#allocation1] sm:$0xff]
    %v63 = vmul.f32 %v62, %v54
    %64 = vadd.xlane.f32.xlu0 %v63
    %v65 = vpop.xlane.xlu0 %64
    %v66 = vsub.f32 %v61, %v65
    %v67 = vmul.f32 %v66, %v60
    %v68 = vsel %vm53, %v67, 0.0
    %v69 = vadd.f32 %v62, %v68
    %70 = vst [vmem:[#allocation1] sm:$0xff] %v69
    %s71 = scalar_lea.vmem [#allocation0], 8
    %v72 = vld [vmem:[%s71] sm:$0xff]
    %s73 = scalar_lea.vmem [#allocation1], 8
    %v74 = vld [vmem:[%s73] sm:$0xff]
    %v75 = vmul.f32 %v74, %v54
    %76 = vadd.xlane.f32.xlu0 %v75
    %v77 = vpop.xlane.xlu0 %76
    %v78 = vsub.f32 %v72, %v77
    %v79 = vmul.f32 %v78, %v60
    %v80 = vsel %vm53, %v79, 0.0
    %v81 = vadd.f32 %v74, %v80
    %s82 = scalar_lea.vmem [#allocation1], 8
    %83 = vst [vmem:[%s82] sm:$0xff] %v81
    %s84 = scalar_lea.vmem [#allocation0], 16
    %v85 = vld [vmem:[%s84] sm:$0xff]
    %s86 = scalar_lea.vmem [#allocation1], 16
    %v87 = vld [vmem:[%s86] sm:$0xff]
    %v88 = vmul.f32 %v87, %v54
    %89 = vadd.xlane.f32.xlu0 %v88
    %v90 = vpop.xlane.xlu0 %89
    %v91 = vsub.f32 %v85, %v90
    %v92 = vmul.f32 %v91, %v60
    %v93 = vsel %vm53, %v92, 0.0
    %v94 = vadd.f32 %v87, %v93
    %s95 = scalar_lea.vmem [#allocation1], 16
    %96 = vst [vmem:[%s95] sm:$0xff] %v94
    %s97 = scalar_lea.vmem [#allocation0], 24
    %v98 = vld [vmem:[%s97] sm:$0xff]
    %s99 = scalar_lea.vmem [#allocation1], 24
    %v100 = vld [vmem:[%s99] sm:$0xff]
    %v101 = vmul.f32 %v100, %v54
    %102 = vadd.xlane.f32.xlu0 %v101
    %v103 = vpop.xlane.xlu0 %102
    %v104 = vsub.f32 %v98, %v103
    %v105 = vmul.f32 %v104, %v60
    %v106 = vsel %vm53, %v105, 0.0
    %v107 = vadd.f32 %v100, %v106
    %s108 = scalar_lea.vmem [#allocation1], 24
    %109 = vst [vmem:[%s108] sm:$0xff] %v107
    %vm110 = vcmask 15368
    %s111 = scalar_lea.vmem [#allocation1], 1
    %v112 = vld [vmem:[%s111] ss:$0 sm:$0xff]
    %s113 = scalar_lea.vmem [#allocation0], 1
    %v114 = vld [vmem:[%s113] ss:$0 sm:$0xff]
    %v115 = vmul.f32 %v112, %v112
    %116 = vadd.xlane.f32.xlu0 %v115
    %v117 = vpop.xlane.xlu0 %116
    %v118 = vsub.f32 %v114, %v117
    %v119 = vrsqrt.pop %v118
    %v120 = vld [vmem:[#allocation0] sm:$0xff]
    %v121 = vld [vmem:[#allocation1] sm:$0xff]
    %v122 = vmul.f32 %v121, %v112
    %123 = vadd.xlane.f32.xlu0 %v122
    %v124 = vpop.xlane.xlu0 %123
    %v125 = vsub.f32 %v120, %v124
    %v126 = vmul.f32 %v125, %v119
    %vm127 = vcmask 1047553
    %vm128 = vmand %vm110, %vm127
    %v129 = vsel %vm128, %v126, 0.0
    %v130 = vadd.f32 %v121, %v129
    %131 = vst [vmem:[#allocation1] sm:$0xff] %v130
    %s132 = scalar_lea.vmem [#allocation0], 8
    %v133 = vld [vmem:[%s132] sm:$0xff]
    %s134 = scalar_lea.vmem [#allocation1], 8
    %v135 = vld [vmem:[%s134] sm:$0xff]
    %v136 = vmul.f32 %v135, %v112
    %137 = vadd.xlane.f32.xlu0 %v136
    %v138 = vpop.xlane.xlu0 %137
    %v139 = vsub.f32 %v133, %v138
    %v140 = vmul.f32 %v139, %v119
    %v141 = vsel %vm110, %v140, 0.0
    %v142 = vadd.f32 %v135, %v141
    %s143 = scalar_lea.vmem [#allocation1], 8
    %144 = vst [vmem:[%s143] sm:$0xff] %v142
    %s145 = scalar_lea.vmem [#allocation0], 16
    %v146 = vld [vmem:[%s145] sm:$0xff]
    %s147 = scalar_lea.vmem [#allocation1], 16
    %v148 = vld [vmem:[%s147] sm:$0xff]
    %v149 = vmul.f32 %v148, %v112
    %150 = vadd.xlane.f32.xlu0 %v149
    %v151 = vpop.xlane.xlu0 %150
    %v152 = vsub.f32 %v146, %v151
    %v153 = vmul.f32 %v152, %v119
    %v154 = vsel %vm110, %v153, 0.0
    %v155 = vadd.f32 %v148, %v154
    %s156 = scalar_lea.vmem [#allocation1], 16
    %157 = vst [vmem:[%s156] sm:$0xff] %v155
    %s158 = scalar_lea.vmem [#allocation0], 24
    %v159 = vld [vmem:[%s158] sm:$0xff]
    %s160 = scalar_lea.vmem [#allocation1], 24
    %v161 = vld [vmem:[%s160] sm:$0xff]
    %v162 = vmul.f32 %v161, %v112
    %163 = vadd.xlane.f32.xlu0 %v162
    %v164 = vpop.xlane.xlu0 %163
    %v165 = vsub.f32 %v159, %v164
    %v166 = vmul.f32 %v165, %v119
    %v167 = vsel %vm110, %v166, 0.0
    %v168 = vadd.f32 %v161, %v167
    %s169 = scalar_lea.vmem [#allocation1], 24
    %170 = vst [vmem:[%s169] sm:$0xff] %v168
    %vm171 = vcmask 23568
    %s172 = scalar_lea.vmem [#allocation1], 2
    %v173 = vld [vmem:[%s172] ss:$0 sm:$0xff]
    %s174 = scalar_lea.vmem [#allocation0], 2
    %v175 = vld [vmem:[%s174] ss:$0 sm:$0xff]
    %v176 = vmul.f32 %v173, %v173
    %177 = vadd.xlane.f32.xlu0 %v176
    %v178 = vpop.xlane.xlu0 %177
    %v179 = vsub.f32 %v175, %v178
    %v180 = vrsqrt.pop %v179
    %v181 = vld [vmem:[#allocation0] sm:$0xff]
    %v182 = vld [vmem:[#allocation1] sm:$0xff]
    %v183 = vmul.f32 %v182, %v173
    %184 = vadd.xlane.f32.xlu0 %v183
    %v185 = vpop.xlane.xlu0 %184
    %v186 = vsub.f32 %v181, %v185
    %v187 = vmul.f32 %v186, %v180
    %vm188 = vcmask 1047554
    %vm189 = vmand %vm171, %vm188
    %v190 = vsel %vm189, %v187, 0.0
    %v191 = vadd.f32 %v182, %v190
    %192 = vst [vmem:[#allocation1] sm:$0xff] %v191
    %s193 = scalar_lea.vmem [#allocation0], 8
    %v194 = vld [vmem:[%s193] sm:$0xff]
    %s195 = scalar_lea.vmem [#allocation1], 8
    %v196 = vld [vmem:[%s195] sm:$0xff]
    %v197 = vmul.f32 %v196, %v173
    %198 = vadd.xlane.f32.xlu0 %v197
    %v199 = vpop.xlane.xlu0 %198
    %v200 = vsub.f32 %v194, %v199
    %v201 = vmul.f32 %v200, %v180
    %v202 = vsel %vm171, %v201, 0.0
    %v203 = vadd.f32 %v196, %v202
    %s204 = scalar_lea.vmem [#allocation1], 8
    %205 = vst [vmem:[%s204] sm:$0xff] %v203
    %s206 = scalar_lea.vmem [#allocation0], 16
    %v207 = vld [vmem:[%s206] sm:$0xff]
    %s208 = scalar_lea.vmem [#allocation1], 16
    %v209 = vld [vmem:[%s208] sm:$0xff]
    %v210 = vmul.f32 %v209, %v173
    %211 = vadd.xlane.f32.xlu0 %v210
    %v212 = vpop.xlane.xlu0 %211
    %v213 = vsub.f32 %v207, %v212
    %v214 = vmul.f32 %v213, %v180
    %v215 = vsel %vm171, %v214, 0.0
    %v216 = vadd.f32 %v209, %v215
    %s217 = scalar_lea.vmem [#allocation1], 16
    %218 = vst [vmem:[%s217] sm:$0xff] %v216
    %s219 = scalar_lea.vmem [#allocation0], 24
    %v220 = vld [vmem:[%s219] sm:$0xff]
    %s221 = scalar_lea.vmem [#allocation1], 24
    %v222 = vld [vmem:[%s221] sm:$0xff]
    %v223 = vmul.f32 %v222, %v173
    %224 = vadd.xlane.f32.xlu0 %v223
    %v225 = vpop.xlane.xlu0 %224
    %v226 = vsub.f32 %v220, %v225
    %v227 = vmul.f32 %v226, %v180
    %v228 = vsel %vm171, %v227, 0.0
    %v229 = vadd.f32 %v222, %v228
    %s230 = scalar_lea.vmem [#allocation1], 24
    %231 = vst [vmem:[%s230] sm:$0xff] %v229
    %vm232 = vcmask 31768
    %s233 = scalar_lea.vmem [#allocation1], 3
    %v234 = vld [vmem:[%s233] ss:$0 sm:$0xff]
    %s235 = scalar_lea.vmem [#allocation0], 3
    %v236 = vld [vmem:[%s235] ss:$0 sm:$0xff]
    %v237 = vmul.f32 %v234, %v234
    %238 = vadd.xlane.f32.xlu0 %v237
    %v239 = vpop.xlane.xlu0 %238
    %v240 = vsub.f32 %v236, %v239
    %v241 = vrsqrt.pop %v240
    %v242 = vld [vmem:[#allocation0] sm:$0xff]
    %v243 = vld [vmem:[#allocation1] sm:$0xff]
    %v244 = vmul.f32 %v243, %v234
    %245 = vadd.xlane.f32.xlu0 %v244
    %v246 = vpop.xlane.xlu0 %245
    %v247 = vsub.f32 %v242, %v246
    %v248 = vmul.f32 %v247, %v241
    %vm249 = vcmask 1047555
    %vm250 = vmand %vm232, %vm249
    %v251 = vsel %vm250, %v248, 0.0
    %v252 = vadd.f32 %v243, %v251
    %253 = vst [vmem:[#allocation1] sm:$0xff] %v252
    %s254 = scalar_lea.vmem [#allocation0], 8
    %v255 = vld [vmem:[%s254] sm:$0xff]
    %s256 = scalar_lea.vmem [#allocation1], 8
    %v257 = vld [vmem:[%s256] sm:$0xff]
    %v258 = vmul.f32 %v257, %v234
    %259 = vadd.xlane.f32.xlu0 %v258
    %v260 = vpop.xlane.xlu0 %259
    %v261 = vsub.f32 %v255, %v260
    %v262 = vmul.f32 %v261, %v241
    %v263 = vsel %vm232, %v262, 0.0
    %v264 = vadd.f32 %v257, %v263
    %s265 = scalar_lea.vmem [#allocation1], 8
    %266 = vst [vmem:[%s265] sm:$0xff] %v264
    %s267 = scalar_lea.vmem [#allocation0], 16
    %v268 = vld [vmem:[%s267] sm:$0xff]
    %s269 = scalar_lea.vmem [#allocation1], 16
    %v270 = vld [vmem:[%s269] sm:$0xff]
    %v271 = vmul.f32 %v270, %v234
    %272 = vadd.xlane.f32.xlu0 %v271
    %v273 = vpop.xlane.xlu0 %272
    %v274 = vsub.f32 %v268, %v273
    %v275 = vmul.f32 %v274, %v241
    %v276 = vsel %vm232, %v275, 0.0
    %v277 = vadd.f32 %v270, %v276
    %s278 = scalar_lea.vmem [#allocation1], 16
    %279 = vst [vmem:[%s278] sm:$0xff] %v277
    %s280 = scalar_lea.vmem [#allocation0], 24
    %v281 = vld [vmem:[%s280] sm:$0xff]
    %s282 = scalar_lea.vmem [#allocation1], 24
    %v283 = vld [vmem:[%s282] sm:$0xff]
    %v284 = vmul.f32 %v283, %v234
    %285 = vadd.xlane.f32.xlu0 %v284
    %v286 = vpop.xlane.xlu0 %285
    %v287 = vsub.f32 %v281, %v286
    %v288 = vmul.f32 %v287, %v241
    %v289 = vsel %vm232, %v288, 0.0
    %v290 = vadd.f32 %v283, %v289
    %s291 = scalar_lea.vmem [#allocation1], 24
    %292 = vst [vmem:[%s291] sm:$0xff] %v290
    %vm293 = vcmask 39968
    %s294 = scalar_lea.vmem [#allocation1], 4
    %v295 = vld [vmem:[%s294] ss:$0 sm:$0xff]
    %s296 = scalar_lea.vmem [#allocation0], 4
    %v297 = vld [vmem:[%s296] ss:$0 sm:$0xff]
    %v298 = vmul.f32 %v295, %v295
    %299 = vadd.xlane.f32.xlu0 %v298
    %v300 = vpop.xlane.xlu0 %299
    %v301 = vsub.f32 %v297, %v300
    %v302 = vrsqrt.pop %v301
    %v303 = vld [vmem:[#allocation0] sm:$0xff]
    %v304 = vld [vmem:[#allocation1] sm:$0xff]
    %v305 = vmul.f32 %v304, %v295
    %306 = vadd.xlane.f32.xlu0 %v305
    %v307 = vpop.xlane.xlu0 %306
    %v308 = vsub.f32 %v303, %v307
    %v309 = vmul.f32 %v308, %v302
    %vm310 = vcmask 1047556
    %vm311 = vmand %vm293, %vm310
    %v312 = vsel %vm311, %v309, 0.0
    %v313 = vadd.f32 %v304, %v312
    %314 = vst [vmem:[#allocation1] sm:$0xff] %v313
    %s315 = scalar_lea.vmem [#allocation0], 8
    %v316 = vld [vmem:[%s315] sm:$0xff]
    %s317 = scalar_lea.vmem [#allocation1], 8
    %v318 = vld [vmem:[%s317] sm:$0xff]
    %v319 = vmul.f32 %v318, %v295
    %320 = vadd.xlane.f32.xlu0 %v319
    %v321 = vpop.xlane.xlu0 %320
    %v322 = vsub.f32 %v316, %v321
    %v323 = vmul.f32 %v322, %v302
    %v324 = vsel %vm293, %v323, 0.0
    %v325 = vadd.f32 %v318, %v324
    %s326 = scalar_lea.vmem [#allocation1], 8
    %327 = vst [vmem:[%s326] sm:$0xff] %v325
    %s328 = scalar_lea.vmem [#allocation0], 16
    %v329 = vld [vmem:[%s328] sm:$0xff]
    %s330 = scalar_lea.vmem [#allocation1], 16
    %v331 = vld [vmem:[%s330] sm:$0xff]
    %v332 = vmul.f32 %v331, %v295
    %333 = vadd.xlane.f32.xlu0 %v332
    %v334 = vpop.xlane.xlu0 %333
    %v335 = vsub.f32 %v329, %v334
    %v336 = vmul.f32 %v335, %v302
    %v337 = vsel %vm293, %v336, 0.0
    %v338 = vadd.f32 %v331, %v337
    %s339 = scalar_lea.vmem [#allocation1], 16
    %340 = vst [vmem:[%s339] sm:$0xff] %v338
    %s341 = scalar_lea.vmem [#allocation0], 24
    %v342 = vld [vmem:[%s341] sm:$0xff]
    %s343 = scalar_lea.vmem [#allocation1], 24
    %v344 = vld [vmem:[%s343] sm:$0xff]
    %v345 = vmul.f32 %v344, %v295
    %346 = vadd.xlane.f32.xlu0 %v345
    %v347 = vpop.xlane.xlu0 %346
    %v348 = vsub.f32 %v342, %v347
    %v349 = vmul.f32 %v348, %v302
    %v350 = vsel %vm293, %v349, 0.0
    %v351 = vadd.f32 %v344, %v350
    %s352 = scalar_lea.vmem [#allocation1], 24
    %353 = vst [vmem:[%s352] sm:$0xff] %v351
    %vm354 = vcmask 48168
    %s355 = scalar_lea.vmem [#allocation1], 5
    %v356 = vld [vmem:[%s355] ss:$0 sm:$0xff]
    %s357 = scalar_lea.vmem [#allocation0], 5
    %v358 = vld [vmem:[%s357] ss:$0 sm:$0xff]
    %v359 = vmul.f32 %v356, %v356
    %360 = vadd.xlane.f32.xlu0 %v359
    %v361 = vpop.xlane.xlu0 %360
    %v362 = vsub.f32 %v358, %v361
    %v363 = vrsqrt.pop %v362
    %v364 = vld [vmem:[#allocation0] sm:$0xff]
    %v365 = vld [vmem:[#allocation1] sm:$0xff]
    %v366 = vmul.f32 %v365, %v356
    %367 = vadd.xlane.f32.xlu0 %v366
    %v368 = vpop.xlane.xlu0 %367
    %v369 = vsub.f32 %v364, %v368
    %v370 = vmul.f32 %v369, %v363
    %vm371 = vcmask 1047557
    %vm372 = vmand %vm354, %vm371
    %v373 = vsel %vm372, %v370, 0.0
    %v374 = vadd.f32 %v365, %v373
    %375 = vst [vmem:[#allocation1] sm:$0xff] %v374
    %s376 = scalar_lea.vmem [#allocation0], 8
    %v377 = vld [vmem:[%s376] sm:$0xff]
    %s378 = scalar_lea.vmem [#allocation1], 8
    %v379 = vld [vmem:[%s378] sm:$0xff]
    %v380 = vmul.f32 %v379, %v356
    %381 = vadd.xlane.f32.xlu0 %v380
    %v382 = vpop.xlane.xlu0 %381
    %v383 = vsub.f32 %v377, %v382
    %v384 = vmul.f32 %v383, %v363
    %v385 = vsel %vm354, %v384, 0.0
    %v386 = vadd.f32 %v379, %v385
    %s387 = scalar_lea.vmem [#allocation1], 8
    %388 = vst [vmem:[%s387] sm:$0xff] %v386
    %s389 = scalar_lea.vmem [#allocation0], 16
    %v390 = vld [vmem:[%s389] sm:$0xff]
    %s391 = scalar_lea.vmem [#allocation1], 16
    %v392 = vld [vmem:[%s391] sm:$0xff]
    %v393 = vmul.f32 %v392, %v356
    %394 = vadd.xlane.f32.xlu0 %v393
    %v395 = vpop.xlane.xlu0 %394
    %v396 = vsub.f32 %v390, %v395
    %v397 = vmul.f32 %v396, %v363
    %v398 = vsel %vm354, %v397, 0.0
    %v399 = vadd.f32 %v392, %v398
    %s400 = scalar_lea.vmem [#allocation1], 16
    %401 = vst [vmem:[%s400] sm:$0xff] %v399
    %s402 = scalar_lea.vmem [#allocation0], 24
    %v403 = vld [vmem:[%s402] sm:$0xff]
    %s404 = scalar_lea.vmem [#allocation1], 24
    %v405 = vld [vmem:[%s404] sm:$0xff]
    %v406 = vmul.f32 %v405, %v356
    %407 = vadd.xlane.f32.xlu0 %v406
    %v408 = vpop.xlane.xlu0 %407
    %v409 = vsub.f32 %v403, %v408
    %v410 = vmul.f32 %v409, %v363
    %v411 = vsel %vm354, %v410, 0.0
    %v412 = vadd.f32 %v405, %v411
    %s413 = scalar_lea.vmem [#allocation1], 24
    %414 = vst [vmem:[%s413] sm:$0xff] %v412
    %vm415 = vcmask 56368
    %s416 = scalar_lea.vmem [#allocation1], 6
    %v417 = vld [vmem:[%s416] ss:$0 sm:$0xff]
    %s418 = scalar_lea.vmem [#allocation0], 6
    %v419 = vld [vmem:[%s418] ss:$0 sm:$0xff]
    %v420 = vmul.f32 %v417, %v417
    %421 = vadd.xlane.f32.xlu0 %v420
    %v422 = vpop.xlane.xlu0 %421
    %v423 = vsub.f32 %v419, %v422
    %v424 = vrsqrt.pop %v423
    %v425 = vld [vmem:[#allocation0] sm:$0xff]
    %v426 = vld [vmem:[#allocation1] sm:$0xff]
    %v427 = vmul.f32 %v426, %v417
    %428 = vadd.xlane.f32.xlu0 %v427
    %v429 = vpop.xlane.xlu0 %428
    %v430 = vsub.f32 %v425, %v429
    %v431 = vmul.f32 %v430, %v424
    %vm432 = vcmask 1047558
    %vm433 = vmand %vm415, %vm432
    %v434 = vsel %vm433, %v431, 0.0
    %v435 = vadd.f32 %v426, %v434
    %436 = vst [vmem:[#allocation1] sm:$0xff] %v435
    %s437 = scalar_lea.vmem [#allocation0], 8
    %v438 = vld [vmem:[%s437] sm:$0xff]
    %s439 = scalar_lea.vmem [#allocation1], 8
    %v440 = vld [vmem:[%s439] sm:$0xff]
    %v441 = vmul.f32 %v440, %v417
    %442 = vadd.xlane.f32.xlu0 %v441
    %v443 = vpop.xlane.xlu0 %442
    %v444 = vsub.f32 %v438, %v443
    %v445 = vmul.f32 %v444, %v424
    %v446 = vsel %vm415, %v445, 0.0
    %v447 = vadd.f32 %v440, %v446
    %s448 = scalar_lea.vmem [#allocation1], 8
    %449 = vst [vmem:[%s448] sm:$0xff] %v447
    %s450 = scalar_lea.vmem [#allocation0], 16
    %v451 = vld [vmem:[%s450] sm:$0xff]
    %s452 = scalar_lea.vmem [#allocation1], 16
    %v453 = vld [vmem:[%s452] sm:$0xff]
    %v454 = vmul.f32 %v453, %v417
    %455 = vadd.xlane.f32.xlu0 %v454
    %v456 = vpop.xlane.xlu0 %455
    %v457 = vsub.f32 %v451, %v456
    %v458 = vmul.f32 %v457, %v424
    %v459 = vsel %vm415, %v458, 0.0
    %v460 = vadd.f32 %v453, %v459
    %s461 = scalar_lea.vmem [#allocation1], 16
    %462 = vst [vmem:[%s461] sm:$0xff] %v460
    %s463 = scalar_lea.vmem [#allocation0], 24
    %v464 = vld [vmem:[%s463] sm:$0xff]
    %s465 = scalar_lea.vmem [#allocation1], 24
    %v466 = vld [vmem:[%s465] sm:$0xff]
    %v467 = vmul.f32 %v466, %v417
    %468 = vadd.xlane.f32.xlu0 %v467
    %v469 = vpop.xlane.xlu0 %468
    %v470 = vsub.f32 %v464, %v469
    %v471 = vmul.f32 %v470, %v424
    %v472 = vsel %vm415, %v471, 0.0
    %v473 = vadd.f32 %v466, %v472
    %s474 = scalar_lea.vmem [#allocation1], 24
    %475 = vst [vmem:[%s474] sm:$0xff] %v473
    %vm476 = vcmask 64568
    %s477 = scalar_lea.vmem [#allocation1], 7
    %v478 = vld [vmem:[%s477] ss:$0 sm:$0xff]
    %s479 = scalar_lea.vmem [#allocation0], 7
    %v480 = vld [vmem:[%s479] ss:$0 sm:$0xff]
    %v481 = vmul.f32 %v478, %v478
    %482 = vadd.xlane.f32.xlu0 %v481
    %v483 = vpop.xlane.xlu0 %482
    %v484 = vsub.f32 %v480, %v483
    %v485 = vrsqrt.pop %v484
    %v486 = vld [vmem:[#allocation0] sm:$0xff]
    %v487 = vld [vmem:[#allocation1] sm:$0xff]
    %v488 = vmul.f32 %v487, %v478
    %489 = vadd.xlane.f32.xlu0 %v488
    %v490 = vpop.xlane.xlu0 %489
    %v491 = vsub.f32 %v486, %v490
    %v492 = vmul.f32 %v491, %v485
    %vm493 = vcmask 1047559
    %vm494 = vmand %vm476, %vm493
    %v495 = vsel %vm494, %v492, 0.0
    %v496 = vadd.f32 %v487, %v495
    %497 = vst [vmem:[#allocation1] sm:$0xff] %v496
    %s498 = scalar_lea.vmem [#allocation0], 8
    %v499 = vld [vmem:[%s498] sm:$0xff]
    %s500 = scalar_lea.vmem [#allocation1], 8
    %v501 = vld [vmem:[%s500] sm:$0xff]
    %v502 = vmul.f32 %v501, %v478
    %503 = vadd.xlane.f32.xlu0 %v502
    %v504 = vpop.xlane.xlu0 %503
    %v505 = vsub.f32 %v499, %v504
    %v506 = vmul.f32 %v505, %v485
    %v507 = vsel %vm476, %v506, 0.0
    %v508 = vadd.f32 %v501, %v507
    %s509 = scalar_lea.vmem [#allocation1], 8
    %510 = vst [vmem:[%s509] sm:$0xff] %v508
    %s511 = scalar_lea.vmem [#allocation0], 16
    %v512 = vld [vmem:[%s511] sm:$0xff]
    %s513 = scalar_lea.vmem [#allocation1], 16
    %v514 = vld [vmem:[%s513] sm:$0xff]
    %v515 = vmul.f32 %v514, %v478
    %516 = vadd.xlane.f32.xlu0 %v515
    %v517 = vpop.xlane.xlu0 %516
    %v518 = vsub.f32 %v512, %v517
    %v519 = vmul.f32 %v518, %v485
    %v520 = vsel %vm476, %v519, 0.0
    %v521 = vadd.f32 %v514, %v520
    %s522 = scalar_lea.vmem [#allocation1], 16
    %523 = vst [vmem:[%s522] sm:$0xff] %v521
    %s524 = scalar_lea.vmem [#allocation0], 24
    %v525 = vld [vmem:[%s524] sm:$0xff]
    %s526 = scalar_lea.vmem [#allocation1], 24
    %v527 = vld [vmem:[%s526] sm:$0xff]
    %v528 = vmul.f32 %v527, %v478
    %529 = vadd.xlane.f32.xlu0 %v528
    %v530 = vpop.xlane.xlu0 %529
    %v531 = vsub.f32 %v525, %v530
    %v532 = vmul.f32 %v531, %v485
    %v533 = vsel %vm476, %v532, 0.0
    %v534 = vadd.f32 %v527, %v533
    %s535 = scalar_lea.vmem [#allocation1], 24
    %536 = vst [vmem:[%s535] sm:$0xff] %v534
    %vm537 = vcmask 72768
    %s538 = scalar_lea.vmem [#allocation1], 8
    %v539 = vld [vmem:[%s538] ss:$0 sm:$0xff]
    %s540 = scalar_lea.vmem [#allocation0], 8
    %v541 = vld [vmem:[%s540] ss:$0 sm:$0xff]
    %v542 = vmul.f32 %v539, %v539
    %543 = vadd.xlane.f32.xlu0 %v542
    %v544 = vpop.xlane.xlu0 %543
    %v545 = vsub.f32 %v541, %v544
    %v546 = vrsqrt.pop %v545
    %s547 = scalar_lea.vmem [#allocation0], 8
    %v548 = vld [vmem:[%s547] sm:$0xff]
    %s549 = scalar_lea.vmem [#allocation1], 8
    %v550 = vld [vmem:[%s549] sm:$0xff]
    %v551 = vmul.f32 %v550, %v539
    %552 = vadd.xlane.f32.xlu0 %v551
    %v553 = vpop.xlane.xlu0 %552
    %v554 = vsub.f32 %v548, %v553
    %v555 = vmul.f32 %v554, %v546
    %v556 = vsel %vm537, %v555, 0.0
    %v557 = vadd.f32 %v550, %v556
    %s558 = scalar_lea.vmem [#allocation1], 8
    %559 = vst [vmem:[%s558] sm:$0xff] %v557
    %s560 = scalar_lea.vmem [#allocation0], 16
    %v561 = vld [vmem:[%s560] sm:$0xff]
    %s562 = scalar_lea.vmem [#allocation1], 16
    %v563 = vld [vmem:[%s562] sm:$0xff]
    %v564 = vmul.f32 %v563, %v539
    %565 = vadd.xlane.f32.xlu0 %v564
    %v566 = vpop.xlane.xlu0 %565
    %v567 = vsub.f32 %v561, %v566
    %v568 = vmul.f32 %v567, %v546
    %v569 = vsel %vm537, %v568, 0.0
    %v570 = vadd.f32 %v563, %v569
    %s571 = scalar_lea.vmem [#allocation1], 16
    %572 = vst [vmem:[%s571] sm:$0xff] %v570
    %s573 = scalar_lea.vmem [#allocation0], 24
    %v574 = vld [vmem:[%s573] sm:$0xff]
    %s575 = scalar_lea.vmem [#allocation1], 24
    %v576 = vld [vmem:[%s575] sm:$0xff]
    %v577 = vmul.f32 %v576, %v539
    %578 = vadd.xlane.f32.xlu0 %v577
    %v579 = vpop.xlane.xlu0 %578
    %v580 = vsub.f32 %v574, %v579
    %v581 = vmul.f32 %v580, %v546
    %v582 = vsel %vm537, %v581, 0.0
    %v583 = vadd.f32 %v576, %v582
    %s584 = scalar_lea.vmem [#allocation1], 24
    %585 = vst [vmem:[%s584] sm:$0xff] %v583
    %vm586 = vcmask 80968
    %s587 = scalar_lea.vmem [#allocation1], 9
    %v588 = vld [vmem:[%s587] ss:$0 sm:$0xff]
    %s589 = scalar_lea.vmem [#allocation0], 9
    %v590 = vld [vmem:[%s589] ss:$0 sm:$0xff]
    %v591 = vmul.f32 %v588, %v588
    %592 = vadd.xlane.f32.xlu0 %v591
    %v593 = vpop.xlane.xlu0 %592
    %v594 = vsub.f32 %v590, %v593
    %v595 = vrsqrt.pop %v594
    %s596 = scalar_lea.vmem [#allocation0], 8
    %v597 = vld [vmem:[%s596] sm:$0xff]
    %s598 = scalar_lea.vmem [#allocation1], 8
    %v599 = vld [vmem:[%s598] sm:$0xff]
    %v600 = vmul.f32 %v599, %v588
    %601 = vadd.xlane.f32.xlu0 %v600
    %v602 = vpop.xlane.xlu0 %601
    %v603 = vsub.f32 %v597, %v602
    %v604 = vmul.f32 %v603, %v595
    %vm605 = vcmask 1047553
    %vm606 = vmand %vm586, %vm605
    %v607 = vsel %vm606, %v604, 0.0
    %v608 = vadd.f32 %v599, %v607
    %s609 = scalar_lea.vmem [#allocation1], 8
    %610 = vst [vmem:[%s609] sm:$0xff] %v608
    %s611 = scalar_lea.vmem [#allocation0], 16
    %v612 = vld [vmem:[%s611] sm:$0xff]
    %s613 = scalar_lea.vmem [#allocation1], 16
    %v614 = vld [vmem:[%s613] sm:$0xff]
    %v615 = vmul.f32 %v614, %v588
    %616 = vadd.xlane.f32.xlu0 %v615
    %v617 = vpop.xlane.xlu0 %616
    %v618 = vsub.f32 %v612, %v617
    %v619 = vmul.f32 %v618, %v595
    %v620 = vsel %vm586, %v619, 0.0
    %v621 = vadd.f32 %v614, %v620
    %s622 = scalar_lea.vmem [#allocation1], 16
    %623 = vst [vmem:[%s622] sm:$0xff] %v621
    %s624 = scalar_lea.vmem [#allocation0], 24
    %v625 = vld [vmem:[%s624] sm:$0xff]
    %s626 = scalar_lea.vmem [#allocation1], 24
    %v627 = vld [vmem:[%s626] sm:$0xff]
    %v628 = vmul.f32 %v627, %v588
    %629 = vadd.xlane.f32.xlu0 %v628
    %v630 = vpop.xlane.xlu0 %629
    %v631 = vsub.f32 %v625, %v630
    %v632 = vmul.f32 %v631, %v595
    %v633 = vsel %vm586, %v632, 0.0
    %v634 = vadd.f32 %v627, %v633
    %s635 = scalar_lea.vmem [#allocation1], 24
    %636 = vst [vmem:[%s635] sm:$0xff] %v634
    %vm637 = vcmask 89168
    %s638 = scalar_lea.vmem [#allocation1], 10
    %v639 = vld [vmem:[%s638] ss:$0 sm:$0xff]
    %s640 = scalar_lea.vmem [#allocation0], 10
    %v641 = vld [vmem:[%s640] ss:$0 sm:$0xff]
    %v642 = vmul.f32 %v639, %v639
    %643 = vadd.xlane.f32.xlu0 %v642
    %v644 = vpop.xlane.xlu0 %643
    %v645 = vsub.f32 %v641, %v644
    %v646 = vrsqrt.pop %v645
    %s647 = scalar_lea.vmem [#allocation0], 8
    %v648 = vld [vmem:[%s647] sm:$0xff]
    %s649 = scalar_lea.vmem [#allocation1], 8
    %v650 = vld [vmem:[%s649] sm:$0xff]
    %v651 = vmul.f32 %v650, %v639
    %652 = vadd.xlane.f32.xlu0 %v651
    %v653 = vpop.xlane.xlu0 %652
    %v654 = vsub.f32 %v648, %v653
    %v655 = vmul.f32 %v654, %v646
    %vm656 = vcmask 1047554
    %vm657 = vmand %vm637, %vm656
    %v658 = vsel %vm657, %v655, 0.0
    %v659 = vadd.f32 %v650, %v658
    %s660 = scalar_lea.vmem [#allocation1], 8
    %661 = vst [vmem:[%s660] sm:$0xff] %v659
    %s662 = scalar_lea.vmem [#allocation0], 16
    %v663 = vld [vmem:[%s662] sm:$0xff]
    %s664 = scalar_lea.vmem [#allocation1], 16
    %v665 = vld [vmem:[%s664] sm:$0xff]
    %v666 = vmul.f32 %v665, %v639
    %667 = vadd.xlane.f32.xlu0 %v666
    %v668 = vpop.xlane.xlu0 %667
    %v669 = vsub.f32 %v663, %v668
    %v670 = vmul.f32 %v669, %v646
    %v671 = vsel %vm637, %v670, 0.0
    %v672 = vadd.f32 %v665, %v671
    %s673 = scalar_lea.vmem [#allocation1], 16
    %674 = vst [vmem:[%s673] sm:$0xff] %v672
    %s675 = scalar_lea.vmem [#allocation0], 24
    %v676 = vld [vmem:[%s675] sm:$0xff]
    %s677 = scalar_lea.vmem [#allocation1], 24
    %v678 = vld [vmem:[%s677] sm:$0xff]
    %v679 = vmul.f32 %v678, %v639
    %680 = vadd.xlane.f32.xlu0 %v679
    %v681 = vpop.xlane.xlu0 %680
    %v682 = vsub.f32 %v676, %v681
    %v683 = vmul.f32 %v682, %v646
    %v684 = vsel %vm637, %v683, 0.0
    %v685 = vadd.f32 %v678, %v684
    %s686 = scalar_lea.vmem [#allocation1], 24
    %687 = vst [vmem:[%s686] sm:$0xff] %v685
    %vm688 = vcmask 97368
    %s689 = scalar_lea.vmem [#allocation1], 11
    %v690 = vld [vmem:[%s689] ss:$0 sm:$0xff]
    %s691 = scalar_lea.vmem [#allocation0], 11
    %v692 = vld [vmem:[%s691] ss:$0 sm:$0xff]
    %v693 = vmul.f32 %v690, %v690
    %694 = vadd.xlane.f32.xlu0 %v693
    %v695 = vpop.xlane.xlu0 %694
    %v696 = vsub.f32 %v692, %v695
    %v697 = vrsqrt.pop %v696
    %s698 = scalar_lea.vmem [#allocation0], 8
    %v699 = vld [vmem:[%s698] sm:$0xff]
    %s700 = scalar_lea.vmem [#allocation1], 8
    %v701 = vld [vmem:[%s700] sm:$0xff]
    %v702 = vmul.f32 %v701, %v690
    %703 = vadd.xlane.f32.xlu0 %v702
    %v704 = vpop.xlane.xlu0 %703
    %v705 = vsub.f32 %v699, %v704
    %v706 = vmul.f32 %v705, %v697
    %vm707 = vcmask 1047555
    %vm708 = vmand %vm688, %vm707
    %v709 = vsel %vm708, %v706, 0.0
    %v710 = vadd.f32 %v701, %v709
    %s711 = scalar_lea.vmem [#allocation1], 8
    %712 = vst [vmem:[%s711] sm:$0xff] %v710
    %s713 = scalar_lea.vmem [#allocation0], 16
    %v714 = vld [vmem:[%s713] sm:$0xff]
    %s715 = scalar_lea.vmem [#allocation1], 16
    %v716 = vld [vmem:[%s715] sm:$0xff]
    %v717 = vmul.f32 %v716, %v690
    %718 = vadd.xlane.f32.xlu0 %v717
    %v719 = vpop.xlane.xlu0 %718
    %v720 = vsub.f32 %v714, %v719
    %v721 = vmul.f32 %v720, %v697
    %v722 = vsel %vm688, %v721, 0.0
    %v723 = vadd.f32 %v716, %v722
    %s724 = scalar_lea.vmem [#allocation1], 16
    %725 = vst [vmem:[%s724] sm:$0xff] %v723
    %s726 = scalar_lea.vmem [#allocation0], 24
    %v727 = vld [vmem:[%s726] sm:$0xff]
    %s728 = scalar_lea.vmem [#allocation1], 24
    %v729 = vld [vmem:[%s728] sm:$0xff]
    %v730 = vmul.f32 %v729, %v690
    %731 = vadd.xlane.f32.xlu0 %v730
    %v732 = vpop.xlane.xlu0 %731
    %v733 = vsub.f32 %v727, %v732
    %v734 = vmul.f32 %v733, %v697
    %v735 = vsel %vm688, %v734, 0.0
    %v736 = vadd.f32 %v729, %v735
    %s737 = scalar_lea.vmem [#allocation1], 24
    %738 = vst [vmem:[%s737] sm:$0xff] %v736
    %vm739 = vcmask 105568
    %s740 = scalar_lea.vmem [#allocation1], 12
    %v741 = vld [vmem:[%s740] ss:$0 sm:$0xff]
    %s742 = scalar_lea.vmem [#allocation0], 12
    %v743 = vld [vmem:[%s742] ss:$0 sm:$0xff]
    %v744 = vmul.f32 %v741, %v741
    %745 = vadd.xlane.f32.xlu0 %v744
    %v746 = vpop.xlane.xlu0 %745
    %v747 = vsub.f32 %v743, %v746
    %v748 = vrsqrt.pop %v747
    %s749 = scalar_lea.vmem [#allocation0], 8
    %v750 = vld [vmem:[%s749] sm:$0xff]
    %s751 = scalar_lea.vmem [#allocation1], 8
    %v752 = vld [vmem:[%s751] sm:$0xff]
    %v753 = vmul.f32 %v752, %v741
    %754 = vadd.xlane.f32.xlu0 %v753
    %v755 = vpop.xlane.xlu0 %754
    %v756 = vsub.f32 %v750, %v755
    %v757 = vmul.f32 %v756, %v748
    %vm758 = vcmask 1047556
    %vm759 = vmand %vm739, %vm758
    %v760 = vsel %vm759, %v757, 0.0
    %v761 = vadd.f32 %v752, %v760
    %s762 = scalar_lea.vmem [#allocation1], 8
    %763 = vst [vmem:[%s762] sm:$0xff] %v761
    %s764 = scalar_lea.vmem [#allocation0], 16
    %v765 = vld [vmem:[%s764] sm:$0xff]
    %s766 = scalar_lea.vmem [#allocation1], 16
    %v767 = vld [vmem:[%s766] sm:$0xff]
    %v768 = vmul.f32 %v767, %v741
    %769 = vadd.xlane.f32.xlu0 %v768
    %v770 = vpop.xlane.xlu0 %769
    %v771 = vsub.f32 %v765, %v770
    %v772 = vmul.f32 %v771, %v748
    %v773 = vsel %vm739, %v772, 0.0
    %v774 = vadd.f32 %v767, %v773
    %s775 = scalar_lea.vmem [#allocation1], 16
    %776 = vst [vmem:[%s775] sm:$0xff] %v774
    %s777 = scalar_lea.vmem [#allocation0], 24
    %v778 = vld [vmem:[%s777] sm:$0xff]
    %s779 = scalar_lea.vmem [#allocation1], 24
    %v780 = vld [vmem:[%s779] sm:$0xff]
    %v781 = vmul.f32 %v780, %v741
    %782 = vadd.xlane.f32.xlu0 %v781
    %v783 = vpop.xlane.xlu0 %782
    %v784 = vsub.f32 %v778, %v783
    %v785 = vmul.f32 %v784, %v748
    %v786 = vsel %vm739, %v785, 0.0
    %v787 = vadd.f32 %v780, %v786
    %s788 = scalar_lea.vmem [#allocation1], 24
    %789 = vst [vmem:[%s788] sm:$0xff] %v787
    %vm790 = vcmask 113768
    %s791 = scalar_lea.vmem [#allocation1], 13
    %v792 = vld [vmem:[%s791] ss:$0 sm:$0xff]
    %s793 = scalar_lea.vmem [#allocation0], 13
    %v794 = vld [vmem:[%s793] ss:$0 sm:$0xff]
    %v795 = vmul.f32 %v792, %v792
    %796 = vadd.xlane.f32.xlu0 %v795
    %v797 = vpop.xlane.xlu0 %796
    %v798 = vsub.f32 %v794, %v797
    %v799 = vrsqrt.pop %v798
    %s800 = scalar_lea.vmem [#allocation0], 8
    %v801 = vld [vmem:[%s800] sm:$0xff]
    %s802 = scalar_lea.vmem [#allocation1], 8
    %v803 = vld [vmem:[%s802] sm:$0xff]
    %v804 = vmul.f32 %v803, %v792
    %805 = vadd.xlane.f32.xlu0 %v804
    %v806 = vpop.xlane.xlu0 %805
    %v807 = vsub.f32 %v801, %v806
    %v808 = vmul.f32 %v807, %v799
    %vm809 = vcmask 1047557
    %vm810 = vmand %vm790, %vm809
    %v811 = vsel %vm810, %v808, 0.0
    %v812 = vadd.f32 %v803, %v811
    %s813 = scalar_lea.vmem [#allocation1], 8
    %814 = vst [vmem:[%s813] sm:$0xff] %v812
    %s815 = scalar_lea.vmem [#allocation0], 16
    %v816 = vld [vmem:[%s815] sm:$0xff]
    %s817 = scalar_lea.vmem [#allocation1], 16
    %v818 = vld [vmem:[%s817] sm:$0xff]
    %v819 = vmul.f32 %v818, %v792
    %820 = vadd.xlane.f32.xlu0 %v819
    %v821 = vpop.xlane.xlu0 %820
    %v822 = vsub.f32 %v816, %v821
    %v823 = vmul.f32 %v822, %v799
    %v824 = vsel %vm790, %v823, 0.0
    %v825 = vadd.f32 %v818, %v824
    %s826 = scalar_lea.vmem [#allocation1], 16
    %827 = vst [vmem:[%s826] sm:$0xff] %v825
    %s828 = scalar_lea.vmem [#allocation0], 24
    %v829 = vld [vmem:[%s828] sm:$0xff]
    %s830 = scalar_lea.vmem [#allocation1], 24
    %v831 = vld [vmem:[%s830] sm:$0xff]
    %v832 = vmul.f32 %v831, %v792
    %833 = vadd.xlane.f32.xlu0 %v832
    %v834 = vpop.xlane.xlu0 %833
    %v835 = vsub.f32 %v829, %v834
    %v836 = vmul.f32 %v835, %v799
    %v837 = vsel %vm790, %v836, 0.0
    %v838 = vadd.f32 %v831, %v837
    %s839 = scalar_lea.vmem [#allocation1], 24
    %840 = vst [vmem:[%s839] sm:$0xff] %v838
    %vm841 = vcmask 121968
    %s842 = scalar_lea.vmem [#allocation1], 14
    %v843 = vld [vmem:[%s842] ss:$0 sm:$0xff]
    %s844 = scalar_lea.vmem [#allocation0], 14
    %v845 = vld [vmem:[%s844] ss:$0 sm:$0xff]
    %v846 = vmul.f32 %v843, %v843
    %847 = vadd.xlane.f32.xlu0 %v846
    %v848 = vpop.xlane.xlu0 %847
    %v849 = vsub.f32 %v845, %v848
    %v850 = vrsqrt.pop %v849
    %s851 = scalar_lea.vmem [#allocation0], 8
    %v852 = vld [vmem:[%s851] sm:$0xff]
    %s853 = scalar_lea.vmem [#allocation1], 8
    %v854 = vld [vmem:[%s853] sm:$0xff]
    %v855 = vmul.f32 %v854, %v843
    %856 = vadd.xlane.f32.xlu0 %v855
    %v857 = vpop.xlane.xlu0 %856
    %v858 = vsub.f32 %v852, %v857
    %v859 = vmul.f32 %v858, %v850
    %vm860 = vcmask 1047558
    %vm861 = vmand %vm841, %vm860
    %v862 = vsel %vm861, %v859, 0.0
    %v863 = vadd.f32 %v854, %v862
    %s864 = scalar_lea.vmem [#allocation1], 8
    %865 = vst [vmem:[%s864] sm:$0xff] %v863
    %s866 = scalar_lea.vmem [#allocation0], 16
    %v867 = vld [vmem:[%s866] sm:$0xff]
    %s868 = scalar_lea.vmem [#allocation1], 16
    %v869 = vld [vmem:[%s868] sm:$0xff]
    %v870 = vmul.f32 %v869, %v843
    %871 = vadd.xlane.f32.xlu0 %v870
    %v872 = vpop.xlane.xlu0 %871
    %v873 = vsub.f32 %v867, %v872
    %v874 = vmul.f32 %v873, %v850
    %v875 = vsel %vm841, %v874, 0.0
    %v876 = vadd.f32 %v869, %v875
    %s877 = scalar_lea.vmem [#allocation1], 16
    %878 = vst [vmem:[%s877] sm:$0xff] %v876
    %s879 = scalar_lea.vmem [#allocation0], 24
    %v880 = vld [vmem:[%s879] sm:$0xff]
    %s881 = scalar_lea.vmem [#allocation1], 24
    %v882 = vld [vmem:[%s881] sm:$0xff]
    %v883 = vmul.f32 %v882, %v843
    %884 = vadd.xlane.f32.xlu0 %v883
    %v885 = vpop.xlane.xlu0 %884
    %v886 = vsub.f32 %v880, %v885
    %v887 = vmul.f32 %v886, %v850
    %v888 = vsel %vm841, %v887, 0.0
    %v889 = vadd.f32 %v882, %v888
    %s890 = scalar_lea.vmem [#allocation1], 24
    %891 = vst [vmem:[%s890] sm:$0xff] %v889
    %vm892 = vcmask 130168
    %s893 = scalar_lea.vmem [#allocation1], 15
    %v894 = vld [vmem:[%s893] ss:$0 sm:$0xff]
    %s895 = scalar_lea.vmem [#allocation0], 15
    %v896 = vld [vmem:[%s895] ss:$0 sm:$0xff]
    %v897 = vmul.f32 %v894, %v894
    %898 = vadd.xlane.f32.xlu0 %v897
    %v899 = vpop.xlane.xlu0 %898
    %v900 = vsub.f32 %v896, %v899
    %v901 = vrsqrt.pop %v900
    %s902 = scalar_lea.vmem [#allocation0], 8
    %v903 = vld [vmem:[%s902] sm:$0xff]
    %s904 = scalar_lea.vmem [#allocation1], 8
    %v905 = vld [vmem:[%s904] sm:$0xff]
    %v906 = vmul.f32 %v905, %v894
    %907 = vadd.xlane.f32.xlu0 %v906
    %v908 = vpop.xlane.xlu0 %907
    %v909 = vsub.f32 %v903, %v908
    %v910 = vmul.f32 %v909, %v901
    %vm911 = vcmask 1047559
    %vm912 = vmand %vm892, %vm911
    %v913 = vsel %vm912, %v910, 0.0
    %v914 = vadd.f32 %v905, %v913
    %s915 = scalar_lea.vmem [#allocation1], 8
    %916 = vst [vmem:[%s915] sm:$0xff] %v914
    %s917 = scalar_lea.vmem [#allocation0], 16
    %v918 = vld [vmem:[%s917] sm:$0xff]
    %s919 = scalar_lea.vmem [#allocation1], 16
    %v920 = vld [vmem:[%s919] sm:$0xff]
    %v921 = vmul.f32 %v920, %v894
    %922 = vadd.xlane.f32.xlu0 %v921
    %v923 = vpop.xlane.xlu0 %922
    %v924 = vsub.f32 %v918, %v923
    %v925 = vmul.f32 %v924, %v901
    %v926 = vsel %vm892, %v925, 0.0
    %v927 = vadd.f32 %v920, %v926
    %s928 = scalar_lea.vmem [#allocation1], 16
    %929 = vst [vmem:[%s928] sm:$0xff] %v927
    %s930 = scalar_lea.vmem [#allocation0], 24
    %v931 = vld [vmem:[%s930] sm:$0xff]
    %s932 = scalar_lea.vmem [#allocation1], 24
    %v933 = vld [vmem:[%s932] sm:$0xff]
    %v934 = vmul.f32 %v933, %v894
    %935 = vadd.xlane.f32.xlu0 %v934
    %v936 = vpop.xlane.xlu0 %935
    %v937 = vsub.f32 %v931, %v936
    %v938 = vmul.f32 %v937, %v901
    %v939 = vsel %vm892, %v938, 0.0
    %v940 = vadd.f32 %v933, %v939
    %s941 = scalar_lea.vmem [#allocation1], 24
    %942 = vst [vmem:[%s941] sm:$0xff] %v940
    %vm943 = vcmask 138368
    %s944 = scalar_lea.vmem [#allocation1], 16
    %v945 = vld [vmem:[%s944] ss:$0 sm:$0xff]
    %s946 = scalar_lea.vmem [#allocation0], 16
    %v947 = vld [vmem:[%s946] ss:$0 sm:$0xff]
    %v948 = vmul.f32 %v945, %v945
    %949 = vadd.xlane.f32.xlu0 %v948
    %v950 = vpop.xlane.xlu0 %949
    %v951 = vsub.f32 %v947, %v950
    %v952 = vrsqrt.pop %v951
    %s953 = scalar_lea.vmem [#allocation0], 16
    %v954 = vld [vmem:[%s953] sm:$0xff]
    %s955 = scalar_lea.vmem [#allocation1], 16
    %v956 = vld [vmem:[%s955] sm:$0xff]
    %v957 = vmul.f32 %v956, %v945
    %958 = vadd.xlane.f32.xlu0 %v957
    %v959 = vpop.xlane.xlu0 %958
    %v960 = vsub.f32 %v954, %v959
    %v961 = vmul.f32 %v960, %v952
    %v962 = vsel %vm943, %v961, 0.0
    %v963 = vadd.f32 %v956, %v962
    %s964 = scalar_lea.vmem [#allocation1], 16
    %965 = vst [vmem:[%s964] sm:$0xff] %v963
    %s966 = scalar_lea.vmem [#allocation0], 24
    %v967 = vld [vmem:[%s966] sm:$0xff]
    %s968 = scalar_lea.vmem [#allocation1], 24
    %v969 = vld [vmem:[%s968] sm:$0xff]
    %v970 = vmul.f32 %v969, %v945
    %971 = vadd.xlane.f32.xlu0 %v970
    %v972 = vpop.xlane.xlu0 %971
    %v973 = vsub.f32 %v967, %v972
    %v974 = vmul.f32 %v973, %v952
    %v975 = vsel %vm943, %v974, 0.0
    %v976 = vadd.f32 %v969, %v975
    %s977 = scalar_lea.vmem [#allocation1], 24
    %978 = vst [vmem:[%s977] sm:$0xff] %v976
    %vm979 = vcmask 146568
    %s980 = scalar_lea.vmem [#allocation1], 17
    %v981 = vld [vmem:[%s980] ss:$0 sm:$0xff]
    %s982 = scalar_lea.vmem [#allocation0], 17
    %v983 = vld [vmem:[%s982] ss:$0 sm:$0xff]
    %v984 = vmul.f32 %v981, %v981
    %985 = vadd.xlane.f32.xlu0 %v984
    %v986 = vpop.xlane.xlu0 %985
    %v987 = vsub.f32 %v983, %v986
    %v988 = vrsqrt.pop %v987
    %s989 = scalar_lea.vmem [#allocation0], 16
    %v990 = vld [vmem:[%s989] sm:$0xff]
    %s991 = scalar_lea.vmem [#allocation1], 16
    %v992 = vld [vmem:[%s991] sm:$0xff]
    %v993 = vmul.f32 %v992, %v981
    %994 = vadd.xlane.f32.xlu0 %v993
    %v995 = vpop.xlane.xlu0 %994
    %v996 = vsub.f32 %v990, %v995
    %v997 = vmul.f32 %v996, %v988
    %vm998 = vcmask 1047553
    %vm999 = vmand %vm979, %vm998
    %v1000 = vsel %vm999, %v997, 0.0
    %v1001 = vadd.f32 %v992, %v1000
    %s1002 = scalar_lea.vmem [#allocation1], 16
    %1003 = vst [vmem:[%s1002] sm:$0xff] %v1001
    %s1004 = scalar_lea.vmem [#allocation0], 24
    %v1005 = vld [vmem:[%s1004] sm:$0xff]
    %s1006 = scalar_lea.vmem [#allocation1], 24
    %v1007 = vld [vmem:[%s1006] sm:$0xff]
    %v1008 = vmul.f32 %v1007, %v981
    %1009 = vadd.xlane.f32.xlu0 %v1008
    %v1010 = vpop.xlane.xlu0 %1009
    %v1011 = vsub.f32 %v1005, %v1010
    %v1012 = vmul.f32 %v1011, %v988
    %v1013 = vsel %vm979, %v1012, 0.0
    %v1014 = vadd.f32 %v1007, %v1013
    %s1015 = scalar_lea.vmem [#allocation1], 24
    %1016 = vst [vmem:[%s1015] sm:$0xff] %v1014
    %vm1017 = vcmask 154768
    %s1018 = scalar_lea.vmem [#allocation1], 18
    %v1019 = vld [vmem:[%s1018] ss:$0 sm:$0xff]
    %s1020 = scalar_lea.vmem [#allocation0], 18
    %v1021 = vld [vmem:[%s1020] ss:$0 sm:$0xff]
    %v1022 = vmul.f32 %v1019, %v1019
    %1023 = vadd.xlane.f32.xlu0 %v1022
    %v1024 = vpop.xlane.xlu0 %1023
    %v1025 = vsub.f32 %v1021, %v1024
    %v1026 = vrsqrt.pop %v1025
    %s1027 = scalar_lea.vmem [#allocation0], 16
    %v1028 = vld [vmem:[%s1027] sm:$0xff]
    %s1029 = scalar_lea.vmem [#allocation1], 16
    %v1030 = vld [vmem:[%s1029] sm:$0xff]
    %v1031 = vmul.f32 %v1030, %v1019
    %1032 = vadd.xlane.f32.xlu0 %v1031
    %v1033 = vpop.xlane.xlu0 %1032
    %v1034 = vsub.f32 %v1028, %v1033
    %v1035 = vmul.f32 %v1034, %v1026
    %vm1036 = vcmask 1047554
    %vm1037 = vmand %vm1017, %vm1036
    %v1038 = vsel %vm1037, %v1035, 0.0
    %v1039 = vadd.f32 %v1030, %v1038
    %s1040 = scalar_lea.vmem [#allocation1], 16
    %1041 = vst [vmem:[%s1040] sm:$0xff] %v1039
    %s1042 = scalar_lea.vmem [#allocation0], 24
    %v1043 = vld [vmem:[%s1042] sm:$0xff]
    %s1044 = scalar_lea.vmem [#allocation1], 24
    %v1045 = vld [vmem:[%s1044] sm:$0xff]
    %v1046 = vmul.f32 %v1045, %v1019
    %1047 = vadd.xlane.f32.xlu0 %v1046
    %v1048 = vpop.xlane.xlu0 %1047
    %v1049 = vsub.f32 %v1043, %v1048
    %v1050 = vmul.f32 %v1049, %v1026
    %v1051 = vsel %vm1017, %v1050, 0.0
    %v1052 = vadd.f32 %v1045, %v1051
    %s1053 = scalar_lea.vmem [#allocation1], 24
    %1054 = vst [vmem:[%s1053] sm:$0xff] %v1052
    %vm1055 = vcmask 162968
    %s1056 = scalar_lea.vmem [#allocation1], 19
    %v1057 = vld [vmem:[%s1056] ss:$0 sm:$0xff]
    %s1058 = scalar_lea.vmem [#allocation0], 19
    %v1059 = vld [vmem:[%s1058] ss:$0 sm:$0xff]
    %v1060 = vmul.f32 %v1057, %v1057
    %1061 = vadd.xlane.f32.xlu0 %v1060
    %v1062 = vpop.xlane.xlu0 %1061
    %v1063 = vsub.f32 %v1059, %v1062
    %v1064 = vrsqrt.pop %v1063
    %s1065 = scalar_lea.vmem [#allocation0], 16
    %v1066 = vld [vmem:[%s1065] sm:$0xff]
    %s1067 = scalar_lea.vmem [#allocation1], 16
    %v1068 = vld [vmem:[%s1067] sm:$0xff]
    %v1069 = vmul.f32 %v1068, %v1057
    %1070 = vadd.xlane.f32.xlu0 %v1069
    %v1071 = vpop.xlane.xlu0 %1070
    %v1072 = vsub.f32 %v1066, %v1071
    %v1073 = vmul.f32 %v1072, %v1064
    %vm1074 = vcmask 1047555
    %vm1075 = vmand %vm1055, %vm1074
    %v1076 = vsel %vm1075, %v1073, 0.0
    %v1077 = vadd.f32 %v1068, %v1076
    %s1078 = scalar_lea.vmem [#allocation1], 16
    %1079 = vst [vmem:[%s1078] sm:$0xff] %v1077
    %s1080 = scalar_lea.vmem [#allocation0], 24
    %v1081 = vld [vmem:[%s1080] sm:$0xff]
    %s1082 = scalar_lea.vmem [#allocation1], 24
    %v1083 = vld [vmem:[%s1082] sm:$0xff]
    %v1084 = vmul.f32 %v1083, %v1057
    %1085 = vadd.xlane.f32.xlu0 %v1084
    %v1086 = vpop.xlane.xlu0 %1085
    %v1087 = vsub.f32 %v1081, %v1086
    %v1088 = vmul.f32 %v1087, %v1064
    %v1089 = vsel %vm1055, %v1088, 0.0
    %v1090 = vadd.f32 %v1083, %v1089
    %s1091 = scalar_lea.vmem [#allocation1], 24
    %1092 = vst [vmem:[%s1091] sm:$0xff] %v1090
    %vm1093 = vcmask 171168
    %s1094 = scalar_lea.vmem [#allocation1], 20
    %v1095 = vld [vmem:[%s1094] ss:$0 sm:$0xff]
    %s1096 = scalar_lea.vmem [#allocation0], 20
    %v1097 = vld [vmem:[%s1096] ss:$0 sm:$0xff]
    %v1098 = vmul.f32 %v1095, %v1095
    %1099 = vadd.xlane.f32.xlu0 %v1098
    %v1100 = vpop.xlane.xlu0 %1099
    %v1101 = vsub.f32 %v1097, %v1100
    %v1102 = vrsqrt.pop %v1101
    %s1103 = scalar_lea.vmem [#allocation0], 16
    %v1104 = vld [vmem:[%s1103] sm:$0xff]
    %s1105 = scalar_lea.vmem [#allocation1], 16
    %v1106 = vld [vmem:[%s1105] sm:$0xff]
    %v1107 = vmul.f32 %v1106, %v1095
    %1108 = vadd.xlane.f32.xlu0 %v1107
    %v1109 = vpop.xlane.xlu0 %1108
    %v1110 = vsub.f32 %v1104, %v1109
    %v1111 = vmul.f32 %v1110, %v1102
    %vm1112 = vcmask 1047556
    %vm1113 = vmand %vm1093, %vm1112
    %v1114 = vsel %vm1113, %v1111, 0.0
    %v1115 = vadd.f32 %v1106, %v1114
    %s1116 = scalar_lea.vmem [#allocation1], 16
    %1117 = vst [vmem:[%s1116] sm:$0xff] %v1115
    %s1118 = scalar_lea.vmem [#allocation0], 24
    %v1119 = vld [vmem:[%s1118] sm:$0xff]
    %s1120 = scalar_lea.vmem [#allocation1], 24
    %v1121 = vld [vmem:[%s1120] sm:$0xff]
    %v1122 = vmul.f32 %v1121, %v1095
    %1123 = vadd.xlane.f32.xlu0 %v1122
    %v1124 = vpop.xlane.xlu0 %1123
    %v1125 = vsub.f32 %v1119, %v1124
    %v1126 = vmul.f32 %v1125, %v1102
    %v1127 = vsel %vm1093, %v1126, 0.0
    %v1128 = vadd.f32 %v1121, %v1127
    %s1129 = scalar_lea.vmem [#allocation1], 24
    %1130 = vst [vmem:[%s1129] sm:$0xff] %v1128
    %vm1131 = vcmask 179368
    %s1132 = scalar_lea.vmem [#allocation1], 21
    %v1133 = vld [vmem:[%s1132] ss:$0 sm:$0xff]
    %s1134 = scalar_lea.vmem [#allocation0], 21
    %v1135 = vld [vmem:[%s1134] ss:$0 sm:$0xff]
    %v1136 = vmul.f32 %v1133, %v1133
    %1137 = vadd.xlane.f32.xlu0 %v1136
    %v1138 = vpop.xlane.xlu0 %1137
    %v1139 = vsub.f32 %v1135, %v1138
    %v1140 = vrsqrt.pop %v1139
    %s1141 = scalar_lea.vmem [#allocation0], 16
    %v1142 = vld [vmem:[%s1141] sm:$0xff]
    %s1143 = scalar_lea.vmem [#allocation1], 16
    %v1144 = vld [vmem:[%s1143] sm:$0xff]
    %v1145 = vmul.f32 %v1144, %v1133
    %1146 = vadd.xlane.f32.xlu0 %v1145
    %v1147 = vpop.xlane.xlu0 %1146
    %v1148 = vsub.f32 %v1142, %v1147
    %v1149 = vmul.f32 %v1148, %v1140
    %vm1150 = vcmask 1047557
    %vm1151 = vmand %vm1131, %vm1150
    %v1152 = vsel %vm1151, %v1149, 0.0
    %v1153 = vadd.f32 %v1144, %v1152
    %s1154 = scalar_lea.vmem [#allocation1], 16
    %1155 = vst [vmem:[%s1154] sm:$0xff] %v1153
    %s1156 = scalar_lea.vmem [#allocation0], 24
    %v1157 = vld [vmem:[%s1156] sm:$0xff]
    %s1158 = scalar_lea.vmem [#allocation1], 24
    %v1159 = vld [vmem:[%s1158] sm:$0xff]
    %v1160 = vmul.f32 %v1159, %v1133
    %1161 = vadd.xlane.f32.xlu0 %v1160
    %v1162 = vpop.xlane.xlu0 %1161
    %v1163 = vsub.f32 %v1157, %v1162
    %v1164 = vmul.f32 %v1163, %v1140
    %v1165 = vsel %vm1131, %v1164, 0.0
    %v1166 = vadd.f32 %v1159, %v1165
    %s1167 = scalar_lea.vmem [#allocation1], 24
    %1168 = vst [vmem:[%s1167] sm:$0xff] %v1166
    %vm1169 = vcmask 187568
    %s1170 = scalar_lea.vmem [#allocation1], 22
    %v1171 = vld [vmem:[%s1170] ss:$0 sm:$0xff]
    %s1172 = scalar_lea.vmem [#allocation0], 22
    %v1173 = vld [vmem:[%s1172] ss:$0 sm:$0xff]
    %v1174 = vmul.f32 %v1171, %v1171
    %1175 = vadd.xlane.f32.xlu0 %v1174
    %v1176 = vpop.xlane.xlu0 %1175
    %v1177 = vsub.f32 %v1173, %v1176
    %v1178 = vrsqrt.pop %v1177
    %s1179 = scalar_lea.vmem [#allocation0], 16
    %v1180 = vld [vmem:[%s1179] sm:$0xff]
    %s1181 = scalar_lea.vmem [#allocation1], 16
    %v1182 = vld [vmem:[%s1181] sm:$0xff]
    %v1183 = vmul.f32 %v1182, %v1171
    %1184 = vadd.xlane.f32.xlu0 %v1183
    %v1185 = vpop.xlane.xlu0 %1184
    %v1186 = vsub.f32 %v1180, %v1185
    %v1187 = vmul.f32 %v1186, %v1178
    %vm1188 = vcmask 1047558
    %vm1189 = vmand %vm1169, %vm1188
    %v1190 = vsel %vm1189, %v1187, 0.0
    %v1191 = vadd.f32 %v1182, %v1190
    %s1192 = scalar_lea.vmem [#allocation1], 16
    %1193 = vst [vmem:[%s1192] sm:$0xff] %v1191
    %s1194 = scalar_lea.vmem [#allocation0], 24
    %v1195 = vld [vmem:[%s1194] sm:$0xff]
    %s1196 = scalar_lea.vmem [#allocation1], 24
    %v1197 = vld [vmem:[%s1196] sm:$0xff]
    %v1198 = vmul.f32 %v1197, %v1171
    %1199 = vadd.xlane.f32.xlu0 %v1198
    %v1200 = vpop.xlane.xlu0 %1199
    %v1201 = vsub.f32 %v1195, %v1200
    %v1202 = vmul.f32 %v1201, %v1178
    %v1203 = vsel %vm1169, %v1202, 0.0
    %v1204 = vadd.f32 %v1197, %v1203
    %s1205 = scalar_lea.vmem [#allocation1], 24
    %1206 = vst [vmem:[%s1205] sm:$0xff] %v1204
    %vm1207 = vcmask 195768
    %s1208 = scalar_lea.vmem [#allocation1], 23
    %v1209 = vld [vmem:[%s1208] ss:$0 sm:$0xff]
    %s1210 = scalar_lea.vmem [#allocation0], 23
    %v1211 = vld [vmem:[%s1210] ss:$0 sm:$0xff]
    %v1212 = vmul.f32 %v1209, %v1209
    %1213 = vadd.xlane.f32.xlu0 %v1212
    %v1214 = vpop.xlane.xlu0 %1213
    %v1215 = vsub.f32 %v1211, %v1214
    %v1216 = vrsqrt.pop %v1215
    %s1217 = scalar_lea.vmem [#allocation0], 16
    %v1218 = vld [vmem:[%s1217] sm:$0xff]
    %s1219 = scalar_lea.vmem [#allocation1], 16
    %v1220 = vld [vmem:[%s1219] sm:$0xff]
    %v1221 = vmul.f32 %v1220, %v1209
    %1222 = vadd.xlane.f32.xlu0 %v1221
    %v1223 = vpop.xlane.xlu0 %1222
    %v1224 = vsub.f32 %v1218, %v1223
    %v1225 = vmul.f32 %v1224, %v1216
    %vm1226 = vcmask 1047559
    %vm1227 = vmand %vm1207, %vm1226
    %v1228 = vsel %vm1227, %v1225, 0.0
    %v1229 = vadd.f32 %v1220, %v1228
    %s1230 = scalar_lea.vmem [#allocation1], 16
    %1231 = vst [vmem:[%s1230] sm:$0xff] %v1229
    %s1232 = scalar_lea.vmem [#allocation0], 24
    %v1233 = vld [vmem:[%s1232] sm:$0xff]
    %s1234 = scalar_lea.vmem [#allocation1], 24
    %v1235 = vld [vmem:[%s1234] sm:$0xff]
    %v1236 = vmul.f32 %v1235, %v1209
    %1237 = vadd.xlane.f32.xlu0 %v1236
    %v1238 = vpop.xlane.xlu0 %1237
    %v1239 = vsub.f32 %v1233, %v1238
    %v1240 = vmul.f32 %v1239, %v1216
    %v1241 = vsel %vm1207, %v1240, 0.0
    %v1242 = vadd.f32 %v1235, %v1241
    %s1243 = scalar_lea.vmem [#allocation1], 24
    %1244 = vst [vmem:[%s1243] sm:$0xff] %v1242
    %vm1245 = vcmask 203968
    %s1246 = scalar_lea.vmem [#allocation1], 24
    %v1247 = vld [vmem:[%s1246] ss:$0 sm:$0xff]
    %s1248 = scalar_lea.vmem [#allocation0], 24
    %v1249 = vld [vmem:[%s1248] ss:$0 sm:$0xff]
    %v1250 = vmul.f32 %v1247, %v1247
    %1251 = vadd.xlane.f32.xlu0 %v1250
    %v1252 = vpop.xlane.xlu0 %1251
    %v1253 = vsub.f32 %v1249, %v1252
    %v1254 = vrsqrt.pop %v1253
    %s1255 = scalar_lea.vmem [#allocation0], 24
    %v1256 = vld [vmem:[%s1255] sm:$0xff]
    %s1257 = scalar_lea.vmem [#allocation1], 24
    %v1258 = vld [vmem:[%s1257] sm:$0xff]
    %v1259 = vmul.f32 %v1258, %v1247
    %1260 = vadd.xlane.f32.xlu0 %v1259
    %v1261 = vpop.xlane.xlu0 %1260
    %v1262 = vsub.f32 %v1256, %v1261
    %v1263 = vmul.f32 %v1262, %v1254
    %v1264 = vsel %vm1245, %v1263, 0.0
    %v1265 = vadd.f32 %v1258, %v1264
    %s1266 = scalar_lea.vmem [#allocation1], 24
    %1267 = vst [vmem:[%s1266] sm:$0xff] %v1265
    %vm1268 = vcmask 212168
    %s1269 = scalar_lea.vmem [#allocation1], 25
    %v1270 = vld [vmem:[%s1269] ss:$0 sm:$0xff]
    %s1271 = scalar_lea.vmem [#allocation0], 25
    %v1272 = vld [vmem:[%s1271] ss:$0 sm:$0xff]
    %v1273 = vmul.f32 %v1270, %v1270
    %1274 = vadd.xlane.f32.xlu0 %v1273
    %v1275 = vpop.xlane.xlu0 %1274
    %v1276 = vsub.f32 %v1272, %v1275
    %v1277 = vrsqrt.pop %v1276
    %s1278 = scalar_lea.vmem [#allocation0], 24
    %v1279 = vld [vmem:[%s1278] sm:$0xff]
    %s1280 = scalar_lea.vmem [#allocation1], 24
    %v1281 = vld [vmem:[%s1280] sm:$0xff]
    %v1282 = vmul.f32 %v1281, %v1270
    %1283 = vadd.xlane.f32.xlu0 %v1282
    %v1284 = vpop.xlane.xlu0 %1283
    %v1285 = vsub.f32 %v1279, %v1284
    %v1286 = vmul.f32 %v1285, %v1277
    %vm1287 = vcmask 1047553
    %vm1288 = vmand %vm1268, %vm1287
    %v1289 = vsel %vm1288, %v1286, 0.0
    %v1290 = vadd.f32 %v1281, %v1289
    %s1291 = scalar_lea.vmem [#allocation1], 24
    %1292 = vst [vmem:[%s1291] sm:$0xff] %v1290
    %vm1293 = vcmask 220368
    %s1294 = scalar_lea.vmem [#allocation1], 26
    %v1295 = vld [vmem:[%s1294] ss:$0 sm:$0xff]
    %s1296 = scalar_lea.vmem [#allocation0], 26
    %v1297 = vld [vmem:[%s1296] ss:$0 sm:$0xff]
    %v1298 = vmul.f32 %v1295, %v1295
    %1299 = vadd.xlane.f32.xlu0 %v1298
    %v1300 = vpop.xlane.xlu0 %1299
    %v1301 = vsub.f32 %v1297, %v1300
    %v1302 = vrsqrt.pop %v1301
    %s1303 = scalar_lea.vmem [#allocation0], 24
    %v1304 = vld [vmem:[%s1303] sm:$0xff]
    %s1305 = scalar_lea.vmem [#allocation1], 24
    %v1306 = vld [vmem:[%s1305] sm:$0xff]
    %v1307 = vmul.f32 %v1306, %v1295
    %1308 = vadd.xlane.f32.xlu0 %v1307
    %v1309 = vpop.xlane.xlu0 %1308
    %v1310 = vsub.f32 %v1304, %v1309
    %v1311 = vmul.f32 %v1310, %v1302
    %vm1312 = vcmask 1047554
    %vm1313 = vmand %vm1293, %vm1312
    %v1314 = vsel %vm1313, %v1311, 0.0
    %v1315 = vadd.f32 %v1306, %v1314
    %s1316 = scalar_lea.vmem [#allocation1], 24
    %1317 = vst [vmem:[%s1316] sm:$0xff] %v1315
    %vm1318 = vcmask 228568
    %s1319 = scalar_lea.vmem [#allocation1], 27
    %v1320 = vld [vmem:[%s1319] ss:$0 sm:$0xff]
    %s1321 = scalar_lea.vmem [#allocation0], 27
    %v1322 = vld [vmem:[%s1321] ss:$0 sm:$0xff]
    %v1323 = vmul.f32 %v1320, %v1320
    %1324 = vadd.xlane.f32.xlu0 %v1323
    %v1325 = vpop.xlane.xlu0 %1324
    %v1326 = vsub.f32 %v1322, %v1325
    %v1327 = vrsqrt.pop %v1326
    %s1328 = scalar_lea.vmem [#allocation0], 24
    %v1329 = vld [vmem:[%s1328] sm:$0xff]
    %s1330 = scalar_lea.vmem [#allocation1], 24
    %v1331 = vld [vmem:[%s1330] sm:$0xff]
    %v1332 = vmul.f32 %v1331, %v1320
    %1333 = vadd.xlane.f32.xlu0 %v1332
    %v1334 = vpop.xlane.xlu0 %1333
    %v1335 = vsub.f32 %v1329, %v1334
    %v1336 = vmul.f32 %v1335, %v1327
    %vm1337 = vcmask 1047555
    %vm1338 = vmand %vm1318, %vm1337
    %v1339 = vsel %vm1338, %v1336, 0.0
    %v1340 = vadd.f32 %v1331, %v1339
    %s1341 = scalar_lea.vmem [#allocation1], 24
    %1342 = vst [vmem:[%s1341] sm:$0xff] %v1340
    %vm1343 = vcmask 236768
    %s1344 = scalar_lea.vmem [#allocation1], 28
    %v1345 = vld [vmem:[%s1344] ss:$0 sm:$0xff]
    %s1346 = scalar_lea.vmem [#allocation0], 28
    %v1347 = vld [vmem:[%s1346] ss:$0 sm:$0xff]
    %v1348 = vmul.f32 %v1345, %v1345
    %1349 = vadd.xlane.f32.xlu0 %v1348
    %v1350 = vpop.xlane.xlu0 %1349
    %v1351 = vsub.f32 %v1347, %v1350
    %v1352 = vrsqrt.pop %v1351
    %s1353 = scalar_lea.vmem [#allocation0], 24
    %v1354 = vld [vmem:[%s1353] sm:$0xff]
    %s1355 = scalar_lea.vmem [#allocation1], 24
    %v1356 = vld [vmem:[%s1355] sm:$0xff]
    %v1357 = vmul.f32 %v1356, %v1345
    %1358 = vadd.xlane.f32.xlu0 %v1357
    %v1359 = vpop.xlane.xlu0 %1358
    %v1360 = vsub.f32 %v1354, %v1359
    %v1361 = vmul.f32 %v1360, %v1352
    %vm1362 = vcmask 1047556
    %vm1363 = vmand %vm1343, %vm1362
    %v1364 = vsel %vm1363, %v1361, 0.0
    %v1365 = vadd.f32 %v1356, %v1364
    %s1366 = scalar_lea.vmem [#allocation1], 24
    %1367 = vst [vmem:[%s1366] sm:$0xff] %v1365
    %vm1368 = vcmask 244968
    %s1369 = scalar_lea.vmem [#allocation1], 29
    %v1370 = vld [vmem:[%s1369] ss:$0 sm:$0xff]
    %s1371 = scalar_lea.vmem [#allocation0], 29
    %v1372 = vld [vmem:[%s1371] ss:$0 sm:$0xff]
    %v1373 = vmul.f32 %v1370, %v1370
    %1374 = vadd.xlane.f32.xlu0 %v1373
    %v1375 = vpop.xlane.xlu0 %1374
    %v1376 = vsub.f32 %v1372, %v1375
    %v1377 = vrsqrt.pop %v1376
    %s1378 = scalar_lea.vmem [#allocation0], 24
    %v1379 = vld [vmem:[%s1378] sm:$0xff]
    %s1380 = scalar_lea.vmem [#allocation1], 24
    %v1381 = vld [vmem:[%s1380] sm:$0xff]
    %v1382 = vmul.f32 %v1381, %v1370
    %1383 = vadd.xlane.f32.xlu0 %v1382
    %v1384 = vpop.xlane.xlu0 %1383
    %v1385 = vsub.f32 %v1379, %v1384
    %v1386 = vmul.f32 %v1385, %v1377
    %vm1387 = vcmask 1047557
    %vm1388 = vmand %vm1368, %vm1387
    %v1389 = vsel %vm1388, %v1386, 0.0
    %v1390 = vadd.f32 %v1381, %v1389
    %s1391 = scalar_lea.vmem [#allocation1], 24
    %1392 = vst [vmem:[%s1391] sm:$0xff] %v1390
    %vm1393 = vcmask 253168
    %s1394 = scalar_lea.vmem [#allocation1], 30
    %v1395 = vld [vmem:[%s1394] ss:$0 sm:$0xff]
    %s1396 = scalar_lea.vmem [#allocation0], 30
    %v1397 = vld [vmem:[%s1396] ss:$0 sm:$0xff]
    %v1398 = vmul.f32 %v1395, %v1395
    %1399 = vadd.xlane.f32.xlu0 %v1398
    %v1400 = vpop.xlane.xlu0 %1399
    %v1401 = vsub.f32 %v1397, %v1400
    %v1402 = vrsqrt.pop %v1401
    %s1403 = scalar_lea.vmem [#allocation0], 24
    %v1404 = vld [vmem:[%s1403] sm:$0xff]
    %s1405 = scalar_lea.vmem [#allocation1], 24
    %v1406 = vld [vmem:[%s1405] sm:$0xff]
    %v1407 = vmul.f32 %v1406, %v1395
    %1408 = vadd.xlane.f32.xlu0 %v1407
    %v1409 = vpop.xlane.xlu0 %1408
    %v1410 = vsub.f32 %v1404, %v1409
    %v1411 = vmul.f32 %v1410, %v1402
    %vm1412 = vcmask 1047558
    %vm1413 = vmand %vm1393, %vm1412
    %v1414 = vsel %vm1413, %v1411, 0.0
    %v1415 = vadd.f32 %v1406, %v1414
    %s1416 = scalar_lea.vmem [#allocation1], 24
    %1417 = vst [vmem:[%s1416] sm:$0xff] %v1415
    %vm1418 = vcmask 261368
    %s1419 = scalar_lea.vmem [#allocation1], 31
    %v1420 = vld [vmem:[%s1419] ss:$0 sm:$0xff]
    %s1421 = scalar_lea.vmem [#allocation0], 31
    %v1422 = vld [vmem:[%s1421] ss:$0 sm:$0xff]
    %v1423 = vmul.f32 %v1420, %v1420
    %1424 = vadd.xlane.f32.xlu0 %v1423
    %v1425 = vpop.xlane.xlu0 %1424
    %v1426 = vsub.f32 %v1422, %v1425
    %v1427 = vrsqrt.pop %v1426
    %s1428 = scalar_lea.vmem [#allocation0], 24
    %v1429 = vld [vmem:[%s1428] sm:$0xff]
    %s1430 = scalar_lea.vmem [#allocation1], 24
    %v1431 = vld [vmem:[%s1430] sm:$0xff]
    %v1432 = vmul.f32 %v1431, %v1420
    %1433 = vadd.xlane.f32.xlu0 %v1432
    %v1434 = vpop.xlane.xlu0 %1433
    %v1435 = vsub.f32 %v1429, %v1434
    %v1436 = vmul.f32 %v1435, %v1427
    %vm1437 = vcmask 1047559
    %vm1438 = vmand %vm1418, %vm1437
    %v1439 = vsel %vm1438, %v1436, 0.0
    %v1440 = vadd.f32 %v1431, %v1439
    %s1441 = scalar_lea.vmem [#allocation1], 24
    %1442 = vst [vmem:[%s1441] sm:$0xff] %v1440
    // Predicated region
    $region36: #{custom-call.10} parent=1 // pred_check
      _
    $region37: #{custom-call.10} parent=1 // pred_check_branch
      %1444 = sbr.rel (0) target = $region39
    $region38: #{custom-call.10} parent=1 // pred_region
      // Predicated region
      $region40: #{custom-call.10} parent=38 // pred_check
        _
      $region41: #{custom-call.10} parent=38 // pred_check_branch
        %1446 = sbr.rel (0) target = $region43
      $region42: #{custom-call.10} parent=38 // pred_region
        // Predicated region
        $region55: #{custom-call.10} parent=42 // pred_check
          _
        $region56: #{custom-call.10} parent=42 // pred_check_branch
          %1467 = sbr.rel (0) target = $region58
        $region57: #{custom-call.10} parent=42 // pred_region
          loop: start=0, step=1, limit=1
          $region59: #{custom-call.10} parent=57 // loop_pre_header
            _
          $region60: #{custom-call.10} parent=57 // loop_header
            %s1469 = sphi 0, %s1473
            %p1470 = scmp.ge.s32.totalorder %s1469, 1
            %s1474 = sphi [#allocation1], [#allocation1]
            %s1475 = sphi %s1, %s1
          $region61: #{custom-call.10} parent=57 // loop_header_branch
            %1472 = sbr.rel (%p1470) target = $region65
          $region62: #{custom-call.10} parent=57 // loop_body
            %v1476 = vld [vmem:[%s1474] sm:$0xff]
            %1477 = vst [vmem:[%s1475] sm:$0xff] %v1476
            %v1478 = vld [vmem:[%s1474 + $0x8] sm:$0xff]
            %1479 = vst [vmem:[%s1475 + $0x8] sm:$0xff] %v1478
            %v1480 = vld [vmem:[%s1474 + $0x10] sm:$0xff]
            %1481 = vst [vmem:[%s1475 + $0x10] sm:$0xff] %v1480
            %v1482 = vld [vmem:[%s1474 + $0x18] sm:$0xff]
            %1483 = vst [vmem:[%s1475 + $0x18] sm:$0xff] %v1482
          $region63: #{custom-call.10} parent=57 // loop_footer
            %s1473 = sadd.s32 1, %s1469
          $region64: #{custom-call.10} parent=57 // loop_footer_branch
            %1468 = sbr.rel target = $region60
          $region65: #{custom-call.10} parent=57 // loop_exit
            _
        $region58: #{custom-call.10} parent=42 // pred_fallthru
          _
        // Predicated region
        $region66: #{custom-call.10} parent=42 // pred_check
          _
        $region67: #{custom-call.10} parent=42 // pred_check_branch
          %1485 = sbr.rel target = $region69
        $region68: #{custom-call.10} parent=42 // pred_region
          _
        $region69: #{custom-call.10} parent=42 // pred_fallthru
          _
      $region43: #{custom-call.10} parent=38 // pred_fallthru
        _
      // Predicated region
      $region44: #{custom-call.10} parent=38 // pred_check
        _
      $region45: #{custom-call.10} parent=38 // pred_check_branch
        %1448 = sbr.rel target = $region47
      $region46: #{custom-call.10} parent=38 // pred_region
        loop: start=0, step=1, limit=1
        $region48: #{custom-call.10} parent=46 // loop_pre_header
          _
        $region49: #{custom-call.10} parent=46 // loop_header
          %s1451 = sphi 0, %s1455
          %p1452 = scmp.ge.s32.totalorder %s1451, 1
          %s1456 = sphi [#allocation1], [#allocation1]
          %s1457 = sphi %s1, %s1
        $region50: #{custom-call.10} parent=46 // loop_header_branch
          %1454 = sbr.rel (%p1452) target = $region54
        $region51: #{custom-call.10} parent=46 // loop_body
          %v1458 = vld [vmem:[%s1456] sm:$0xff]
          %1459 = vst [vmem:[%s1457] sm:$0xff] %v1458
          %v1460 = vld [vmem:[%s1456 + $0x8] sm:$0xff]
          %1461 = vst [vmem:[%s1457 + $0x8] sm:$0xff] %v1460
          %v1462 = vld [vmem:[%s1456 + $0x10] sm:$0xff]
          %1463 = vst [vmem:[%s1457 + $0x10] sm:$0xff] %v1462
          %v1464 = vld [vmem:[%s1456 + $0x18] sm:$0xff]
          %1465 = vst [vmem:[%s1457 + $0x18] sm:$0xff] %v1464
        $region52: #{custom-call.10} parent=46 // loop_footer
          %s1455 = sadd.s32 1, %s1451
        $region53: #{custom-call.10} parent=46 // loop_footer_branch
          %1450 = sbr.rel target = $region49
        $region54: #{custom-call.10} parent=46 // loop_exit
          _
      $region47: #{custom-call.10} parent=38 // pred_fallthru
        _
    $region39: #{custom-call.10} parent=1 // pred_fallthru
      _
    %1486 = vnop

// kernel: custom-call.11
$region0: #{custom-call.11}
  %s0 = inlined_call_operand.vmem [shape: f32[1,32,32], index: 0, kind: input, shape index: {}]
  %s1 = inlined_call_operand.vmem [shape: f32[1,32,32], index: 1, kind: output, shape index: {}]
  $region1: #{custom-call.11} parent=0
    #allocation0 [shape = 'u8[16384]{0}', space=vmem, size = 0x4000, scoped, tag = 'operand span for operand 0']
    #allocation1 [shape = 'u8[16384]{0}', space=vmem, size = 0x4000, scoped, tag = 'operand span for operand 1']
    #allocation2 [shape = 'f32[32,32]{1,0}', space=vmem, size = 0x4000, scoped, tag = 'rescaled input a']
    // Predicated region
    $region2: #{custom-call.11} parent=1 // pred_check
      _
    $region3: #{custom-call.11} parent=1 // pred_check_branch
      %3 = sbr.rel (0) target = $region5
    $region4: #{custom-call.11} parent=1 // pred_region
      // Predicated region
      $region6: #{custom-call.11} parent=4 // pred_check
        _
      $region7: #{custom-call.11} parent=4 // pred_check_branch
        %5 = sbr.rel (0) target = $region9
      $region8: #{custom-call.11} parent=4 // pred_region
        // Predicated region
        $region21: #{custom-call.11} parent=8 // pred_check
          _
        $region22: #{custom-call.11} parent=8 // pred_check_branch
          %26 = sbr.rel (0) target = $region24
        $region23: #{custom-call.11} parent=8 // pred_region
          loop: start=0, step=1, limit=1
          $region25: #{custom-call.11} parent=23 // loop_pre_header
            _
          $region26: #{custom-call.11} parent=23 // loop_header
            %s28 = sphi 0, %s32
            %p29 = scmp.ge.s32.totalorder %s28, 1
            %s33 = sphi %s0, %s0
            %s34 = sphi [#allocation0], [#allocation0]
          $region27: #{custom-call.11} parent=23 // loop_header_branch
            %31 = sbr.rel (%p29) target = $region31
          $region28: #{custom-call.11} parent=23 // loop_body
            %v35 = vld [vmem:[%s33] sm:$0xff]
            %36 = vst [vmem:[%s34] sm:$0xff] %v35
            %v37 = vld [vmem:[%s33 + $0x8] sm:$0xff]
            %38 = vst [vmem:[%s34 + $0x8] sm:$0xff] %v37
            %v39 = vld [vmem:[%s33 + $0x10] sm:$0xff]
            %40 = vst [vmem:[%s34 + $0x10] sm:$0xff] %v39
            %v41 = vld [vmem:[%s33 + $0x18] sm:$0xff]
            %42 = vst [vmem:[%s34 + $0x18] sm:$0xff] %v41
          $region29: #{custom-call.11} parent=23 // loop_footer
            %s32 = sadd.s32 1, %s28
          $region30: #{custom-call.11} parent=23 // loop_footer_branch
            %27 = sbr.rel target = $region26
          $region31: #{custom-call.11} parent=23 // loop_exit
            _
        $region24: #{custom-call.11} parent=8 // pred_fallthru
          _
        // Predicated region
        $region32: #{custom-call.11} parent=8 // pred_check
          _
        $region33: #{custom-call.11} parent=8 // pred_check_branch
          %44 = sbr.rel target = $region35
        $region34: #{custom-call.11} parent=8 // pred_region
          _
        $region35: #{custom-call.11} parent=8 // pred_fallthru
          _
      $region9: #{custom-call.11} parent=4 // pred_fallthru
        _
      // Predicated region
      $region10: #{custom-call.11} parent=4 // pred_check
        _
      $region11: #{custom-call.11} parent=4 // pred_check_branch
        %7 = sbr.rel target = $region13
      $region12: #{custom-call.11} parent=4 // pred_region
        loop: start=0, step=1, limit=1
        $region14: #{custom-call.11} parent=12 // loop_pre_header
          _
        $region15: #{custom-call.11} parent=12 // loop_header
          %s10 = sphi 0, %s14
          %p11 = scmp.ge.s32.totalorder %s10, 1
          %s15 = sphi %s0, %s0
          %s16 = sphi [#allocation0], [#allocation0]
        $region16: #{custom-call.11} parent=12 // loop_header_branch
          %13 = sbr.rel (%p11) target = $region20
        $region17: #{custom-call.11} parent=12 // loop_body
          %v17 = vld [vmem:[%s15] sm:$0xff]
          %18 = vst [vmem:[%s16] sm:$0xff] %v17
          %v19 = vld [vmem:[%s15 + $0x8] sm:$0xff]
          %20 = vst [vmem:[%s16 + $0x8] sm:$0xff] %v19
          %v21 = vld [vmem:[%s15 + $0x10] sm:$0xff]
          %22 = vst [vmem:[%s16 + $0x10] sm:$0xff] %v21
          %v23 = vld [vmem:[%s15 + $0x18] sm:$0xff]
          %24 = vst [vmem:[%s16 + $0x18] sm:$0xff] %v23
        $region18: #{custom-call.11} parent=12 // loop_footer
          %s14 = sadd.s32 1, %s10
        $region19: #{custom-call.11} parent=12 // loop_footer_branch
          %9 = sbr.rel target = $region15
        $region20: #{custom-call.11} parent=12 // loop_exit
          _
      $region13: #{custom-call.11} parent=4 // pred_fallthru
        _
    $region5: #{custom-call.11} parent=1 // pred_fallthru
      _
    %45 = vnop
    %v46 = vlaneseq
    %v47 = vand.u32 %v46, 127
    %vm48 = vcmp.lt.s32.totalorder %v47, 32
    %v49 = vlaneseq
    %v50 = vshrl.u32 %v49, 7
    %vm52 = vcmp.eq.s32.totalorder %v50, %v47
    %v53 = vld [vmem:[#allocation0] sm:$0xff]
    %v54 = vsel %vm52, %v53, 0.0
    %55 = vadd.xlane.f32.xlu0 %v54
    %v56 = vpop.xlane.xlu0 %55
    %vm57 = vcmp.ge.s32.totalorder %v50, %v47
    %vm58 = vmand %vm57, %vm48
    %v59 = vsel %vm58, %v53, 0.0
    %v60 = vrcp.pop %v56
    %v61 = vmul.f32 %v59, %v60
    %62 = vst [vmem:[#allocation2] sm:$0xff] %v61
    %s63 = scalar_lea.vmem [#allocation0], 8
    %s64 = scalar_lea.vmem [#allocation2], 8
    %v65 = vlaneseq
    %v66 = vshrl.u32 %v65, 7
    %v67 = vadd.s32 %v66, 8
    %vm68 = vcmp.eq.s32.totalorder %v67, %v47
    %v69 = vld [vmem:[%s63] sm:$0xff]
    %v70 = vsel %vm68, %v69, 0.0
    %71 = vadd.xlane.f32.xlu0 %v70
    %v72 = vpop.xlane.xlu0 %71
    %vm73 = vcmp.ge.s32.totalorder %v67, %v47
    %vm74 = vmand %vm73, %vm48
    %v75 = vsel %vm74, %v69, 0.0
    %v76 = vrcp.pop %v72
    %v77 = vmul.f32 %v75, %v76
    %78 = vst [vmem:[%s64] sm:$0xff] %v77
    %s79 = scalar_lea.vmem [#allocation0], 16
    %s80 = scalar_lea.vmem [#allocation2], 16
    %v81 = vlaneseq
    %v82 = vshrl.u32 %v81, 7
    %v83 = vadd.s32 %v82, 16
    %vm84 = vcmp.eq.s32.totalorder %v83, %v47
    %v85 = vld [vmem:[%s79] sm:$0xff]
    %v86 = vsel %vm84, %v85, 0.0
    %87 = vadd.xlane.f32.xlu0 %v86
    %v88 = vpop.xlane.xlu0 %87
    %vm89 = vcmp.ge.s32.totalorder %v83, %v47
    %vm90 = vmand %vm89, %vm48
    %v91 = vsel %vm90, %v85, 0.0
    %v92 = vrcp.pop %v88
    %v93 = vmul.f32 %v91, %v92
    %94 = vst [vmem:[%s80] sm:$0xff] %v93
    %s95 = scalar_lea.vmem [#allocation0], 24
    %s96 = scalar_lea.vmem [#allocation2], 24
    %v97 = vlaneseq
    %v98 = vshrl.u32 %v97, 7
    %v99 = vadd.s32 %v98, 24
    %vm100 = vcmp.eq.s32.totalorder %v99, %v47
    %v101 = vld [vmem:[%s95] sm:$0xff]
    %v102 = vsel %vm100, %v101, 0.0
    %103 = vadd.xlane.f32.xlu0 %v102
    %v104 = vpop.xlane.xlu0 %103
    %vm105 = vcmp.ge.s32.totalorder %v99, %v47
    %vm106 = vmand %vm105, %vm48
    %v107 = vsel %vm106, %v101, 0.0
    %v108 = vrcp.pop %v104
    %v109 = vmul.f32 %v107, %v108
    %110 = vst [vmem:[%s96] sm:$0xff] %v109
    %v111 = vlaneseq
    %v112 = vand.u32 %v111, 127
    %v113 = vlaneseq
    %v114 = vshrl.u32 %v113, 7
    %vm116 = vcmp.eq.s32.totalorder %v112, %v114
    %v117 = vlaneseq
    %v118 = vand.u32 %v117, 127
    %vm119 = vcmp.eq.s32.totalorder %v118, 0
    %v120 = vsel %vm119, 1.0, -1.0
    %v121 = vsel %vm116, %v120, 0.0
    %v122 = vlaneseq
    %v123 = vand.u32 %v122, 127
    %v124 = vlaneseq
    %v125 = vshrl.u32 %v124, 7
    %v126 = vadd.s32 %v125, 8
    %vm127 = vcmp.eq.s32.totalorder %v123, %v126
    %v128 = vsel %vm127, -1.0, 0.0
    %v129 = vlaneseq
    %v130 = vand.u32 %v129, 127
    %v131 = vlaneseq
    %v132 = vshrl.u32 %v131, 7
    %v133 = vadd.s32 %v132, 16
    %vm134 = vcmp.eq.s32.totalorder %v130, %v133
    %v135 = vsel %vm134, -1.0, 0.0
    %v136 = vlaneseq
    %v137 = vand.u32 %v136, 127
    %v138 = vlaneseq
    %v139 = vshrl.u32 %v138, 7
    %v140 = vadd.s32 %v139, 24
    %vm141 = vcmp.eq.s32.totalorder %v137, %v140
    %v142 = vsel %vm141, -1.0, 0.0
    %s143 = scalar_lea.vmem [#allocation2], 1
    %v144 = vld [vmem:[%s143] ss:$0 sm:$0xff]
    %v145 = vxor.u32 %v144, 2147483648
    %v146 = vlaneseq
    %v147 = vand.u32 %v146, 127
    %vm148 = vcmp.eq.s32.totalorder %v147, 1
    %v149 = vmul.f32 %v145, %v121
    %150 = vadd.xlane.f32.xlu0 %v149
    %v151 = vpop.xlane.xlu0 %150
    %v152 = vsel %vm148, %v151, %v121
    %s153 = scalar_lea.vmem [#allocation2], 2
    %v154 = vld [vmem:[%s153] ss:$0 sm:$0xff]
    %v155 = vxor.u32 %v154, 2147483648
    %v156 = vlaneseq
    %v157 = vand.u32 %v156, 127
    %vm158 = vcmp.eq.s32.totalorder %v157, 2
    %v159 = vmul.f32 %v155, %v152
    %160 = vadd.xlane.f32.xlu0 %v159
    %v161 = vpop.xlane.xlu0 %160
    %v162 = vsel %vm158, %v161, %v152
    %s163 = scalar_lea.vmem [#allocation2], 3
    %v164 = vld [vmem:[%s163] ss:$0 sm:$0xff]
    %v165 = vxor.u32 %v164, 2147483648
    %v166 = vlaneseq
    %v167 = vand.u32 %v166, 127
    %vm168 = vcmp.eq.s32.totalorder %v167, 3
    %v169 = vmul.f32 %v165, %v162
    %170 = vadd.xlane.f32.xlu0 %v169
    %v171 = vpop.xlane.xlu0 %170
    %v172 = vsel %vm168, %v171, %v162
    %s173 = scalar_lea.vmem [#allocation2], 4
    %v174 = vld [vmem:[%s173] ss:$0 sm:$0xff]
    %v175 = vxor.u32 %v174, 2147483648
    %v176 = vlaneseq
    %v177 = vand.u32 %v176, 127
    %vm178 = vcmp.eq.s32.totalorder %v177, 4
    %v179 = vmul.f32 %v175, %v172
    %180 = vadd.xlane.f32.xlu0 %v179
    %v181 = vpop.xlane.xlu0 %180
    %v182 = vsel %vm178, %v181, %v172
    %s183 = scalar_lea.vmem [#allocation2], 5
    %v184 = vld [vmem:[%s183] ss:$0 sm:$0xff]
    %v185 = vxor.u32 %v184, 2147483648
    %v186 = vlaneseq
    %v187 = vand.u32 %v186, 127
    %vm188 = vcmp.eq.s32.totalorder %v187, 5
    %v189 = vmul.f32 %v185, %v182
    %190 = vadd.xlane.f32.xlu0 %v189
    %v191 = vpop.xlane.xlu0 %190
    %v192 = vsel %vm188, %v191, %v182
    %s193 = scalar_lea.vmem [#allocation2], 6
    %v194 = vld [vmem:[%s193] ss:$0 sm:$0xff]
    %v195 = vxor.u32 %v194, 2147483648
    %v196 = vlaneseq
    %v197 = vand.u32 %v196, 127
    %vm198 = vcmp.eq.s32.totalorder %v197, 6
    %v199 = vmul.f32 %v195, %v192
    %200 = vadd.xlane.f32.xlu0 %v199
    %v201 = vpop.xlane.xlu0 %200
    %v202 = vsel %vm198, %v201, %v192
    %s203 = scalar_lea.vmem [#allocation2], 7
    %v204 = vld [vmem:[%s203] ss:$0 sm:$0xff]
    %v205 = vxor.u32 %v204, 2147483648
    %v206 = vlaneseq
    %v207 = vand.u32 %v206, 127
    %vm208 = vcmp.eq.s32.totalorder %v207, 7
    %v209 = vmul.f32 %v205, %v202
    %210 = vadd.xlane.f32.xlu0 %v209
    %v211 = vpop.xlane.xlu0 %210
    %v212 = vsel %vm208, %v211, %v202
    %s213 = scalar_lea.vmem [#allocation2], 8
    %v214 = vld [vmem:[%s213] ss:$0 sm:$0xff]
    %v215 = vxor.u32 %v214, 2147483648
    %v216 = vlaneseq
    %v217 = vand.u32 %v216, 127
    %vm218 = vcmp.eq.s32.totalorder %v217, 8
    %v219 = vmul.f32 %v215, %v212
    %220 = vadd.xlane.f32.xlu0 %v219
    %v221 = vpop.xlane.xlu0 %220
    %v222 = vsel %vm218, %v221, %v212
    %v223 = vmul.f32 %v215, %v128
    %224 = vadd.xlane.f32.xlu0 %v223
    %v225 = vpop.xlane.xlu0 %224
    %v226 = vsel %vm218, %v225, %v128
    %s227 = scalar_lea.vmem [#allocation2], 9
    %v228 = vld [vmem:[%s227] ss:$0 sm:$0xff]
    %v229 = vxor.u32 %v228, 2147483648
    %v230 = vlaneseq
    %v231 = vand.u32 %v230, 127
    %vm232 = vcmp.eq.s32.totalorder %v231, 9
    %v233 = vmul.f32 %v229, %v222
    %234 = vadd.xlane.f32.xlu0 %v233
    %v235 = vpop.xlane.xlu0 %234
    %v236 = vsel %vm232, %v235, %v222
    %v237 = vmul.f32 %v229, %v226
    %238 = vadd.xlane.f32.xlu0 %v237
    %v239 = vpop.xlane.xlu0 %238
    %v240 = vsel %vm232, %v239, %v226
    %s241 = scalar_lea.vmem [#allocation2], 10
    %v242 = vld [vmem:[%s241] ss:$0 sm:$0xff]
    %v243 = vxor.u32 %v242, 2147483648
    %v244 = vlaneseq
    %v245 = vand.u32 %v244, 127
    %vm246 = vcmp.eq.s32.totalorder %v245, 10
    %v247 = vmul.f32 %v243, %v236
    %248 = vadd.xlane.f32.xlu0 %v247
    %v249 = vpop.xlane.xlu0 %248
    %v250 = vsel %vm246, %v249, %v236
    %v251 = vmul.f32 %v243, %v240
    %252 = vadd.xlane.f32.xlu0 %v251
    %v253 = vpop.xlane.xlu0 %252
    %v254 = vsel %vm246, %v253, %v240
    %s255 = scalar_lea.vmem [#allocation2], 11
    %v256 = vld [vmem:[%s255] ss:$0 sm:$0xff]
    %v257 = vxor.u32 %v256, 2147483648
    %v258 = vlaneseq
    %v259 = vand.u32 %v258, 127
    %vm260 = vcmp.eq.s32.totalorder %v259, 11
    %v261 = vmul.f32 %v257, %v250
    %262 = vadd.xlane.f32.xlu0 %v261
    %v263 = vpop.xlane.xlu0 %262
    %v264 = vsel %vm260, %v263, %v250
    %v265 = vmul.f32 %v257, %v254
    %266 = vadd.xlane.f32.xlu0 %v265
    %v267 = vpop.xlane.xlu0 %266
    %v268 = vsel %vm260, %v267, %v254
    %s269 = scalar_lea.vmem [#allocation2], 12
    %v270 = vld [vmem:[%s269] ss:$0 sm:$0xff]
    %v271 = vxor.u32 %v270, 2147483648
    %v272 = vlaneseq
    %v273 = vand.u32 %v272, 127
    %vm274 = vcmp.eq.s32.totalorder %v273, 12
    %v275 = vmul.f32 %v271, %v264
    %276 = vadd.xlane.f32.xlu0 %v275
    %v277 = vpop.xlane.xlu0 %276
    %v278 = vsel %vm274, %v277, %v264
    %v279 = vmul.f32 %v271, %v268
    %280 = vadd.xlane.f32.xlu0 %v279
    %v281 = vpop.xlane.xlu0 %280
    %v282 = vsel %vm274, %v281, %v268
    %s283 = scalar_lea.vmem [#allocation2], 13
    %v284 = vld [vmem:[%s283] ss:$0 sm:$0xff]
    %v285 = vxor.u32 %v284, 2147483648
    %v286 = vlaneseq
    %v287 = vand.u32 %v286, 127
    %vm288 = vcmp.eq.s32.totalorder %v287, 13
    %v289 = vmul.f32 %v285, %v278
    %290 = vadd.xlane.f32.xlu0 %v289
    %v291 = vpop.xlane.xlu0 %290
    %v292 = vsel %vm288, %v291, %v278
    %v293 = vmul.f32 %v285, %v282
    %294 = vadd.xlane.f32.xlu0 %v293
    %v295 = vpop.xlane.xlu0 %294
    %v296 = vsel %vm288, %v295, %v282
    %s297 = scalar_lea.vmem [#allocation2], 14
    %v298 = vld [vmem:[%s297] ss:$0 sm:$0xff]
    %v299 = vxor.u32 %v298, 2147483648
    %v300 = vlaneseq
    %v301 = vand.u32 %v300, 127
    %vm302 = vcmp.eq.s32.totalorder %v301, 14
    %v303 = vmul.f32 %v299, %v292
    %304 = vadd.xlane.f32.xlu0 %v303
    %v305 = vpop.xlane.xlu0 %304
    %v306 = vsel %vm302, %v305, %v292
    %v307 = vmul.f32 %v299, %v296
    %308 = vadd.xlane.f32.xlu0 %v307
    %v309 = vpop.xlane.xlu0 %308
    %v310 = vsel %vm302, %v309, %v296
    %s311 = scalar_lea.vmem [#allocation2], 15
    %v312 = vld [vmem:[%s311] ss:$0 sm:$0xff]
    %v313 = vxor.u32 %v312, 2147483648
    %v314 = vlaneseq
    %v315 = vand.u32 %v314, 127
    %vm316 = vcmp.eq.s32.totalorder %v315, 15
    %v317 = vmul.f32 %v313, %v306
    %318 = vadd.xlane.f32.xlu0 %v317
    %v319 = vpop.xlane.xlu0 %318
    %v320 = vsel %vm316, %v319, %v306
    %v321 = vmul.f32 %v313, %v310
    %322 = vadd.xlane.f32.xlu0 %v321
    %v323 = vpop.xlane.xlu0 %322
    %v324 = vsel %vm316, %v323, %v310
    %s325 = scalar_lea.vmem [#allocation2], 16
    %v326 = vld [vmem:[%s325] ss:$0 sm:$0xff]
    %v327 = vxor.u32 %v326, 2147483648
    %v328 = vlaneseq
    %v329 = vand.u32 %v328, 127
    %vm330 = vcmp.eq.s32.totalorder %v329, 16
    %v331 = vmul.f32 %v327, %v320
    %332 = vadd.xlane.f32.xlu0 %v331
    %v333 = vpop.xlane.xlu0 %332
    %v334 = vsel %vm330, %v333, %v320
    %v335 = vmul.f32 %v327, %v324
    %336 = vadd.xlane.f32.xlu0 %v335
    %v337 = vpop.xlane.xlu0 %336
    %v338 = vsel %vm330, %v337, %v324
    %v339 = vmul.f32 %v327, %v135
    %340 = vadd.xlane.f32.xlu0 %v339
    %v341 = vpop.xlane.xlu0 %340
    %v342 = vsel %vm330, %v341, %v135
    %s343 = scalar_lea.vmem [#allocation2], 17
    %v344 = vld [vmem:[%s343] ss:$0 sm:$0xff]
    %v345 = vxor.u32 %v344, 2147483648
    %v346 = vlaneseq
    %v347 = vand.u32 %v346, 127
    %vm348 = vcmp.eq.s32.totalorder %v347, 17
    %v349 = vmul.f32 %v345, %v334
    %350 = vadd.xlane.f32.xlu0 %v349
    %v351 = vpop.xlane.xlu0 %350
    %v352 = vsel %vm348, %v351, %v334
    %v353 = vmul.f32 %v345, %v338
    %354 = vadd.xlane.f32.xlu0 %v353
    %v355 = vpop.xlane.xlu0 %354
    %v356 = vsel %vm348, %v355, %v338
    %v357 = vmul.f32 %v345, %v342
    %358 = vadd.xlane.f32.xlu0 %v357
    %v359 = vpop.xlane.xlu0 %358
    %v360 = vsel %vm348, %v359, %v342
    %s361 = scalar_lea.vmem [#allocation2], 18
    %v362 = vld [vmem:[%s361] ss:$0 sm:$0xff]
    %v363 = vxor.u32 %v362, 2147483648
    %v364 = vlaneseq
    %v365 = vand.u32 %v364, 127
    %vm366 = vcmp.eq.s32.totalorder %v365, 18
    %v367 = vmul.f32 %v363, %v352
    %368 = vadd.xlane.f32.xlu0 %v367
    %v369 = vpop.xlane.xlu0 %368
    %v370 = vsel %vm366, %v369, %v352
    %v371 = vmul.f32 %v363, %v356
    %372 = vadd.xlane.f32.xlu0 %v371
    %v373 = vpop.xlane.xlu0 %372
    %v374 = vsel %vm366, %v373, %v356
    %v375 = vmul.f32 %v363, %v360
    %376 = vadd.xlane.f32.xlu0 %v375
    %v377 = vpop.xlane.xlu0 %376
    %v378 = vsel %vm366, %v377, %v360
    %s379 = scalar_lea.vmem [#allocation2], 19
    %v380 = vld [vmem:[%s379] ss:$0 sm:$0xff]
    %v381 = vxor.u32 %v380, 2147483648
    %v382 = vlaneseq
    %v383 = vand.u32 %v382, 127
    %vm384 = vcmp.eq.s32.totalorder %v383, 19
    %v385 = vmul.f32 %v381, %v370
    %386 = vadd.xlane.f32.xlu0 %v385
    %v387 = vpop.xlane.xlu0 %386
    %v388 = vsel %vm384, %v387, %v370
    %v389 = vmul.f32 %v381, %v374
    %390 = vadd.xlane.f32.xlu0 %v389
    %v391 = vpop.xlane.xlu0 %390
    %v392 = vsel %vm384, %v391, %v374
    %v393 = vmul.f32 %v381, %v378
    %394 = vadd.xlane.f32.xlu0 %v393
    %v395 = vpop.xlane.xlu0 %394
    %v396 = vsel %vm384, %v395, %v378
    %s397 = scalar_lea.vmem [#allocation2], 20
    %v398 = vld [vmem:[%s397] ss:$0 sm:$0xff]
    %v399 = vxor.u32 %v398, 2147483648
    %v400 = vlaneseq
    %v401 = vand.u32 %v400, 127
    %vm402 = vcmp.eq.s32.totalorder %v401, 20
    %v403 = vmul.f32 %v399, %v388
    %404 = vadd.xlane.f32.xlu0 %v403
    %v405 = vpop.xlane.xlu0 %404
    %v406 = vsel %vm402, %v405, %v388
    %v407 = vmul.f32 %v399, %v392
    %408 = vadd.xlane.f32.xlu0 %v407
    %v409 = vpop.xlane.xlu0 %408
    %v410 = vsel %vm402, %v409, %v392
    %v411 = vmul.f32 %v399, %v396
    %412 = vadd.xlane.f32.xlu0 %v411
    %v413 = vpop.xlane.xlu0 %412
    %v414 = vsel %vm402, %v413, %v396
    %s415 = scalar_lea.vmem [#allocation2], 21
    %v416 = vld [vmem:[%s415] ss:$0 sm:$0xff]
    %v417 = vxor.u32 %v416, 2147483648
    %v418 = vlaneseq
    %v419 = vand.u32 %v418, 127
    %vm420 = vcmp.eq.s32.totalorder %v419, 21
    %v421 = vmul.f32 %v417, %v406
    %422 = vadd.xlane.f32.xlu0 %v421
    %v423 = vpop.xlane.xlu0 %422
    %v424 = vsel %vm420, %v423, %v406
    %v425 = vmul.f32 %v417, %v410
    %426 = vadd.xlane.f32.xlu0 %v425
    %v427 = vpop.xlane.xlu0 %426
    %v428 = vsel %vm420, %v427, %v410
    %v429 = vmul.f32 %v417, %v414
    %430 = vadd.xlane.f32.xlu0 %v429
    %v431 = vpop.xlane.xlu0 %430
    %v432 = vsel %vm420, %v431, %v414
    %s433 = scalar_lea.vmem [#allocation2], 22
    %v434 = vld [vmem:[%s433] ss:$0 sm:$0xff]
    %v435 = vxor.u32 %v434, 2147483648
    %v436 = vlaneseq
    %v437 = vand.u32 %v436, 127
    %vm438 = vcmp.eq.s32.totalorder %v437, 22
    %v439 = vmul.f32 %v435, %v424
    %440 = vadd.xlane.f32.xlu0 %v439
    %v441 = vpop.xlane.xlu0 %440
    %v442 = vsel %vm438, %v441, %v424
    %v443 = vmul.f32 %v435, %v428
    %444 = vadd.xlane.f32.xlu0 %v443
    %v445 = vpop.xlane.xlu0 %444
    %v446 = vsel %vm438, %v445, %v428
    %v447 = vmul.f32 %v435, %v432
    %448 = vadd.xlane.f32.xlu0 %v447
    %v449 = vpop.xlane.xlu0 %448
    %v450 = vsel %vm438, %v449, %v432
    %s451 = scalar_lea.vmem [#allocation2], 23
    %v452 = vld [vmem:[%s451] ss:$0 sm:$0xff]
    %v453 = vxor.u32 %v452, 2147483648
    %v454 = vlaneseq
    %v455 = vand.u32 %v454, 127
    %vm456 = vcmp.eq.s32.totalorder %v455, 23
    %v457 = vmul.f32 %v453, %v442
    %458 = vadd.xlane.f32.xlu0 %v457
    %v459 = vpop.xlane.xlu0 %458
    %v460 = vsel %vm456, %v459, %v442
    %v461 = vmul.f32 %v453, %v446
    %462 = vadd.xlane.f32.xlu0 %v461
    %v463 = vpop.xlane.xlu0 %462
    %v464 = vsel %vm456, %v463, %v446
    %v465 = vmul.f32 %v453, %v450
    %466 = vadd.xlane.f32.xlu0 %v465
    %v467 = vpop.xlane.xlu0 %466
    %v468 = vsel %vm456, %v467, %v450
    %s469 = scalar_lea.vmem [#allocation2], 24
    %v470 = vld [vmem:[%s469] ss:$0 sm:$0xff]
    %v471 = vxor.u32 %v470, 2147483648
    %v472 = vlaneseq
    %v473 = vand.u32 %v472, 127
    %vm474 = vcmp.eq.s32.totalorder %v473, 24
    %v475 = vmul.f32 %v471, %v460
    %476 = vadd.xlane.f32.xlu0 %v475
    %v477 = vpop.xlane.xlu0 %476
    %v478 = vsel %vm474, %v477, %v460
    %v479 = vmul.f32 %v471, %v464
    %480 = vadd.xlane.f32.xlu0 %v479
    %v481 = vpop.xlane.xlu0 %480
    %v482 = vsel %vm474, %v481, %v464
    %v483 = vmul.f32 %v471, %v468
    %484 = vadd.xlane.f32.xlu0 %v483
    %v485 = vpop.xlane.xlu0 %484
    %v486 = vsel %vm474, %v485, %v468
    %v487 = vmul.f32 %v471, %v142
    %488 = vadd.xlane.f32.xlu0 %v487
    %v489 = vpop.xlane.xlu0 %488
    %v490 = vsel %vm474, %v489, %v142
    %s491 = scalar_lea.vmem [#allocation2], 25
    %v492 = vld [vmem:[%s491] ss:$0 sm:$0xff]
    %v493 = vxor.u32 %v492, 2147483648
    %v494 = vlaneseq
    %v495 = vand.u32 %v494, 127
    %vm496 = vcmp.eq.s32.totalorder %v495, 25
    %v497 = vmul.f32 %v493, %v478
    %498 = vadd.xlane.f32.xlu0 %v497
    %v499 = vpop.xlane.xlu0 %498
    %v500 = vsel %vm496, %v499, %v478
    %v501 = vmul.f32 %v493, %v482
    %502 = vadd.xlane.f32.xlu0 %v501
    %v503 = vpop.xlane.xlu0 %502
    %v504 = vsel %vm496, %v503, %v482
    %v505 = vmul.f32 %v493, %v486
    %506 = vadd.xlane.f32.xlu0 %v505
    %v507 = vpop.xlane.xlu0 %506
    %v508 = vsel %vm496, %v507, %v486
    %v509 = vmul.f32 %v493, %v490
    %510 = vadd.xlane.f32.xlu0 %v509
    %v511 = vpop.xlane.xlu0 %510
    %v512 = vsel %vm496, %v511, %v490
    %s513 = scalar_lea.vmem [#allocation2], 26
    %v514 = vld [vmem:[%s513] ss:$0 sm:$0xff]
    %v515 = vxor.u32 %v514, 2147483648
    %v516 = vlaneseq
    %v517 = vand.u32 %v516, 127
    %vm518 = vcmp.eq.s32.totalorder %v517, 26
    %v519 = vmul.f32 %v515, %v500
    %520 = vadd.xlane.f32.xlu0 %v519
    %v521 = vpop.xlane.xlu0 %520
    %v522 = vsel %vm518, %v521, %v500
    %v523 = vmul.f32 %v515, %v504
    %524 = vadd.xlane.f32.xlu0 %v523
    %v525 = vpop.xlane.xlu0 %524
    %v526 = vsel %vm518, %v525, %v504
    %v527 = vmul.f32 %v515, %v508
    %528 = vadd.xlane.f32.xlu0 %v527
    %v529 = vpop.xlane.xlu0 %528
    %v530 = vsel %vm518, %v529, %v508
    %v531 = vmul.f32 %v515, %v512
    %532 = vadd.xlane.f32.xlu0 %v531
    %v533 = vpop.xlane.xlu0 %532
    %v534 = vsel %vm518, %v533, %v512
    %s535 = scalar_lea.vmem [#allocation2], 27
    %v536 = vld [vmem:[%s535] ss:$0 sm:$0xff]
    %v537 = vxor.u32 %v536, 2147483648
    %v538 = vlaneseq
    %v539 = vand.u32 %v538, 127
    %vm540 = vcmp.eq.s32.totalorder %v539, 27
    %v541 = vmul.f32 %v537, %v522
    %542 = vadd.xlane.f32.xlu0 %v541
    %v543 = vpop.xlane.xlu0 %542
    %v544 = vsel %vm540, %v543, %v522
    %v545 = vmul.f32 %v537, %v526
    %546 = vadd.xlane.f32.xlu0 %v545
    %v547 = vpop.xlane.xlu0 %546
    %v548 = vsel %vm540, %v547, %v526
    %v549 = vmul.f32 %v537, %v530
    %550 = vadd.xlane.f32.xlu0 %v549
    %v551 = vpop.xlane.xlu0 %550
    %v552 = vsel %vm540, %v551, %v530
    %v553 = vmul.f32 %v537, %v534
    %554 = vadd.xlane.f32.xlu0 %v553
    %v555 = vpop.xlane.xlu0 %554
    %v556 = vsel %vm540, %v555, %v534
    %s557 = scalar_lea.vmem [#allocation2], 28
    %v558 = vld [vmem:[%s557] ss:$0 sm:$0xff]
    %v559 = vxor.u32 %v558, 2147483648
    %v560 = vlaneseq
    %v561 = vand.u32 %v560, 127
    %vm562 = vcmp.eq.s32.totalorder %v561, 28
    %v563 = vmul.f32 %v559, %v544
    %564 = vadd.xlane.f32.xlu0 %v563
    %v565 = vpop.xlane.xlu0 %564
    %v566 = vsel %vm562, %v565, %v544
    %v567 = vmul.f32 %v559, %v548
    %568 = vadd.xlane.f32.xlu0 %v567
    %v569 = vpop.xlane.xlu0 %568
    %v570 = vsel %vm562, %v569, %v548
    %v571 = vmul.f32 %v559, %v552
    %572 = vadd.xlane.f32.xlu0 %v571
    %v573 = vpop.xlane.xlu0 %572
    %v574 = vsel %vm562, %v573, %v552
    %v575 = vmul.f32 %v559, %v556
    %576 = vadd.xlane.f32.xlu0 %v575
    %v577 = vpop.xlane.xlu0 %576
    %v578 = vsel %vm562, %v577, %v556
    %s579 = scalar_lea.vmem [#allocation2], 29
    %v580 = vld [vmem:[%s579] ss:$0 sm:$0xff]
    %v581 = vxor.u32 %v580, 2147483648
    %v582 = vlaneseq
    %v583 = vand.u32 %v582, 127
    %vm584 = vcmp.eq.s32.totalorder %v583, 29
    %v585 = vmul.f32 %v581, %v566
    %586 = vadd.xlane.f32.xlu0 %v585
    %v587 = vpop.xlane.xlu0 %586
    %v588 = vsel %vm584, %v587, %v566
    %v589 = vmul.f32 %v581, %v570
    %590 = vadd.xlane.f32.xlu0 %v589
    %v591 = vpop.xlane.xlu0 %590
    %v592 = vsel %vm584, %v591, %v570
    %v593 = vmul.f32 %v581, %v574
    %594 = vadd.xlane.f32.xlu0 %v593
    %v595 = vpop.xlane.xlu0 %594
    %v596 = vsel %vm584, %v595, %v574
    %v597 = vmul.f32 %v581, %v578
    %598 = vadd.xlane.f32.xlu0 %v597
    %v599 = vpop.xlane.xlu0 %598
    %v600 = vsel %vm584, %v599, %v578
    %s601 = scalar_lea.vmem [#allocation2], 30
    %v602 = vld [vmem:[%s601] ss:$0 sm:$0xff]
    %v603 = vxor.u32 %v602, 2147483648
    %v604 = vlaneseq
    %v605 = vand.u32 %v604, 127
    %vm606 = vcmp.eq.s32.totalorder %v605, 30
    %v607 = vmul.f32 %v603, %v588
    %608 = vadd.xlane.f32.xlu0 %v607
    %v609 = vpop.xlane.xlu0 %608
    %v610 = vsel %vm606, %v609, %v588
    %v611 = vmul.f32 %v603, %v592
    %612 = vadd.xlane.f32.xlu0 %v611
    %v613 = vpop.xlane.xlu0 %612
    %v614 = vsel %vm606, %v613, %v592
    %v615 = vmul.f32 %v603, %v596
    %616 = vadd.xlane.f32.xlu0 %v615
    %v617 = vpop.xlane.xlu0 %616
    %v618 = vsel %vm606, %v617, %v596
    %v619 = vmul.f32 %v603, %v600
    %620 = vadd.xlane.f32.xlu0 %v619
    %v621 = vpop.xlane.xlu0 %620
    %v622 = vsel %vm606, %v621, %v600
    %s623 = scalar_lea.vmem [#allocation2], 31
    %v624 = vld [vmem:[%s623] ss:$0 sm:$0xff]
    %v625 = vxor.u32 %v624, 2147483648
    %v626 = vlaneseq
    %v627 = vand.u32 %v626, 127
    %vm628 = vcmp.eq.s32.totalorder %v627, 31
    %v629 = vmul.f32 %v625, %v610
    %630 = vadd.xlane.f32.xlu0 %v629
    %v631 = vpop.xlane.xlu0 %630
    %v632 = vsel %vm628, %v631, %v610
    %v633 = vmul.f32 %v625, %v614
    %634 = vadd.xlane.f32.xlu0 %v633
    %v635 = vpop.xlane.xlu0 %634
    %v636 = vsel %vm628, %v635, %v614
    %v637 = vmul.f32 %v625, %v618
    %638 = vadd.xlane.f32.xlu0 %v637
    %v639 = vpop.xlane.xlu0 %638
    %v640 = vsel %vm628, %v639, %v618
    %v641 = vmul.f32 %v625, %v622
    %642 = vadd.xlane.f32.xlu0 %v641
    %v643 = vpop.xlane.xlu0 %642
    %v644 = vsel %vm628, %v643, %v622
    %v645 = vrcp.pop %v56
    %v646 = vmul.f32 %v632, %v645
    %vm647 = vweird.f32 %v56
    %v648 = vsel %vm647, %v632, %v646
    %649 = vst [vmem:[#allocation1] sm:$0xff] %v648
    %v650 = vrcp.pop %v72
    %v651 = vmul.f32 %v636, %v650
    %vm652 = vweird.f32 %v72
    %v653 = vsel %vm652, %v636, %v651
    %s654 = scalar_lea.vmem [#allocation1], 8
    %655 = vst [vmem:[%s654] sm:$0xff] %v653
    %v656 = vrcp.pop %v88
    %v657 = vmul.f32 %v640, %v656
    %vm658 = vweird.f32 %v88
    %v659 = vsel %vm658, %v640, %v657
    %s660 = scalar_lea.vmem [#allocation1], 16
    %661 = vst [vmem:[%s660] sm:$0xff] %v659
    %v662 = vrcp.pop %v104
    %v663 = vmul.f32 %v644, %v662
    %vm664 = vweird.f32 %v104
    %v665 = vsel %vm664, %v644, %v663
    %s666 = scalar_lea.vmem [#allocation1], 24
    %667 = vst [vmem:[%s666] sm:$0xff] %v665
    // Predicated region
    $region36: #{custom-call.11} parent=1 // pred_check
      _
    $region37: #{custom-call.11} parent=1 // pred_check_branch
      %669 = sbr.rel (0) target = $region39
    $region38: #{custom-call.11} parent=1 // pred_region
      // Predicated region
      $region40: #{custom-call.11} parent=38 // pred_check
        _
      $region41: #{custom-call.11} parent=38 // pred_check_branch
        %671 = sbr.rel (0) target = $region43
      $region42: #{custom-call.11} parent=38 // pred_region
        // Predicated region
        $region55: #{custom-call.11} parent=42 // pred_check
          _
        $region56: #{custom-call.11} parent=42 // pred_check_branch
          %692 = sbr.rel (0) target = $region58
        $region57: #{custom-call.11} parent=42 // pred_region
          loop: start=0, step=1, limit=1
          $region59: #{custom-call.11} parent=57 // loop_pre_header
            _
          $region60: #{custom-call.11} parent=57 // loop_header
            %s694 = sphi 0, %s698
            %p695 = scmp.ge.s32.totalorder %s694, 1
            %s699 = sphi [#allocation1], [#allocation1]
            %s700 = sphi %s1, %s1
          $region61: #{custom-call.11} parent=57 // loop_header_branch
            %697 = sbr.rel (%p695) target = $region65
          $region62: #{custom-call.11} parent=57 // loop_body
            %v701 = vld [vmem:[%s699] sm:$0xff]
            %702 = vst [vmem:[%s700] sm:$0xff] %v701
            %v703 = vld [vmem:[%s699 + $0x8] sm:$0xff]
            %704 = vst [vmem:[%s700 + $0x8] sm:$0xff] %v703
            %v705 = vld [vmem:[%s699 + $0x10] sm:$0xff]
            %706 = vst [vmem:[%s700 + $0x10] sm:$0xff] %v705
            %v707 = vld [vmem:[%s699 + $0x18] sm:$0xff]
            %708 = vst [vmem:[%s700 + $0x18] sm:$0xff] %v707
          $region63: #{custom-call.11} parent=57 // loop_footer
            %s698 = sadd.s32 1, %s694
          $region64: #{custom-call.11} parent=57 // loop_footer_branch
            %693 = sbr.rel target = $region60
          $region65: #{custom-call.11} parent=57 // loop_exit
            _
        $region58: #{custom-call.11} parent=42 // pred_fallthru
          _
        // Predicated region
        $region66: #{custom-call.11} parent=42 // pred_check
          _
        $region67: #{custom-call.11} parent=42 // pred_check_branch
          %710 = sbr.rel target = $region69
        $region68: #{custom-call.11} parent=42 // pred_region
          _
        $region69: #{custom-call.11} parent=42 // pred_fallthru
          _
      $region43: #{custom-call.11} parent=38 // pred_fallthru
        _
      // Predicated region
      $region44: #{custom-call.11} parent=38 // pred_check
        _
      $region45: #{custom-call.11} parent=38 // pred_check_branch
        %673 = sbr.rel target = $region47
      $region46: #{custom-call.11} parent=38 // pred_region
        loop: start=0, step=1, limit=1
        $region48: #{custom-call.11} parent=46 // loop_pre_header
          _
        $region49: #{custom-call.11} parent=46 // loop_header
          %s676 = sphi 0, %s680
          %p677 = scmp.ge.s32.totalorder %s676, 1
          %s681 = sphi [#allocation1], [#allocation1]
          %s682 = sphi %s1, %s1
        $region50: #{custom-call.11} parent=46 // loop_header_branch
          %679 = sbr.rel (%p677) target = $region54
        $region51: #{custom-call.11} parent=46 // loop_body
          %v683 = vld [vmem:[%s681] sm:$0xff]
          %684 = vst [vmem:[%s682] sm:$0xff] %v683
          %v685 = vld [vmem:[%s681 + $0x8] sm:$0xff]
          %686 = vst [vmem:[%s682 + $0x8] sm:$0xff] %v685
          %v687 = vld [vmem:[%s681 + $0x10] sm:$0xff]
          %688 = vst [vmem:[%s682 + $0x10] sm:$0xff] %v687
          %v689 = vld [vmem:[%s681 + $0x18] sm:$0xff]
          %690 = vst [vmem:[%s682 + $0x18] sm:$0xff] %v689
        $region52: #{custom-call.11} parent=46 // loop_footer
          %s680 = sadd.s32 1, %s676
        $region53: #{custom-call.11} parent=46 // loop_footer_branch
          %675 = sbr.rel target = $region49
        $region54: #{custom-call.11} parent=46 // loop_exit
          _
      $region47: #{custom-call.11} parent=38 // pred_fallthru
        _
    $region39: #{custom-call.11} parent=1 // pred_fallthru
      _
    %711 = vnop

// kernel: negative_log_marginal_lik_MRI_singledat_forward.1
$region0: #{negative_log_marginal_lik_MRI_singledat_forward.1}
  #allocation0 [shape = 'u32[]', space=smem, size = 0x4, offset = 0x4, fixed_abs, tag = 'smem constant byte address 0x4 - core index']
  #allocation1 [shape = 'u32[144,128]{1,0:T(1,128)}', space=vmem, size = 0x12000, scoped, tag = 'internal scratch']
  %s0 = inlined_call_operand.vmem [shape: f32[3], index: 0, kind: input, shape index: {}]
  %s1 = inlined_call_operand.vmem [shape: f32[256,8], index: 1, kind: input, shape index: {}, may-alias: {1,2}]
  %s2 = inlined_call_operand.vmem [shape: f32[256,8], index: 2, kind: input, shape index: {}, may-alias: {1,2}]
  %s3 = inlined_call_operand.vmem [shape: f32[128,2], index: 3, kind: input, shape index: {}]
  %s4 = inlined_call_operand.vmem [shape: f32[2,128], index: 4, kind: input, shape index: {}]
  %s5 = inlined_call_operand.vmem [shape: f32[128,128], index: 5, kind: output, shape index: {}]
  %s6 = sld [smem:[#allocation0]]
  $region34: #{negative_log_marginal_lik_MRI_singledat_forward.1} parent=0
    _
  %s8 = ssub.s32 1, %s6
  %s9 = scalar_select 0, %s8, %s6
  $region1: #{negative_log_marginal_lik_MRI_singledat_forward.1} parent=0
    #allocation2 [shape = 'u8[512]{0}', space=smem, size = 0x200, scoped, tag = 'input window, operand 0, single buffered']
    #allocation3 [shape = 's32[1]{0}', space=sflag, size = 0x4, scoped, tag = 'scoped memory for negative_log_marginal_lik_MRI_singledat_forward.1']
    %10 = vsyncpa [#allocation3], 0
    // Predicated region
    $region2: #{negative_log_marginal_lik_MRI_singledat_forward.1} parent=1 // pred_check
      _
    $region3: #{negative_log_marginal_lik_MRI_singledat_forward.1} parent=1 // pred_check_branch
      %12 = sbr.rel (0) target = $region5
    $region4: #{negative_log_marginal_lik_MRI_singledat_forward.1} parent=1 // pred_region
      %s14 = ssub.s32 16, 16
      %15 = vsyncadd [#allocation3], %s14
      %s17 = sshll.u32 %s0, 4
      %s18 = int_to_ptr.vmem [resolvable:$true] %s17
      %20 = dma.vmem_to_smem %s18, 16, [#allocation2], [#allocation3]
    $region5: #{negative_log_marginal_lik_MRI_singledat_forward.1} parent=1 // pred_fallthru
      _
    // Predicated region
    $region6: #{negative_log_marginal_lik_MRI_singledat_forward.1} parent=1 // pred_check
      _
    $region7: #{negative_log_marginal_lik_MRI_singledat_forward.1} parent=1 // pred_check_branch
      %22 = sbr.rel (0) target = $region9
    $region8: #{negative_log_marginal_lik_MRI_singledat_forward.1} parent=1 // pred_region
      _
    $region9: #{negative_log_marginal_lik_MRI_singledat_forward.1} parent=1 // pred_fallthru
      _
    // Predicated region
    $region10: #{negative_log_marginal_lik_MRI_singledat_forward.1} parent=1 // pred_check
      _
    $region11: #{negative_log_marginal_lik_MRI_singledat_forward.1} parent=1 // pred_check_branch
      %24 = sbr.rel (0) target = $region13
    $region12: #{negative_log_marginal_lik_MRI_singledat_forward.1} parent=1 // pred_region
      _
    $region13: #{negative_log_marginal_lik_MRI_singledat_forward.1} parent=1 // pred_fallthru
      _
    // Predicated region
    $region14: #{negative_log_marginal_lik_MRI_singledat_forward.1} parent=1 // pred_check
      _
    $region15: #{negative_log_marginal_lik_MRI_singledat_forward.1} parent=1 // pred_check_branch
      %26 = sbr.rel (0) target = $region17
    $region16: #{negative_log_marginal_lik_MRI_singledat_forward.1} parent=1 // pred_region
      _
    $region17: #{negative_log_marginal_lik_MRI_singledat_forward.1} parent=1 // pred_fallthru
      _
    // Predicated region
    $region18: #{negative_log_marginal_lik_MRI_singledat_forward.1} parent=1 // pred_check
      _
    $region19: #{negative_log_marginal_lik_MRI_singledat_forward.1} parent=1 // pred_check_branch
      %28 = sbr.rel (0) target = $region21
    $region20: #{negative_log_marginal_lik_MRI_singledat_forward.1} parent=1 // pred_region
      _
    $region21: #{negative_log_marginal_lik_MRI_singledat_forward.1} parent=1 // pred_fallthru
      _
    // Predicated region
    $region22: #{negative_log_marginal_lik_MRI_singledat_forward.1} parent=1 // pred_check
      _
    $region23: #{negative_log_marginal_lik_MRI_singledat_forward.1} parent=1 // pred_check_branch
      %30 = sbr.rel (0) target = $region25
    $region24: #{negative_log_marginal_lik_MRI_singledat_forward.1} parent=1 // pred_region
      %31 = dma.done [#allocation3], 16
    $region25: #{negative_log_marginal_lik_MRI_singledat_forward.1} parent=1 // pred_fallthru
      _
    %32 = sfence
    %s33 = sld [smem:[#allocation2]]
    %s34 = sld [smem:[#allocation2 + $0x1]]
    %s35 = sld [smem:[#allocation2 + $0x2]]
    %v36 = vld [vmem:[%s1] sm:$0xff]
    %v37 = vld [vmem:[%s1 + $0x8] sm:$0xff]
    %v38 = vld [vmem:[%s1 + $0x10] sm:$0xff]
    %v39 = vld [vmem:[%s1 + $0x18] sm:$0xff]
    %v40 = vld [vmem:[%s1 + $0x20] sm:$0xff]
    %v41 = vld [vmem:[%s1 + $0x28] sm:$0xff]
    %v42 = vld [vmem:[%s1 + $0x30] sm:$0xff]
    %v43 = vld [vmem:[%s1 + $0x38] sm:$0xff]
    %v44 = vld [vmem:[%s1 + $0x40] sm:$0xff]
    %v45 = vld [vmem:[%s1 + $0x48] sm:$0xff]
    %v46 = vld [vmem:[%s1 + $0x50] sm:$0xff]
    %v47 = vld [vmem:[%s1 + $0x58] sm:$0xff]
    %v48 = vld [vmem:[%s1 + $0x60] sm:$0xff]
    %v49 = vld [vmem:[%s1 + $0x68] sm:$0xff]
    %v50 = vld [vmem:[%s1 + $0x70] sm:$0xff]
    %v51 = vld [vmem:[%s1 + $0x78] sm:$0xff]
    %v52 = vld [vmem:[%s1 + $0x80] sm:$0xff]
    %v53 = vld [vmem:[%s1 + $0x88] sm:$0xff]
    %v54 = vld [vmem:[%s1 + $0x90] sm:$0xff]
    %v55 = vld [vmem:[%s1 + $0x98] sm:$0xff]
    %v56 = vld [vmem:[%s1 + $0xa0] sm:$0xff]
    %v57 = vld [vmem:[%s1 + $0xa8] sm:$0xff]
    %v58 = vld [vmem:[%s1 + $0xb0] sm:$0xff]
    %v59 = vld [vmem:[%s1 + $0xb8] sm:$0xff]
    %v60 = vld [vmem:[%s1 + $0xc0] sm:$0xff]
    %v61 = vld [vmem:[%s1 + $0xc8] sm:$0xff]
    %v62 = vld [vmem:[%s1 + $0xd0] sm:$0xff]
    %v63 = vld [vmem:[%s1 + $0xd8] sm:$0xff]
    %v64 = vld [vmem:[%s1 + $0xe0] sm:$0xff]
    %v65 = vld [vmem:[%s1 + $0xe8] sm:$0xff]
    %v66 = vld [vmem:[%s1 + $0xf0] sm:$0xff]
    %v67 = vld [vmem:[%s1 + $0xf8] sm:$0xff]
    %v68 = vld [vmem:[%s2] sm:$0xff]
    %v69 = vld [vmem:[%s2 + $0x8] sm:$0xff]
    %v70 = vld [vmem:[%s2 + $0x10] sm:$0xff]
    %v71 = vld [vmem:[%s2 + $0x18] sm:$0xff]
    %v72 = vld [vmem:[%s2 + $0x20] sm:$0xff]
    %v73 = vld [vmem:[%s2 + $0x28] sm:$0xff]
    %v74 = vld [vmem:[%s2 + $0x30] sm:$0xff]
    %v75 = vld [vmem:[%s2 + $0x38] sm:$0xff]
    %v76 = vld [vmem:[%s2 + $0x40] sm:$0xff]
    %v77 = vld [vmem:[%s2 + $0x48] sm:$0xff]
    %v78 = vld [vmem:[%s2 + $0x50] sm:$0xff]
    %v79 = vld [vmem:[%s2 + $0x58] sm:$0xff]
    %v80 = vld [vmem:[%s2 + $0x60] sm:$0xff]
    %v81 = vld [vmem:[%s2 + $0x68] sm:$0xff]
    %v82 = vld [vmem:[%s2 + $0x70] sm:$0xff]
    %v83 = vld [vmem:[%s2 + $0x78] sm:$0xff]
    %v84 = vld [vmem:[%s2 + $0x80] sm:$0xff]
    %v85 = vld [vmem:[%s2 + $0x88] sm:$0xff]
    %v86 = vld [vmem:[%s2 + $0x90] sm:$0xff]
    %v87 = vld [vmem:[%s2 + $0x98] sm:$0xff]
    %v88 = vld [vmem:[%s2 + $0xa0] sm:$0xff]
    %v89 = vld [vmem:[%s2 + $0xa8] sm:$0xff]
    %v90 = vld [vmem:[%s2 + $0xb0] sm:$0xff]
    %v91 = vld [vmem:[%s2 + $0xb8] sm:$0xff]
    %v92 = vld [vmem:[%s2 + $0xc0] sm:$0xff]
    %v93 = vld [vmem:[%s2 + $0xc8] sm:$0xff]
    %v94 = vld [vmem:[%s2 + $0xd0] sm:$0xff]
    %v95 = vld [vmem:[%s2 + $0xd8] sm:$0xff]
    %v96 = vld [vmem:[%s2 + $0xe0] sm:$0xff]
    %v97 = vld [vmem:[%s2 + $0xe8] sm:$0xff]
    %v98 = vld [vmem:[%s2 + $0xf0] sm:$0xff]
    %v99 = vld [vmem:[%s2 + $0xf8] sm:$0xff]
    %vm100 = vcmask 64512
    %v102 = vsel %vm100, %v36, 0
    %v105 = vsel %vm100, %v37, 0
    %v108 = vsel %vm100, %v38, 0
    %v111 = vsel %vm100, %v39, 0
    %v114 = vsel %vm100, %v40, 0
    %v117 = vsel %vm100, %v41, 0
    %v120 = vsel %vm100, %v42, 0
    %v123 = vsel %vm100, %v43, 0
    %v126 = vsel %vm100, %v44, 0
    %v129 = vsel %vm100, %v45, 0
    %v132 = vsel %vm100, %v46, 0
    %v135 = vsel %vm100, %v47, 0
    %v138 = vsel %vm100, %v48, 0
    %v141 = vsel %vm100, %v49, 0
    %v144 = vsel %vm100, %v50, 0
    %v147 = vsel %vm100, %v51, 0
    %v150 = vsel %vm100, %v52, 0
    %v153 = vsel %vm100, %v53, 0
    %v156 = vsel %vm100, %v54, 0
    %v159 = vsel %vm100, %v55, 0
    %v162 = vsel %vm100, %v56, 0
    %v165 = vsel %vm100, %v57, 0
    %v168 = vsel %vm100, %v58, 0
    %v171 = vsel %vm100, %v59, 0
    %v174 = vsel %vm100, %v60, 0
    %v177 = vsel %vm100, %v61, 0
    %v180 = vsel %vm100, %v62, 0
    %v183 = vsel %vm100, %v63, 0
    %v186 = vsel %vm100, %v64, 0
    %v189 = vsel %vm100, %v65, 0
    %v192 = vsel %vm100, %v66, 0
    %v195 = vsel %vm100, %v67, 0
    %v198 = vsel %vm100, %v68, 0
    %v201 = vsel %vm100, %v69, 0
    %v204 = vsel %vm100, %v70, 0
    %v207 = vsel %vm100, %v71, 0
    %v210 = vsel %vm100, %v72, 0
    %v213 = vsel %vm100, %v73, 0
    %v216 = vsel %vm100, %v74, 0
    %v219 = vsel %vm100, %v75, 0
    %v222 = vsel %vm100, %v76, 0
    %v225 = vsel %vm100, %v77, 0
    %v228 = vsel %vm100, %v78, 0
    %v231 = vsel %vm100, %v79, 0
    %v234 = vsel %vm100, %v80, 0
    %v237 = vsel %vm100, %v81, 0
    %v240 = vsel %vm100, %v82, 0
    %v243 = vsel %vm100, %v83, 0
    %v246 = vsel %vm100, %v84, 0
    %v249 = vsel %vm100, %v85, 0
    %v252 = vsel %vm100, %v86, 0
    %v255 = vsel %vm100, %v87, 0
    %v258 = vsel %vm100, %v88, 0
    %v261 = vsel %vm100, %v89, 0
    %v264 = vsel %vm100, %v90, 0
    %v267 = vsel %vm100, %v91, 0
    %v270 = vsel %vm100, %v92, 0
    %v273 = vsel %vm100, %v93, 0
    %v276 = vsel %vm100, %v94, 0
    %v279 = vsel %vm100, %v95, 0
    %v282 = vsel %vm100, %v96, 0
    %v285 = vsel %vm100, %v97, 0
    %v288 = vsel %vm100, %v98, 0
    %v291 = vsel %vm100, %v99, 0
    %293 = vmatprep.subr.mxu0 0.0
    %294 = vmatpush1.xpose.msra.mxu0 %v198
    %295 = vmatprep.subr.mxu0 0.0
    %296 = vmatpush1.xpose.msra.mxu0 %v201
    %297 = vmatprep.subr.mxu0 0.0
    %298 = vmatpush1.xpose.msra.mxu0 %v204
    %299 = vmatprep.subr.mxu0 0.0
    %300 = vmatpush1.xpose.msra.mxu0 %v207
    %301 = vmatprep.subr.mxu0 0.0
    %302 = vmatpush1.xpose.msra.mxu0 %v210
    %303 = vmatprep.subr.mxu0 0.0
    %304 = vmatpush1.xpose.msra.mxu0 %v213
    %305 = vmatprep.subr.mxu0 0.0
    %306 = vmatpush1.xpose.msra.mxu0 %v216
    %307 = vmatprep.subr.mxu0 0.0
    %308 = vmatpush1.xpose.msra.mxu0 %v219
    %309 = vmatprep.subr.mxu0 0.0
    %310 = vmatpush1.xpose.msra.mxu0 %v222
    %311 = vmatprep.subr.mxu0 0.0
    %312 = vmatpush1.xpose.msra.mxu0 %v225
    %313 = vmatprep.subr.mxu0 0.0
    %314 = vmatpush1.xpose.msra.mxu0 %v228
    %315 = vmatprep.subr.mxu0 0.0
    %316 = vmatpush1.xpose.msra.mxu0 %v231
    %317 = vmatprep.subr.mxu0 0.0
    %318 = vmatpush1.xpose.msra.mxu0 %v234
    %319 = vmatprep.subr.mxu0 0.0
    %320 = vmatpush1.xpose.msra.mxu0 %v237
    %321 = vmatprep.subr.mxu0 0.0
    %322 = vmatpush1.xpose.msra.mxu0 %v240
    %323 = vmatprep.subr.mxu0 0.0
    %324 = vmatpush1.xpose.msra.mxu0 %v243
    %325 = vmatprep.subr.mxu0 0.0
    %326 = vmatpush1.xpose.msra.mxu0 %v246
    %327 = vmatprep.subr.mxu0 0.0
    %328 = vmatpush1.xpose.msra.mxu0 %v249
    %329 = vmatprep.subr.mxu0 0.0
    %330 = vmatpush1.xpose.msra.mxu0 %v252
    %331 = vmatprep.subr.mxu0 0.0
    %332 = vmatpush1.xpose.msra.mxu0 %v255
    %333 = vmatprep.subr.mxu0 0.0
    %334 = vmatpush1.xpose.msra.mxu0 %v258
    %335 = vmatprep.subr.mxu0 0.0
    %336 = vmatpush1.xpose.msra.mxu0 %v261
    %337 = vmatprep.subr.mxu0 0.0
    %338 = vmatpush1.xpose.msra.mxu0 %v264
    %339 = vmatprep.subr.mxu0 0.0
    %340 = vmatpush1.xpose.msra.mxu0 %v267
    %341 = vmatprep.subr.mxu0 0.0
    %342 = vmatpush1.xpose.msra.mxu0 %v270
    %343 = vmatprep.subr.mxu0 0.0
    %344 = vmatpush1.xpose.msra.mxu0 %v273
    %345 = vmatprep.subr.mxu0 0.0
    %346 = vmatpush1.xpose.msra.mxu0 %v276
    %347 = vmatprep.subr.mxu0 0.0
    %348 = vmatpush1.xpose.msra.mxu0 %v279
    %349 = vmatprep.subr.mxu0 0.0
    %350 = vmatpush1.xpose.msra.mxu0 %v282
    %351 = vmatprep.subr.mxu0 0.0
    %352 = vmatpush1.xpose.msra.mxu0 %v285
    %353 = vmatprep.subr.mxu0 0.0
    %354 = vmatpush1.xpose.msra.mxu0 %v288
    %355 = vmatprep.subr.mxu0 0.0
    %356 = vmatpush1.xpose.msra.mxu0 %v291
    %357 = vmatprep.mubr.f32.mxu0 0.0
    %358 = vmatmul.mubr.f32.gmra.mrb[0].mxu0 %v102
    %v359 = vpop.f32.mrb[0].mxu0
    %v360 = vadd.f32 0.0, %v359
    %v361 = vpop.f32.mrb[0].mxu0
    %v362 = vadd.f32 0.0, %v361
    %363 = vmatprep.mubr.f32.mxu0 0.0
    %364 = vmatmul.mubr.f32.gmra.mrb[0].mxu0 %v105
    %v365 = vpop.f32.mrb[0].mxu0
    %v366 = vadd.f32 0.0, %v365
    %v367 = vpop.f32.mrb[0].mxu0
    %v368 = vadd.f32 0.0, %v367
    %369 = vmatprep.mubr.f32.mxu0 0.0
    %370 = vmatmul.mubr.f32.gmra.mrb[0].mxu0 %v108
    %v371 = vpop.f32.mrb[0].mxu0
    %v372 = vadd.f32 0.0, %v371
    %v373 = vpop.f32.mrb[0].mxu0
    %v374 = vadd.f32 0.0, %v373
    %375 = vmatprep.mubr.f32.mxu0 0.0
    %376 = vmatmul.mubr.f32.gmra.mrb[0].mxu0 %v111
    %v377 = vpop.f32.mrb[0].mxu0
    %v378 = vadd.f32 0.0, %v377
    %v379 = vpop.f32.mrb[0].mxu0
    %v380 = vadd.f32 0.0, %v379
    %381 = vmatprep.mubr.f32.mxu0 0.0
    %382 = vmatmul.mubr.f32.gmra.mrb[0].mxu0 %v114
    %v383 = vpop.f32.mrb[0].mxu0
    %v384 = vadd.f32 0.0, %v383
    %v385 = vpop.f32.mrb[0].mxu0
    %v386 = vadd.f32 0.0, %v385
    %387 = vmatprep.mubr.f32.mxu0 0.0
    %388 = vmatmul.mubr.f32.gmra.mrb[0].mxu0 %v117
    %v389 = vpop.f32.mrb[0].mxu0
    %v390 = vadd.f32 0.0, %v389
    %v391 = vpop.f32.mrb[0].mxu0
    %v392 = vadd.f32 0.0, %v391
    %393 = vmatprep.mubr.f32.mxu0 0.0
    %394 = vmatmul.mubr.f32.gmra.mrb[0].mxu0 %v120
    %v395 = vpop.f32.mrb[0].mxu0
    %v396 = vadd.f32 0.0, %v395
    %v397 = vpop.f32.mrb[0].mxu0
    %v398 = vadd.f32 0.0, %v397
    %399 = vmatprep.mubr.f32.mxu0 0.0
    %400 = vmatmul.mubr.f32.gmra.mrb[0].mxu0 %v123
    %v401 = vpop.f32.mrb[0].mxu0
    %v402 = vadd.f32 0.0, %v401
    %v403 = vpop.f32.mrb[0].mxu0
    %v404 = vadd.f32 0.0, %v403
    %405 = vmatprep.mubr.f32.mxu0 0.0
    %406 = vmatmul.mubr.f32.gmra.mrb[0].mxu0 %v126
    %v407 = vpop.f32.mrb[0].mxu0
    %v408 = vadd.f32 0.0, %v407
    %v409 = vpop.f32.mrb[0].mxu0
    %v410 = vadd.f32 0.0, %v409
    %411 = vmatprep.mubr.f32.mxu0 0.0
    %412 = vmatmul.mubr.f32.gmra.mrb[0].mxu0 %v129
    %v413 = vpop.f32.mrb[0].mxu0
    %v414 = vadd.f32 0.0, %v413
    %v415 = vpop.f32.mrb[0].mxu0
    %v416 = vadd.f32 0.0, %v415
    %417 = vmatprep.mubr.f32.mxu0 0.0
    %418 = vmatmul.mubr.f32.gmra.mrb[0].mxu0 %v132
    %v419 = vpop.f32.mrb[0].mxu0
    %v420 = vadd.f32 0.0, %v419
    %v421 = vpop.f32.mrb[0].mxu0
    %v422 = vadd.f32 0.0, %v421
    %423 = vmatprep.mubr.f32.mxu0 0.0
    %424 = vmatmul.mubr.f32.gmra.mrb[0].mxu0 %v135
    %v425 = vpop.f32.mrb[0].mxu0
    %v426 = vadd.f32 0.0, %v425
    %v427 = vpop.f32.mrb[0].mxu0
    %v428 = vadd.f32 0.0, %v427
    %429 = vmatprep.mubr.f32.mxu0 0.0
    %430 = vmatmul.mubr.f32.gmra.mrb[0].mxu0 %v138
    %v431 = vpop.f32.mrb[0].mxu0
    %v432 = vadd.f32 0.0, %v431
    %v433 = vpop.f32.mrb[0].mxu0
    %v434 = vadd.f32 0.0, %v433
    %435 = vmatprep.mubr.f32.mxu0 0.0
    %436 = vmatmul.mubr.f32.gmra.mrb[0].mxu0 %v141
    %v437 = vpop.f32.mrb[0].mxu0
    %v438 = vadd.f32 0.0, %v437
    %v439 = vpop.f32.mrb[0].mxu0
    %v440 = vadd.f32 0.0, %v439
    %441 = vmatprep.mubr.f32.mxu0 0.0
    %442 = vmatmul.mubr.f32.gmra.mrb[0].mxu0 %v144
    %v443 = vpop.f32.mrb[0].mxu0
    %v444 = vadd.f32 0.0, %v443
    %v445 = vpop.f32.mrb[0].mxu0
    %v446 = vadd.f32 0.0, %v445
    %447 = vmatprep.mubr.f32.mxu0 0.0
    %448 = vmatmul.mubr.f32.gmra.mrb[0].mxu0 %v147
    %v449 = vpop.f32.mrb[0].mxu0
    %v450 = vadd.f32 0.0, %v449
    %v451 = vpop.f32.mrb[0].mxu0
    %v452 = vadd.f32 0.0, %v451
    %453 = vmatprep.mubr.f32.mxu0 0.0
    %454 = vmatmul.mubr.f32.gmra.mrb[0].mxu0 %v150
    %v455 = vpop.f32.mrb[0].mxu0
    %v456 = vadd.f32 0.0, %v455
    %v457 = vpop.f32.mrb[0].mxu0
    %v458 = vadd.f32 0.0, %v457
    %459 = vmatprep.mubr.f32.mxu0 0.0
    %460 = vmatmul.mubr.f32.gmra.mrb[0].mxu0 %v153
    %v461 = vpop.f32.mrb[0].mxu0
    %v462 = vadd.f32 0.0, %v461
    %v463 = vpop.f32.mrb[0].mxu0
    %v464 = vadd.f32 0.0, %v463
    %465 = vmatprep.mubr.f32.mxu0 0.0
    %466 = vmatmul.mubr.f32.gmra.mrb[0].mxu0 %v156
    %v467 = vpop.f32.mrb[0].mxu0
    %v468 = vadd.f32 0.0, %v467
    %v469 = vpop.f32.mrb[0].mxu0
    %v470 = vadd.f32 0.0, %v469
    %471 = vmatprep.mubr.f32.mxu0 0.0
    %472 = vmatmul.mubr.f32.gmra.mrb[0].mxu0 %v159
    %v473 = vpop.f32.mrb[0].mxu0
    %v474 = vadd.f32 0.0, %v473
    %v475 = vpop.f32.mrb[0].mxu0
    %v476 = vadd.f32 0.0, %v475
    %477 = vmatprep.mubr.f32.mxu0 0.0
    %478 = vmatmul.mubr.f32.gmra.mrb[0].mxu0 %v162
    %v479 = vpop.f32.mrb[0].mxu0
    %v480 = vadd.f32 0.0, %v479
    %v481 = vpop.f32.mrb[0].mxu0
    %v482 = vadd.f32 0.0, %v481
    %483 = vmatprep.mubr.f32.mxu0 0.0
    %484 = vmatmul.mubr.f32.gmra.mrb[0].mxu0 %v165
    %v485 = vpop.f32.mrb[0].mxu0
    %v486 = vadd.f32 0.0, %v485
    %v487 = vpop.f32.mrb[0].mxu0
    %v488 = vadd.f32 0.0, %v487
    %489 = vmatprep.mubr.f32.mxu0 0.0
    %490 = vmatmul.mubr.f32.gmra.mrb[0].mxu0 %v168
    %v491 = vpop.f32.mrb[0].mxu0
    %v492 = vadd.f32 0.0, %v491
    %v493 = vpop.f32.mrb[0].mxu0
    %v494 = vadd.f32 0.0, %v493
    %495 = vmatprep.mubr.f32.mxu0 0.0
    %496 = vmatmul.mubr.f32.gmra.mrb[0].mxu0 %v171
    %v497 = vpop.f32.mrb[0].mxu0
    %v498 = vadd.f32 0.0, %v497
    %v499 = vpop.f32.mrb[0].mxu0
    %v500 = vadd.f32 0.0, %v499
    %501 = vmatprep.mubr.f32.mxu0 0.0
    %502 = vmatmul.mubr.f32.gmra.mrb[0].mxu0 %v174
    %v503 = vpop.f32.mrb[0].mxu0
    %v504 = vadd.f32 0.0, %v503
    %v505 = vpop.f32.mrb[0].mxu0
    %v506 = vadd.f32 0.0, %v505
    %507 = vmatprep.mubr.f32.mxu0 0.0
    %508 = vmatmul.mubr.f32.gmra.mrb[0].mxu0 %v177
    %v509 = vpop.f32.mrb[0].mxu0
    %v510 = vadd.f32 0.0, %v509
    %v511 = vpop.f32.mrb[0].mxu0
    %v512 = vadd.f32 0.0, %v511
    %513 = vmatprep.mubr.f32.mxu0 0.0
    %514 = vmatmul.mubr.f32.gmra.mrb[0].mxu0 %v180
    %v515 = vpop.f32.mrb[0].mxu0
    %v516 = vadd.f32 0.0, %v515
    %v517 = vpop.f32.mrb[0].mxu0
    %v518 = vadd.f32 0.0, %v517
    %519 = vmatprep.mubr.f32.mxu0 0.0
    %520 = vmatmul.mubr.f32.gmra.mrb[0].mxu0 %v183
    %v521 = vpop.f32.mrb[0].mxu0
    %v522 = vadd.f32 0.0, %v521
    %v523 = vpop.f32.mrb[0].mxu0
    %v524 = vadd.f32 0.0, %v523
    %525 = vmatprep.mubr.f32.mxu0 0.0
    %526 = vmatmul.mubr.f32.gmra.mrb[0].mxu0 %v186
    %v527 = vpop.f32.mrb[0].mxu0
    %v528 = vadd.f32 0.0, %v527
    %v529 = vpop.f32.mrb[0].mxu0
    %v530 = vadd.f32 0.0, %v529
    %531 = vmatprep.mubr.f32.mxu0 0.0
    %532 = vmatmul.mubr.f32.gmra.mrb[0].mxu0 %v189
    %v533 = vpop.f32.mrb[0].mxu0
    %v534 = vadd.f32 0.0, %v533
    %v535 = vpop.f32.mrb[0].mxu0
    %v536 = vadd.f32 0.0, %v535
    %537 = vmatprep.mubr.f32.mxu0 0.0
    %538 = vmatmul.mubr.f32.gmra.mrb[0].mxu0 %v192
    %v539 = vpop.f32.mrb[0].mxu0
    %v540 = vadd.f32 0.0, %v539
    %v541 = vpop.f32.mrb[0].mxu0
    %v542 = vadd.f32 0.0, %v541
    %543 = vmatprep.mubr.f32.mxu0 0.0
    %544 = vmatmul.mubr.f32.gmra.mrb[0].mxu0 %v195
    %v545 = vpop.f32.mrb[0].mxu0
    %v546 = vadd.f32 0.0, %v545
    %v547 = vpop.f32.mrb[0].mxu0
    %v548 = vadd.f32 0.0, %v547
    %549 = vdwg.mxu0
    %v550 = vadd.f32 %v362, %v456
    %v551 = vadd.f32 %v368, %v462
    %v552 = vadd.f32 %v374, %v468
    %v553 = vadd.f32 %v380, %v474
    %v554 = vadd.f32 %v386, %v480
    %v555 = vadd.f32 %v392, %v486
    %v556 = vadd.f32 %v398, %v492
    %v557 = vadd.f32 %v404, %v498
    %v558 = vadd.f32 %v410, %v504
    %v559 = vadd.f32 %v416, %v510
    %v560 = vadd.f32 %v422, %v516
    %v561 = vadd.f32 %v428, %v522
    %v562 = vadd.f32 %v434, %v528
    %v563 = vadd.f32 %v440, %v534
    %v564 = vadd.f32 %v446, %v540
    %v565 = vadd.f32 %v452, %v546
    %v566 = vld [vmem:[%s3] sm:$0xff]
    %v567 = vld [vmem:[%s3 + $0x8] sm:$0xff]
    %v568 = vld [vmem:[%s3 + $0x10] sm:$0xff]
    %v569 = vld [vmem:[%s3 + $0x18] sm:$0xff]
    %v570 = vld [vmem:[%s3 + $0x20] sm:$0xff]
    %v571 = vld [vmem:[%s3 + $0x28] sm:$0xff]
    %v572 = vld [vmem:[%s3 + $0x30] sm:$0xff]
    %v573 = vld [vmem:[%s3 + $0x38] sm:$0xff]
    %v574 = vld [vmem:[%s3 + $0x40] sm:$0xff]
    %v575 = vld [vmem:[%s3 + $0x48] sm:$0xff]
    %v576 = vld [vmem:[%s3 + $0x50] sm:$0xff]
    %v577 = vld [vmem:[%s3 + $0x58] sm:$0xff]
    %v578 = vld [vmem:[%s3 + $0x60] sm:$0xff]
    %v579 = vld [vmem:[%s3 + $0x68] sm:$0xff]
    %v580 = vld [vmem:[%s3 + $0x70] sm:$0xff]
    %v581 = vld [vmem:[%s3 + $0x78] sm:$0xff]
    %v582 = vld [vmem:[%s4] sm:$0x3]
    %584 = vset.pattern.permute.xlu0 0
    %585 = vperm.xlu0 %584, %v566
    %v586 = vpop.permute.xlu0 %585
    %589 = vset.pattern.permute.xlu0 0
    %590 = vperm.xlu0 %589, %v567
    %v591 = vpop.permute.xlu0 %590
    %594 = vset.pattern.permute.xlu0 0
    %595 = vperm.xlu0 %594, %v568
    %v596 = vpop.permute.xlu0 %595
    %599 = vset.pattern.permute.xlu0 0
    %600 = vperm.xlu0 %599, %v569
    %v601 = vpop.permute.xlu0 %600
    %604 = vset.pattern.permute.xlu0 0
    %605 = vperm.xlu0 %604, %v570
    %v606 = vpop.permute.xlu0 %605
    %609 = vset.pattern.permute.xlu0 0
    %610 = vperm.xlu0 %609, %v571
    %v611 = vpop.permute.xlu0 %610
    %614 = vset.pattern.permute.xlu0 0
    %615 = vperm.xlu0 %614, %v572
    %v616 = vpop.permute.xlu0 %615
    %619 = vset.pattern.permute.xlu0 0
    %620 = vperm.xlu0 %619, %v573
    %v621 = vpop.permute.xlu0 %620
    %624 = vset.pattern.permute.xlu0 0
    %625 = vperm.xlu0 %624, %v574
    %v626 = vpop.permute.xlu0 %625
    %629 = vset.pattern.permute.xlu0 0
    %630 = vperm.xlu0 %629, %v575
    %v631 = vpop.permute.xlu0 %630
    %634 = vset.pattern.permute.xlu0 0
    %635 = vperm.xlu0 %634, %v576
    %v636 = vpop.permute.xlu0 %635
    %639 = vset.pattern.permute.xlu0 0
    %640 = vperm.xlu0 %639, %v577
    %v641 = vpop.permute.xlu0 %640
    %644 = vset.pattern.permute.xlu0 0
    %645 = vperm.xlu0 %644, %v578
    %v646 = vpop.permute.xlu0 %645
    %649 = vset.pattern.permute.xlu0 0
    %650 = vperm.xlu0 %649, %v579
    %v651 = vpop.permute.xlu0 %650
    %654 = vset.pattern.permute.xlu0 0
    %655 = vperm.xlu0 %654, %v580
    %v656 = vpop.permute.xlu0 %655
    %659 = vset.pattern.permute.xlu0 0
    %660 = vperm.xlu0 %659, %v581
    %v661 = vpop.permute.xlu0 %660
    %v663 = vlaneseq
    %v664 = vshrl.u32 %v663, 7
    %v665 = vsub.s32 0, %v664
    %v666 = vrot.slane %v582, %v665
    %v667 = vadd.f32 %v586, %v666
    %v668 = vadd.f32 %v591, %v666
    %v669 = vadd.f32 %v596, %v666
    %v670 = vadd.f32 %v601, %v666
    %v671 = vadd.f32 %v606, %v666
    %v672 = vadd.f32 %v611, %v666
    %v673 = vadd.f32 %v616, %v666
    %v674 = vadd.f32 %v621, %v666
    %v675 = vadd.f32 %v626, %v666
    %v676 = vadd.f32 %v631, %v666
    %v677 = vadd.f32 %v636, %v666
    %v678 = vadd.f32 %v641, %v666
    %v679 = vadd.f32 %v646, %v666
    %v680 = vadd.f32 %v651, %v666
    %v681 = vadd.f32 %v656, %v666
    %v682 = vadd.f32 %v661, %v666
    %v683 = vmul.f32 %v360, 2.0
    %v684 = vmul.f32 %v366, 2.0
    %v685 = vmul.f32 %v372, 2.0
    %v686 = vmul.f32 %v378, 2.0
    %v687 = vmul.f32 %v384, 2.0
    %v688 = vmul.f32 %v390, 2.0
    %v689 = vmul.f32 %v396, 2.0
    %v690 = vmul.f32 %v402, 2.0
    %v691 = vmul.f32 %v408, 2.0
    %v692 = vmul.f32 %v414, 2.0
    %v693 = vmul.f32 %v420, 2.0
    %v694 = vmul.f32 %v426, 2.0
    %v695 = vmul.f32 %v432, 2.0
    %v696 = vmul.f32 %v438, 2.0
    %v697 = vmul.f32 %v444, 2.0
    %v698 = vmul.f32 %v450, 2.0
    %v699 = vsub.f32 %v667, %v683
    %v700 = vsub.f32 %v668, %v684
    %v701 = vsub.f32 %v669, %v685
    %v702 = vsub.f32 %v670, %v686
    %v703 = vsub.f32 %v671, %v687
    %v704 = vsub.f32 %v672, %v688
    %v705 = vsub.f32 %v673, %v689
    %v706 = vsub.f32 %v674, %v690
    %v707 = vsub.f32 %v675, %v691
    %v708 = vsub.f32 %v676, %v692
    %v709 = vsub.f32 %v677, %v693
    %v710 = vsub.f32 %v678, %v694
    %v711 = vsub.f32 %v679, %v695
    %v712 = vsub.f32 %v680, %v696
    %v713 = vsub.f32 %v681, %v697
    %v714 = vsub.f32 %v682, %v698
    %v715 = vmax.f32 %v699, 0.0
    %v716 = vmax.f32 %v700, 0.0
    %v717 = vmax.f32 %v701, 0.0
    %v718 = vmax.f32 %v702, 0.0
    %v719 = vmax.f32 %v703, 0.0
    %v720 = vmax.f32 %v704, 0.0
    %v721 = vmax.f32 %v705, 0.0
    %v722 = vmax.f32 %v706, 0.0
    %v723 = vmax.f32 %v707, 0.0
    %v724 = vmax.f32 %v708, 0.0
    %v725 = vmax.f32 %v709, 0.0
    %v726 = vmax.f32 %v710, 0.0
    %v727 = vmax.f32 %v711, 0.0
    %v728 = vmax.f32 %v712, 0.0
    %v729 = vmax.f32 %v713, 0.0
    %v730 = vmax.f32 %v714, 0.0
    %v731 = vstv %s34
    %v732 = vmul.f32 %v715, %v731
    %v733 = vmul.f32 %v716, %v731
    %v734 = vmul.f32 %v717, %v731
    %v735 = vmul.f32 %v718, %v731
    %v736 = vmul.f32 %v719, %v731
    %v737 = vmul.f32 %v720, %v731
    %v738 = vmul.f32 %v721, %v731
    %v739 = vmul.f32 %v722, %v731
    %v740 = vmul.f32 %v723, %v731
    %v741 = vmul.f32 %v724, %v731
    %v742 = vmul.f32 %v725, %v731
    %v743 = vmul.f32 %v726, %v731
    %v744 = vmul.f32 %v727, %v731
    %v745 = vmul.f32 %v728, %v731
    %v746 = vmul.f32 %v729, %v731
    %v747 = vmul.f32 %v730, %v731
    %v748 = vsub.f32 0.0, %v732
    %v749 = vsub.f32 0.0, %v733
    %v750 = vsub.f32 0.0, %v734
    %v751 = vsub.f32 0.0, %v735
    %v752 = vsub.f32 0.0, %v736
    %v753 = vsub.f32 0.0, %v737
    %v754 = vsub.f32 0.0, %v738
    %v755 = vsub.f32 0.0, %v739
    %v756 = vsub.f32 0.0, %v740
    %v757 = vsub.f32 0.0, %v741
    %v758 = vsub.f32 0.0, %v742
    %v759 = vsub.f32 0.0, %v743
    %v760 = vsub.f32 0.0, %v744
    %v761 = vsub.f32 0.0, %v745
    %v762 = vsub.f32 0.0, %v746
    %v763 = vsub.f32 0.0, %v747
    %v764 = vmul.f32 %v748, 1.442695
    %v765 = vpow.pop %v764
    %v766 = vmul.f32 %v749, 1.442695
    %v767 = vpow.pop %v766
    %v768 = vmul.f32 %v750, 1.442695
    %v769 = vpow.pop %v768
    %v770 = vmul.f32 %v751, 1.442695
    %v771 = vpow.pop %v770
    %v772 = vmul.f32 %v752, 1.442695
    %v773 = vpow.pop %v772
    %v774 = vmul.f32 %v753, 1.442695
    %v775 = vpow.pop %v774
    %v776 = vmul.f32 %v754, 1.442695
    %v777 = vpow.pop %v776
    %v778 = vmul.f32 %v755, 1.442695
    %v779 = vpow.pop %v778
    %v780 = vmul.f32 %v756, 1.442695
    %v781 = vpow.pop %v780
    %v782 = vmul.f32 %v757, 1.442695
    %v783 = vpow.pop %v782
    %v784 = vmul.f32 %v758, 1.442695
    %v785 = vpow.pop %v784
    %v786 = vmul.f32 %v759, 1.442695
    %v787 = vpow.pop %v786
    %v788 = vmul.f32 %v760, 1.442695
    %v789 = vpow.pop %v788
    %v790 = vmul.f32 %v761, 1.442695
    %v791 = vpow.pop %v790
    %v792 = vmul.f32 %v762, 1.442695
    %v793 = vpow.pop %v792
    %v794 = vmul.f32 %v763, 1.442695
    %v795 = vpow.pop %v794
    %v796 = vstv %s33
    %v797 = vmul.f32 %v796, %v765
    %v798 = vmul.f32 %v796, %v767
    %v799 = vmul.f32 %v796, %v769
    %v800 = vmul.f32 %v796, %v771
    %v801 = vmul.f32 %v796, %v773
    %v802 = vmul.f32 %v796, %v775
    %v803 = vmul.f32 %v796, %v777
    %v804 = vmul.f32 %v796, %v779
    %v805 = vmul.f32 %v796, %v781
    %v806 = vmul.f32 %v796, %v783
    %v807 = vmul.f32 %v796, %v785
    %v808 = vmul.f32 %v796, %v787
    %v809 = vmul.f32 %v796, %v789
    %v810 = vmul.f32 %v796, %v791
    %v811 = vmul.f32 %v796, %v793
    %v812 = vmul.f32 %v796, %v795
    %813 = vset.pattern.permute.xlu0 1
    %814 = vperm.xlu0 %813, %v566
    %v815 = vpop.permute.xlu0 %814
    %817 = vset.pattern.permute.xlu0 1
    %818 = vperm.xlu0 %817, %v567
    %v819 = vpop.permute.xlu0 %818
    %821 = vset.pattern.permute.xlu0 1
    %822 = vperm.xlu0 %821, %v568
    %v823 = vpop.permute.xlu0 %822
    %825 = vset.pattern.permute.xlu0 1
    %826 = vperm.xlu0 %825, %v569
    %v827 = vpop.permute.xlu0 %826
    %829 = vset.pattern.permute.xlu0 1
    %830 = vperm.xlu0 %829, %v570
    %v831 = vpop.permute.xlu0 %830
    %833 = vset.pattern.permute.xlu0 1
    %834 = vperm.xlu0 %833, %v571
    %v835 = vpop.permute.xlu0 %834
    %837 = vset.pattern.permute.xlu0 1
    %838 = vperm.xlu0 %837, %v572
    %v839 = vpop.permute.xlu0 %838
    %841 = vset.pattern.permute.xlu0 1
    %842 = vperm.xlu0 %841, %v573
    %v843 = vpop.permute.xlu0 %842
    %845 = vset.pattern.permute.xlu0 1
    %846 = vperm.xlu0 %845, %v574
    %v847 = vpop.permute.xlu0 %846
    %849 = vset.pattern.permute.xlu0 1
    %850 = vperm.xlu0 %849, %v575
    %v851 = vpop.permute.xlu0 %850
    %853 = vset.pattern.permute.xlu0 1
    %854 = vperm.xlu0 %853, %v576
    %v855 = vpop.permute.xlu0 %854
    %857 = vset.pattern.permute.xlu0 1
    %858 = vperm.xlu0 %857, %v577
    %v859 = vpop.permute.xlu0 %858
    %861 = vset.pattern.permute.xlu0 1
    %862 = vperm.xlu0 %861, %v578
    %v863 = vpop.permute.xlu0 %862
    %865 = vset.pattern.permute.xlu0 1
    %866 = vperm.xlu0 %865, %v579
    %v867 = vpop.permute.xlu0 %866
    %869 = vset.pattern.permute.xlu0 1
    %870 = vperm.xlu0 %869, %v580
    %v871 = vpop.permute.xlu0 %870
    %873 = vset.pattern.permute.xlu0 1
    %874 = vperm.xlu0 %873, %v581
    %v875 = vpop.permute.xlu0 %874
    %v877 = vlaneseq
    %v878 = vshrl.u32 %v877, 7
    %v879 = vsub.s32 1, %v878
    %v880 = vrot.slane %v582, %v879
    %v881 = vadd.f32 %v815, %v880
    %v882 = vadd.f32 %v819, %v880
    %v883 = vadd.f32 %v823, %v880
    %v884 = vadd.f32 %v827, %v880
    %v885 = vadd.f32 %v831, %v880
    %v886 = vadd.f32 %v835, %v880
    %v887 = vadd.f32 %v839, %v880
    %v888 = vadd.f32 %v843, %v880
    %v889 = vadd.f32 %v847, %v880
    %v890 = vadd.f32 %v851, %v880
    %v891 = vadd.f32 %v855, %v880
    %v892 = vadd.f32 %v859, %v880
    %v893 = vadd.f32 %v863, %v880
    %v894 = vadd.f32 %v867, %v880
    %v895 = vadd.f32 %v871, %v880
    %v896 = vadd.f32 %v875, %v880
    %v897 = vsub.f32 %v881, %v550
    %v898 = vsub.f32 %v882, %v551
    %v899 = vsub.f32 %v883, %v552
    %v900 = vsub.f32 %v884, %v553
    %v901 = vsub.f32 %v885, %v554
    %v902 = vsub.f32 %v886, %v555
    %v903 = vsub.f32 %v887, %v556
    %v904 = vsub.f32 %v888, %v557
    %v905 = vsub.f32 %v889, %v558
    %v906 = vsub.f32 %v890, %v559
    %v907 = vsub.f32 %v891, %v560
    %v908 = vsub.f32 %v892, %v561
    %v909 = vsub.f32 %v893, %v562
    %v910 = vsub.f32 %v894, %v563
    %v911 = vsub.f32 %v895, %v564
    %v912 = vsub.f32 %v896, %v565
    %v913 = vmul.f32 %v732, 4.0
    %v914 = vmul.f32 %v733, 4.0
    %v915 = vmul.f32 %v734, 4.0
    %v916 = vmul.f32 %v735, 4.0
    %v917 = vmul.f32 %v736, 4.0
    %v918 = vmul.f32 %v737, 4.0
    %v919 = vmul.f32 %v738, 4.0
    %v920 = vmul.f32 %v739, 4.0
    %v921 = vmul.f32 %v740, 4.0
    %v922 = vmul.f32 %v741, 4.0
    %v923 = vmul.f32 %v742, 4.0
    %v924 = vmul.f32 %v743, 4.0
    %v925 = vmul.f32 %v744, 4.0
    %v926 = vmul.f32 %v745, 4.0
    %v927 = vmul.f32 %v746, 4.0
    %v928 = vmul.f32 %v747, 4.0
    %v929 = vsub.f32 16.0, %v913
    %v930 = vsub.f32 16.0, %v914
    %v931 = vsub.f32 16.0, %v915
    %v932 = vsub.f32 16.0, %v916
    %v933 = vsub.f32 16.0, %v917
    %v934 = vsub.f32 16.0, %v918
    %v935 = vsub.f32 16.0, %v919
    %v936 = vsub.f32 16.0, %v920
    %v937 = vsub.f32 16.0, %v921
    %v938 = vsub.f32 16.0, %v922
    %v939 = vsub.f32 16.0, %v923
    %v940 = vsub.f32 16.0, %v924
    %v941 = vsub.f32 16.0, %v925
    %v942 = vsub.f32 16.0, %v926
    %v943 = vsub.f32 16.0, %v927
    %v944 = vsub.f32 16.0, %v928
    %v945 = vmul.f32 %v897, 2.0
    %v946 = vmul.f32 %v898, 2.0
    %v947 = vmul.f32 %v899, 2.0
    %v948 = vmul.f32 %v900, 2.0
    %v949 = vmul.f32 %v901, 2.0
    %v950 = vmul.f32 %v902, 2.0
    %v951 = vmul.f32 %v903, 2.0
    %v952 = vmul.f32 %v904, 2.0
    %v953 = vmul.f32 %v905, 2.0
    %v954 = vmul.f32 %v906, 2.0
    %v955 = vmul.f32 %v907, 2.0
    %v956 = vmul.f32 %v908, 2.0
    %v957 = vmul.f32 %v909, 2.0
    %v958 = vmul.f32 %v910, 2.0
    %v959 = vmul.f32 %v911, 2.0
    %v960 = vmul.f32 %v912, 2.0
    %v961 = vadd.f32 %v929, %v945
    %v962 = vadd.f32 %v930, %v946
    %v963 = vadd.f32 %v931, %v947
    %v964 = vadd.f32 %v932, %v948
    %v965 = vadd.f32 %v933, %v949
    %v966 = vadd.f32 %v934, %v950
    %v967 = vadd.f32 %v935, %v951
    %v968 = vadd.f32 %v936, %v952
    %v969 = vadd.f32 %v937, %v953
    %v970 = vadd.f32 %v938, %v954
    %v971 = vadd.f32 %v939, %v955
    %v972 = vadd.f32 %v940, %v956
    %v973 = vadd.f32 %v941, %v957
    %v974 = vadd.f32 %v942, %v958
    %v975 = vadd.f32 %v943, %v959
    %v976 = vadd.f32 %v944, %v960
    %v977 = vmul.f32 %v731, %v961
    %v978 = vmul.f32 %v731, %v962
    %v979 = vmul.f32 %v731, %v963
    %v980 = vmul.f32 %v731, %v964
    %v981 = vmul.f32 %v731, %v965
    %v982 = vmul.f32 %v731, %v966
    %v983 = vmul.f32 %v731, %v967
    %v984 = vmul.f32 %v731, %v968
    %v985 = vmul.f32 %v731, %v969
    %v986 = vmul.f32 %v731, %v970
    %v987 = vmul.f32 %v731, %v971
    %v988 = vmul.f32 %v731, %v972
    %v989 = vmul.f32 %v731, %v973
    %v990 = vmul.f32 %v731, %v974
    %v991 = vmul.f32 %v731, %v975
    %v992 = vmul.f32 %v731, %v976
    %v993 = vadd.f32 %v977, %v458
    %v994 = vadd.f32 %v978, %v464
    %v995 = vadd.f32 %v979, %v470
    %v996 = vadd.f32 %v980, %v476
    %v997 = vadd.f32 %v981, %v482
    %v998 = vadd.f32 %v982, %v488
    %v999 = vadd.f32 %v983, %v494
    %v1000 = vadd.f32 %v984, %v500
    %v1001 = vadd.f32 %v985, %v506
    %v1002 = vadd.f32 %v986, %v512
    %v1003 = vadd.f32 %v987, %v518
    %v1004 = vadd.f32 %v988, %v524
    %v1005 = vadd.f32 %v989, %v530
    %v1006 = vadd.f32 %v990, %v536
    %v1007 = vadd.f32 %v991, %v542
    %v1008 = vadd.f32 %v992, %v548
    %v1009 = vmul.f32 %v797, %v993
    %v1010 = vmul.f32 %v798, %v994
    %v1011 = vmul.f32 %v799, %v995
    %v1012 = vmul.f32 %v800, %v996
    %v1013 = vmul.f32 %v801, %v997
    %v1014 = vmul.f32 %v802, %v998
    %v1015 = vmul.f32 %v803, %v999
    %v1016 = vmul.f32 %v804, %v1000
    %v1017 = vmul.f32 %v805, %v1001
    %v1018 = vmul.f32 %v806, %v1002
    %v1019 = vmul.f32 %v807, %v1003
    %v1020 = vmul.f32 %v808, %v1004
    %v1021 = vmul.f32 %v809, %v1005
    %v1022 = vmul.f32 %v810, %v1006
    %v1023 = vmul.f32 %v811, %v1007
    %v1024 = vmul.f32 %v812, %v1008
    %v1025 = vstv %s35
    %v1026 = vadd.f32 %v1009, %v1025
    %v1027 = vadd.f32 %v1010, %v1025
    %v1028 = vadd.f32 %v1011, %v1025
    %v1029 = vadd.f32 %v1012, %v1025
    %v1030 = vadd.f32 %v1013, %v1025
    %v1031 = vadd.f32 %v1014, %v1025
    %v1032 = vadd.f32 %v1015, %v1025
    %v1033 = vadd.f32 %v1016, %v1025
    %v1034 = vadd.f32 %v1017, %v1025
    %v1035 = vadd.f32 %v1018, %v1025
    %v1036 = vadd.f32 %v1019, %v1025
    %v1037 = vadd.f32 %v1020, %v1025
    %v1038 = vadd.f32 %v1021, %v1025
    %v1039 = vadd.f32 %v1022, %v1025
    %v1040 = vadd.f32 %v1023, %v1025
    %v1041 = vadd.f32 %v1024, %v1025
    %1042 = vst [vmem:[%s5] sm:$0xff] %v1026
    %1043 = vst [vmem:[%s5 + $0x8] sm:$0xff] %v1027
    %1044 = vst [vmem:[%s5 + $0x10] sm:$0xff] %v1028
    %1045 = vst [vmem:[%s5 + $0x18] sm:$0xff] %v1029
    %1046 = vst [vmem:[%s5 + $0x20] sm:$0xff] %v1030
    %1047 = vst [vmem:[%s5 + $0x28] sm:$0xff] %v1031
    %1048 = vst [vmem:[%s5 + $0x30] sm:$0xff] %v1032
    %1049 = vst [vmem:[%s5 + $0x38] sm:$0xff] %v1033
    %1050 = vst [vmem:[%s5 + $0x40] sm:$0xff] %v1034
    %1051 = vst [vmem:[%s5 + $0x48] sm:$0xff] %v1035
    %1052 = vst [vmem:[%s5 + $0x50] sm:$0xff] %v1036
    %1053 = vst [vmem:[%s5 + $0x58] sm:$0xff] %v1037
    %1054 = vst [vmem:[%s5 + $0x60] sm:$0xff] %v1038
    %1055 = vst [vmem:[%s5 + $0x68] sm:$0xff] %v1039
    %1056 = vst [vmem:[%s5 + $0x70] sm:$0xff] %v1040
    %1057 = vst [vmem:[%s5 + $0x78] sm:$0xff] %v1041
    // Predicated region
    $region26: #{negative_log_marginal_lik_MRI_singledat_forward.1} parent=1 // pred_check
      _
    $region27: #{negative_log_marginal_lik_MRI_singledat_forward.1} parent=1 // pred_check_branch
      %1059 = sbr.rel (0) target = $region29
    $region28: #{negative_log_marginal_lik_MRI_singledat_forward.1} parent=1 // pred_region
      _
    $region29: #{negative_log_marginal_lik_MRI_singledat_forward.1} parent=1 // pred_fallthru
      _
    // Predicated region
    $region30: #{negative_log_marginal_lik_MRI_singledat_forward.1} parent=1 // pred_check
      _
    $region31: #{negative_log_marginal_lik_MRI_singledat_forward.1} parent=1 // pred_check_branch
      %1061 = sbr.rel (0) target = $region33
    $region32: #{negative_log_marginal_lik_MRI_singledat_forward.1} parent=1 // pred_region
      _
    $region33: #{negative_log_marginal_lik_MRI_singledat_forward.1} parent=1 // pred_fallthru
      _
    %1062 = vsyncpa [#allocation3], 1

</llo_original>
